<compile_context>
chip_gen: v5e
topology: v5e:2x2
jax: 0.10.0
libtpu: 0.0.40
codegen_flags: <defaults>
</compile_context>

<pallas_src>
import jax
import jax.numpy as jnp
import numpy as np
from jax import lax
from jax.experimental import pallas as pl
from jax.experimental.pallas import tpu as pltpu

# ----------------------------- config ---------------------------------------
B, T, C = 8, 8, 16        # batch (one full sublane group), seq length, motion dim
H = 32                    # rnn_state_size
W_ST = 3                  # short_term_window_size (> 1 branch)
HIST = 1                  # encode_history=True -> one encoded history frame
N_SEQ = HIST + W_ST + 1   # concatenated_seq_dim for siMLPe_mini
L_MLP = 2                 # motion_rnn.mlp_layers
LN_EPS = 1e-5
# TODO(synk): rnn_layers > 1 and the LSTM / non-encode_history / W_ST==1
#             branches of the parent module are not implemented.


# ----------------------------- kernel factory --------------------------------
def _make_kernel(T_, C_, H_, NB, n_seq, ln_eps):
    f32 = jnp.float32
    H2 = 2 * H_
    w_st = n_seq - 2

    def kernel(x_ref,        # (1, T*NB, C)  time-major batch block
               wi_ref,       # (C, 3H)   fused W_ih^T, gate order [r|z|n]
               bi_ref,       # (1, 3H)
               whrz_ref,     # (H, 2H)   W_hh^T, r|z columns
               whn_ref,      # (H, H)    W_hh^T, n columns
               bhrz_ref,     # (1, 2H)
               bhn_ref,      # (1, H)
               wdec_ref,     # (H, C)    fc_decoder.weight^T
               bdec_ref,     # (1, C)
               k0t_ref,      # ((N-1)*C, N*C) centred layer-0 temporal FC (rows 0..3)
               wdk0_ref,     # (H, N*C)  wdec @ (centred layer-0 FC rows of the dec slot)
               b0_ref,       # (1, N*C)  centred layer-0 bias (+ bdec contribution)
               k1_ref,       # (N*C, N*C) centred layer-1 temporal FC
               b1_ref,       # (1, N*C)
               mmean_ref,    # (N*C, N*C) segmented averaging matrix
               lna_ref,      # (L, 1, N*C) LN alpha (tiled over segments)
               lnb_ref,      # (L, 1, N*C) LN beta
               wfr_ref,      # (N*C, C)  temporal_merge ∘ motion_fc_out
               mbias_ref,    # (1, C)    merged output bias
               wgirz_ref,    # (N*C, 2H) W_frame @ wi[:, :2H]
               wgin_ref,     # (N*C, H)  W_frame @ wi[:, 2H:]
               mbirz_ref,    # (1, 2H)
               mbin_ref,     # (1, H)
               out_ref,      # (1, NB, T*C) lane-dense output
               gi_scr):      # VMEM scratch (T*NB, 3H)
        x2d = x_ref[0]                                     # (T*NB, C)

        # Input-side GRU gates for every input frame in one sublane-filling dot;
        # parked in VMEM so per-step rz / n slices come back through the load
        # slots already re-based to lane offset 0 (review items 4 & 8).
        gi_scr[...] = (jnp.dot(x2d, wi_ref[...], preferred_element_type=f32)
                       + bi_ref[...])

        def gh_dots(h):
            gh_rz = (jnp.dot(h, whrz_ref[...], preferred_element_type=f32)
                     + bhrz_ref[...])
            gh_n = (jnp.dot(h, whn_ref[...], preferred_element_type=f32)
                    + bhn_ref[...])
            return gh_rz, gh_n

        def gru_combine(gi_rz, gi_n, gh_rz, gh_n, h):
            rz = jax.nn.sigmoid(gi_rz + gh_rz)             # lanes 0..2H
            r = rz[:, :H_]                                 # offset 0, no rotate
            z = rz[:, H_:]                                 # single rotate / step
            n = jnp.tanh(gi_n + r * gh_n)                  # all operands at 0..H
            return n + z * (h - n)

        def gru_step_from_scratch(t, h):
            gi_rz = gi_scr[t * NB:(t + 1) * NB, :H2]
            gi_n = gi_scr[t * NB:(t + 1) * NB, H2:]
            gh_rz, gh_n = gh_dots(h)
            return gru_combine(gi_rz, gi_n, gh_rz, gh_n, h)

        # ---------------- encoder over frames 0..T-2 + encode_history ---------
        h = jnp.zeros((NB, H_), f32)
        for t in range(T_ - 1):                            # fully unrolled
            h = gru_step_from_scratch(t, h)
        # encode_history step == first decode GRU step -> computed once.
        h = gru_step_from_scratch(T_ - 1, h)
        window_history = (jnp.dot(h, wdec_ref[...], preferred_element_type=f32)
                          + bdec_ref[...])

        last_input = x2d[(T_ - 1) * NB:T_ * NB, :]
        # running input-side gates of the current rnn input (= gi(prev_input))
        gi_rz = gi_scr[(T_ - 1) * NB:T_ * NB, :H2]
        gi_n = gi_scr[(T_ - 1) * NB:T_ * NB, H2:]

        # ---------------- autoregressive decode (unrolled) --------------------
        out_frames = []
        prev_input = last_input
        for fid in range(T_):
            if fid == 0:
                dec = window_history                       # shares history step
            else:
                gh_rz, gh_n = gh_dots(h)
                h = gru_combine(gi_rz, gi_n, gh_rz, gh_n, h)
                dec = (jnp.dot(h, wdec_ref[...], preferred_element_type=f32)
                       + bdec_ref[...])

            # short-term window rows (trace-time selection, no out_ref re-reads)
            rows = [window_history]
            for j in range(w_st):
                idx = fid - w_st + j
                if idx < 0:
                    rows.append(x2d[(T_ + idx) * NB:(T_ + idx + 1) * NB, :])
                else:
                    rows.append(out_frames[idx])
            p4 = jnp.concatenate(rows, axis=-1)            # (NB, (N-1)*C)
            z0 = jnp.concatenate([p4, dec], axis=-1)       # (NB, N*C) packed

            # ---- TransMLP layer 0 (dec folded through wdec @ K0, pre-centred)
            diff0 = (jnp.dot(p4, k0t_ref[...], preferred_element_type=f32)
                     + jnp.dot(h, wdk0_ref[...], preferred_element_type=f32)
                     + b0_ref[...])
            var0 = jnp.dot(diff0 * diff0, mmean_ref[...],
                           preferred_element_type=f32)
            y0 = diff0 * lax.rsqrt(var0 + ln_eps) * lna_ref[0] + lnb_ref[0]
            z1 = z0 + y0
            # ---- TransMLP layer 1 (pre-centred)
            diff1 = (jnp.dot(z1, k1_ref[...], preferred_element_type=f32)
                     + b1_ref[...])
            var1 = jnp.dot(diff1 * diff1, mmean_ref[...],
                           preferred_element_type=f32)
            y1 = diff1 * lax.rsqrt(var1 + ln_eps) * lna_ref[1] + lnb_ref[1]
            z2 = z1 + y1

            # temporal_merge_fc ∘ motion_fc_out folded host-side into W_frame
            new_frame = (jnp.dot(z2, wfr_ref[...], preferred_element_type=f32)
                         + mbias_ref[...] + prev_input)    # recursive residual

            if fid + 1 < T_:
                # input gates of new_frame issued straight from z2, in parallel
                # with the new_frame dot (breaks the new_frame -> gi chain).
                gi_rz = gi_rz + (jnp.dot(z2, wgirz_ref[...],
                                         preferred_element_type=f32)
                                 + mbirz_ref[...])
                gi_n = gi_n + (jnp.dot(z2, wgin_ref[...],
                                       preferred_element_type=f32)
                               + mbin_ref[...])

            out_frames.append(new_frame)
            prev_input = new_frame

        # single lane-dense store: (NB, T*C) = (NB, 128)
        out_ref[0] = jnp.concatenate(out_frames, axis=-1)

    return kernel


# ----------------------------- wrapper ---------------------------------------
def sliding_rnn_v4(x, params, *, num_batch_blocks=1):
    B_, T_, C_ = x.shape
    G = num_batch_blocks
    # Review: only shard the batch across TensorCores (v7x) when every core
    # still gets >= 8 sublanes of batch rows — the recurrence is latency-bound,
    # so splitting tiny batches only duplicates weight DMA + per-core overhead.
    if G > 1 and (B_ % G != 0 or (B_ // G) < 8):
        G = 1
    NB = B_ // G

    # time-major, batch-block-major layout: xr[g, t*NB + n, :] = x[g*NB+n, t, :]
    xr = x.reshape(G, NB, T_, C_).transpose(0, 2, 1, 3).reshape(G, T_ * NB, C_)

    kernel = _make_kernel(T_, C_, H, NB, N_SEQ, LN_EPS)

    def _full_vmem_spec(p):
        nd = p.ndim
        return pl.BlockSpec(p.shape, lambda g, _nd=nd: (0,) * _nd)

    in_specs = [pl.BlockSpec((1, T_ * NB, C_), lambda g: (g, 0, 0))]
    in_specs += [_full_vmem_spec(p) for p in params]
    out_specs = pl.BlockSpec((1, NB, T_ * C_), lambda g: (g, 0, 0))

    out = pl.pallas_call(
        kernel,
        out_shape=jax.ShapeDtypeStruct((G, NB, T_ * C_), jnp.float32),
        grid=(G,),
        in_specs=in_specs,
        out_specs=out_specs,
        scratch_shapes=[pltpu.VMEM((T_ * NB, 3 * H), jnp.float32)],
        compiler_params=pltpu.CompilerParams(dimension_semantics=("parallel",)),
    )(xr, *params)

    return out.reshape(B_, T_, C_)


# ----------------------------- host-side weight packing ----------------------
def pack_params(raw):
    """Fold siMLPe_mini + GRU weights into the kernel's lane-packed layout.

    All derived matrices are computed in float64 numpy (exact at these sizes)
    and cast to f32 once, so no precision is lost in the precompute.
    """
    f64 = np.float64
    N = N_SEQ
    NC = N * C

    wi = np.asarray(raw["w_ih"], f64).T                    # (C, 3H)  [r|z|n]
    bi = np.asarray(raw["b_ih"], f64).reshape(1, 3 * H)
    wh = np.asarray(raw["w_hh"], f64).T                    # (H, 3H)
    bh = np.asarray(raw["b_hh"], f64).reshape(1, 3 * H)
    wdec = np.asarray(raw["w_dec"], f64).T                 # (H, C)
    bdec = np.asarray(raw["b_dec"], f64).reshape(1, C)
    wout = np.asarray(raw["w_out"], f64).T                 # (C, C)
    bout = np.asarray(raw["b_out"], f64).reshape(1, C)
    wmrg = np.asarray(raw["w_mrg"], f64).reshape(N)
    bmrg = np.asarray(raw["b_mrg"], f64).reshape(1, 1)
    fc0_w = np.asarray(raw["fc0_w"], f64)
    fc0_b = np.asarray(raw["fc0_b"], f64)
    ln_a = np.asarray(raw["ln_a"], f64)
    ln_b = np.asarray(raw["ln_b"], f64)

    eyeC = np.eye(C)
    # segmented averaging (mean over each C-wide temporal segment, broadcast)
    mmean = np.kron(np.eye(N), np.ones((C, C)) / C)        # (NC, NC)
    center = np.eye(NC) - mmean

    kc, bc = [], []
    for l in range(L_MLP):
        K = np.kron(fc0_w[l].T, eyeC)                      # lane-packed 5x5 FC
        b = np.repeat(fc0_b[l], C).reshape(1, NC)
        kc.append(K @ center)                              # pre-centred
        bc.append(b @ center)
    k0c, k1c = kc
    b0c, b1c = bc

    split = (N - 1) * C
    k0_top = k0c[:split, :]                                # segments 0..3
    k0_bot = k0c[split:, :]                                # dec segment
    wdec_k0 = wdec @ k0_bot                                # (H, NC)
    b0_fold = b0c + bdec @ k0_bot                          # (1, NC)

    lna_p = np.stack([np.tile(ln_a[l], N).reshape(1, NC) for l in range(L_MLP)])
    lnb_p = np.stack([np.tile(ln_b[l], N).reshape(1, NC) for l in range(L_MLP)])

    wmrg_packed = np.kron(wmrg.reshape(N, 1), eyeC)        # (NC, C)
    w_frame = wmrg_packed @ wout                           # (NC, C)
    merge_bias = wmrg.sum() * bout + bmrg                  # (1, C)
    w_gi = w_frame @ wi                                    # (NC, 3H)
    mb_wi = merge_bias @ wi                                # (1, 3H)

    H2 = 2 * H
    mats = (
        wi, bi,
        wh[:, :H2], wh[:, H2:], bh[:, :H2], bh[:, H2:],
        wdec, bdec,
        k0_top, wdec_k0, b0_fold,
        k1c, b1c,
        mmean,
        lna_p, lnb_p,
        w_frame, merge_bias,
        w_gi[:, :H2], w_gi[:, H2:], mb_wi[:, :H2], mb_wi[:, H2:],
    )
    return tuple(jnp.asarray(m, jnp.float32) for m in mats)


# ----------------------------- reference (plain JAX) --------------------------
def reference_forward(x, raw):
    B_, T_, C_ = x.shape

    def gru_step(xt, h):  # xt: (B, C), h: (B, H)
        gi = xt @ raw["w_ih"].T + raw["b_ih"]
        gh = h @ raw["w_hh"].T + raw["b_hh"]
        i_r, i_z, i_n = jnp.split(gi, 3, axis=-1)
        h_r, h_z, h_n = jnp.split(gh, 3, axis=-1)
        r = jax.nn.sigmoid(i_r + h_r)
        z = jax.nn.sigmoid(i_z + h_z)
        n = jnp.tanh(i_n + r * h_n)
        return (1.0 - z) * n + z * h

    def mlp_mini(m_in):  # (B, N, C) -> (B, 1, C), mirrors the torch code
        z = jnp.transpose(m_in, (0, 2, 1))                       # (B, C, N)
        for l in range(L_MLP):
            z_ = z @ raw["fc0_w"][l].T + raw["fc0_b"][l]
            mean = jnp.mean(z_, axis=1, keepdims=True)
            var = jnp.mean((z_ - mean) ** 2, axis=1, keepdims=True)
            y = (z_ - mean) / jnp.sqrt(var + LN_EPS)
            y = y * raw["ln_a"][l][None, :, None] + raw["ln_b"][l][None, :, None]
            z = z + y
        feats = jnp.transpose(z, (0, 2, 1)) @ raw["w_out"].T + raw["b_out"]
        merged = jnp.transpose(feats, (0, 2, 1)) @ raw["w_mrg"].T + raw["b_mrg"]
        return jnp.transpose(merged, (0, 2, 1))

    h = jnp.zeros((B_, H), jnp.float32)
    for t in range(T_ - 1):
        h = gru_step(x[:, t, :], h)
    last = x[:, -1:, :]
    h_hist = gru_step(last[:, 0, :], h)
    win_hist = (h_hist @ raw["w_dec"].T + raw["b_dec"])[:, None, :]

    outs = []
    last_rnn_in = last
    for fid in range(T_):
        h = gru_step(last_rnn_in[:, 0, :], h)
        dec = (h @ raw["w_dec"].T + raw["b_dec"])[:, None, :]
        fs = fid - W_ST
        if fid == 0:
            win_st = x[:, fs:, :]
        elif fs < 0:
            win_st = jnp.concatenate([x[:, fs:, :]] + outs[:fid], axis=1)
        else:
            win_st = jnp.concatenate(outs[fs:fid], axis=1)
        mlp_in = jnp.concatenate([win_hist, win_st, dec], axis=1)
        new_frame = mlp_mini(mlp_in) + last_rnn_in
        outs.append(new_frame)
        last_rnn_in = new_frame
    return jnp.concatenate(outs, axis=1)


# ----------------------------- main -------------------------------------------
if __name__ == "__main__":
    key = jax.random.PRNGKey(0)
    ks = jax.random.split(key, 14)
    s = 0.1

    raw = {
        "w_ih": jax.random.normal(ks[0], (3 * H, C), jnp.float32) * s,
        "w_hh": jax.random.normal(ks[1], (3 * H, H), jnp.float32) * s,
        "b_ih": jax.random.normal(ks[2], (3 * H,), jnp.float32) * s,
        "b_hh": jax.random.normal(ks[3], (3 * H,), jnp.float32) * s,
        "w_dec": jax.random.normal(ks[4], (C, H), jnp.float32) * s,
        "b_dec": jax.random.normal(ks[5], (C,), jnp.float32) * s,
        "fc0_w": jax.random.normal(ks[6], (L_MLP, N_SEQ, N_SEQ), jnp.float32) * s,
        "fc0_b": jax.random.normal(ks[7], (L_MLP, N_SEQ), jnp.float32) * s,
        "ln_a": jnp.ones((L_MLP, C), jnp.float32),
        "ln_b": jnp.zeros((L_MLP, C), jnp.float32),
        "w_out": jax.random.normal(ks[8], (C, C), jnp.float32) * s,
        "b_out": jax.random.normal(ks[9], (C,), jnp.float32) * s,
        "w_mrg": jax.random.normal(ks[10], (1, N_SEQ), jnp.float32) * s,
        "b_mrg": jax.random.normal(ks[11], (1,), jnp.float32) * s,
    }

    x = jax.random.normal(ks[12], (B, T, C), jnp.float32)
    params = pack_params(raw)

    ref = jax.block_until_ready(reference_forward(x, raw))

    # Single TensorCore block: 8 batch rows fill one f32 sublane group.
    # (On v7x, pass num_batch_blocks=2 only when B >= 16 so each core keeps
    #  >= 8 sublanes — the wrapper refuses smaller splits.)
    out = jax.block_until_ready(sliding_rnn_v4(x, params, num_batch_blocks=1))

    assert out.shape == (B, T, C)
    max_diff = jnp.max(jnp.abs(out - ref))
    assert jnp.allclose(out, ref, atol=1e-3, rtol=1e-3), (
        f"max abs diff = {max_diff}"
    )

    print("KERNEL_OK")
</pallas_src>

<mosaic_0001>
module attributes {stable_mosaic.version = 11 : i64} {
  func.func @kernel(%arg0: i32, %arg1: memref<1x64x16xf32, #tpu.memory_space<vmem>>, %arg2: memref<16x96xf32, #tpu.memory_space<vmem>>, %arg3: memref<1x96xf32, #tpu.memory_space<vmem>>, %arg4: memref<32x64xf32, #tpu.memory_space<vmem>>, %arg5: memref<32x32xf32, #tpu.memory_space<vmem>>, %arg6: memref<1x64xf32, #tpu.memory_space<vmem>>, %arg7: memref<1x32xf32, #tpu.memory_space<vmem>>, %arg8: memref<32x16xf32, #tpu.memory_space<vmem>>, %arg9: memref<1x16xf32, #tpu.memory_space<vmem>>, %arg10: memref<64x80xf32, #tpu.memory_space<vmem>>, %arg11: memref<32x80xf32, #tpu.memory_space<vmem>>, %arg12: memref<1x80xf32, #tpu.memory_space<vmem>>, %arg13: memref<80x80xf32, #tpu.memory_space<vmem>>, %arg14: memref<1x80xf32, #tpu.memory_space<vmem>>, %arg15: memref<80x80xf32, #tpu.memory_space<vmem>>, %arg16: memref<2x1x80xf32, #tpu.memory_space<vmem>>, %arg17: memref<2x1x80xf32, #tpu.memory_space<vmem>>, %arg18: memref<80x16xf32, #tpu.memory_space<vmem>>, %arg19: memref<1x16xf32, #tpu.memory_space<vmem>>, %arg20: memref<80x64xf32, #tpu.memory_space<vmem>>, %arg21: memref<80x32xf32, #tpu.memory_space<vmem>>, %arg22: memref<1x64xf32, #tpu.memory_space<vmem>>, %arg23: memref<1x32xf32, #tpu.memory_space<vmem>>, %arg24: memref<1x8x128xf32, #tpu.memory_space<vmem>>, %arg25: memref<64x96xf32, #tpu.memory_space<vmem>>) attributes {dimension_semantics = [#tpu.dimension_semantics<parallel>], iteration_bounds = array<i64: 1>, scalar_prefetch = 0 : i64, scratch_operands = 1 : i64, tpu.core_type = #tpu.core_type<tc>, window_params = [{transform_indices = @transform_0, window_bounds = array<i64: 1, 64, 16>}, {pipeline_mode = #tpu.pipeline_mode<synchronous>, transform_indices = @transform_1, window_bounds = array<i64: 16, 96>}, {pipeline_mode = #tpu.pipeline_mode<synchronous>, transform_indices = @transform_2, window_bounds = array<i64: 1, 96>}, {pipeline_mode = #tpu.pipeline_mode<synchronous>, transform_indices = @transform_3, window_bounds = array<i64: 32, 64>}, {pipeline_mode = #tpu.pipeline_mode<synchronous>, transform_indices = @transform_4, window_bounds = array<i64: 32, 32>}, {pipeline_mode = #tpu.pipeline_mode<synchronous>, transform_indices = @transform_5, window_bounds = array<i64: 1, 64>}, {pipeline_mode = #tpu.pipeline_mode<synchronous>, transform_indices = @transform_6, window_bounds = array<i64: 1, 32>}, {pipeline_mode = #tpu.pipeline_mode<synchronous>, transform_indices = @transform_7, window_bounds = array<i64: 32, 16>}, {pipeline_mode = #tpu.pipeline_mode<synchronous>, transform_indices = @transform_8, window_bounds = array<i64: 1, 16>}, {pipeline_mode = #tpu.pipeline_mode<synchronous>, transform_indices = @transform_9, window_bounds = array<i64: 64, 80>}, {pipeline_mode = #tpu.pipeline_mode<synchronous>, transform_indices = @transform_10, window_bounds = array<i64: 32, 80>}, {pipeline_mode = #tpu.pipeline_mode<synchronous>, transform_indices = @transform_11, window_bounds = array<i64: 1, 80>}, {pipeline_mode = #tpu.pipeline_mode<synchronous>, transform_indices = @transform_12, window_bounds = array<i64: 80, 80>}, {pipeline_mode = #tpu.pipeline_mode<synchronous>, transform_indices = @transform_13, window_bounds = array<i64: 1, 80>}, {pipeline_mode = #tpu.pipeline_mode<synchronous>, transform_indices = @transform_14, window_bounds = array<i64: 80, 80>}, {pipeline_mode = #tpu.pipeline_mode<synchronous>, transform_indices = @transform_15, window_bounds = array<i64: 2, 1, 80>}, {pipeline_mode = #tpu.pipeline_mode<synchronous>, transform_indices = @transform_16, window_bounds = array<i64: 2, 1, 80>}, {pipeline_mode = #tpu.pipeline_mode<synchronous>, transform_indices = @transform_17, window_bounds = array<i64: 80, 16>}, {pipeline_mode = #tpu.pipeline_mode<synchronous>, transform_indices = @transform_18, window_bounds = array<i64: 1, 16>}, {pipeline_mode = #tpu.pipeline_mode<synchronous>, transform_indices = @transform_19, window_bounds = array<i64: 80, 64>}, {pipeline_mode = #tpu.pipeline_mode<synchronous>, transform_indices = @transform_20, window_bounds = array<i64: 80, 32>}, {pipeline_mode = #tpu.pipeline_mode<synchronous>, transform_indices = @transform_21, window_bounds = array<i64: 1, 64>}, {pipeline_mode = #tpu.pipeline_mode<synchronous>, transform_indices = @transform_22, window_bounds = array<i64: 1, 32>}, {transform_indices = @transform_23, window_bounds = array<i64: 1, 8, 128>}]} {
    %c0 = arith.constant 0 : index
    %c0_0 = arith.constant 0 : index
    %c0_1 = arith.constant 0 : index
    %0 = vector.load %arg1[%c0, %c0_0, %c0_1] : memref<1x64x16xf32, #tpu.memory_space<vmem>>, vector<1x64x16xf32>
    %1 = vector.shape_cast %0 : vector<1x64x16xf32> to vector<64x16xf32>
    %c0_2 = arith.constant 0 : index
    %c0_3 = arith.constant 0 : index
    %2 = vector.load %arg2[%c0_2, %c0_3] : memref<16x96xf32, #tpu.memory_space<vmem>>, vector<16x96xf32>
    %cst = arith.constant dense<0.000000e+00> : vector<64x96xf32>
    %3 = tpu.matmul %1, %2, %cst {dimension_numbers = #tpu.dot_dimension_numbers<[1], [0], [0], [1], [0, 0, 1, 1], [], []>} : vector<64x16xf32>, vector<16x96xf32>, vector<64x96xf32> -> vector<64x96xf32>
    %c0_4 = arith.constant 0 : index
    %c0_5 = arith.constant 0 : index
    %4 = vector.load %arg3[%c0_4, %c0_5] : memref<1x96xf32, #tpu.memory_space<vmem>>, vector<1x96xf32>
    %5 = vector.broadcast %4 : vector<1x96xf32> to vector<64x96xf32>
    %6 = arith.addf %3, %5 : vector<64x96xf32>
    %c0_6 = arith.constant 0 : index
    %c0_7 = arith.constant 0 : index
    %7 = vector.load %arg25[%c0_6, %c0_7] : memref<64x96xf32, #tpu.memory_space<vmem>>, vector<64x96xf32>
    tpu.vector_store %arg25[%c0_6, %c0_7], %6 {strides = array<i32>} : memref<64x96xf32, #tpu.memory_space<vmem>>, vector<64x96xf32>,
    %cst_8 = arith.constant 0.000000e+00 : f32
    %8 = vector.broadcast %cst_8 : f32 to vector<8x32xf32>
    %c0_9 = arith.constant 0 : index
    %c0_10 = arith.constant 0 : index
    %9 = vector.load %arg25[%c0_9, %c0_10] : memref<64x96xf32, #tpu.memory_space<vmem>>, vector<8x64xf32>
    %c0_11 = arith.constant 0 : index
    %c64 = arith.constant 64 : index
    %10 = vector.load %arg25[%c0_11, %c64] : memref<64x96xf32, #tpu.memory_space<vmem>>, vector<8x32xf32>
    %c0_12 = arith.constant 0 : index
    %c0_13 = arith.constant 0 : index
    %11 = vector.load %arg4[%c0_12, %c0_13] : memref<32x64xf32, #tpu.memory_space<vmem>>, vector<32x64xf32>
    %cst_14 = arith.constant dense<0.000000e+00> : vector<8x64xf32>
    %12 = tpu.matmul %8, %11, %cst_14 {dimension_numbers = #tpu.dot_dimension_numbers<[1], [0], [0], [1], [0, 0, 1, 1], [], []>} : vector<8x32xf32>, vector<32x64xf32>, vector<8x64xf32> -> vector<8x64xf32>
    %c0_15 = arith.constant 0 : index
    %c0_16 = arith.constant 0 : index
    %13 = vector.load %arg6[%c0_15, %c0_16] : memref<1x64xf32, #tpu.memory_space<vmem>>, vector<1x64xf32>
    %14 = vector.broadcast %13 : vector<1x64xf32> to vector<8x64xf32>
    %15 = arith.addf %12, %14 : vector<8x64xf32>
    %c0_17 = arith.constant 0 : index
    %c0_18 = arith.constant 0 : index
    %16 = vector.load %arg5[%c0_17, %c0_18] : memref<32x32xf32, #tpu.memory_space<vmem>>, vector<32x32xf32>
    %cst_19 = arith.constant dense<0.000000e+00> : vector<8x32xf32>
    %17 = tpu.matmul %8, %16, %cst_19 {dimension_numbers = #tpu.dot_dimension_numbers<[1], [0], [0], [1], [0, 0, 1, 1], [], []>} : vector<8x32xf32>, vector<32x32xf32>, vector<8x32xf32> -> vector<8x32xf32>
    %c0_20 = arith.constant 0 : index
    %c0_21 = arith.constant 0 : index
    %18 = vector.load %arg7[%c0_20, %c0_21] : memref<1x32xf32, #tpu.memory_space<vmem>>, vector<1x32xf32>
    %19 = vector.broadcast %18 : vector<1x32xf32> to vector<8x32xf32>
    %20 = arith.addf %17, %19 : vector<8x32xf32>
    %21 = arith.addf %9, %15 : vector<8x64xf32>
    %22 = arith.negf %21 : vector<8x64xf32>
    %23 = math.exp %22 : vector<8x64xf32>
    %cst_22 = arith.constant 1.000000e+00 : f32
    %24 = vector.broadcast %cst_22 : f32 to vector<8x64xf32>
    %25 = arith.addf %24, %23 : vector<8x64xf32>
    %26 = arith.divf %24, %25 : vector<8x64xf32>
    %27 = vector.extract_strided_slice %26 {offsets = [0, 0], sizes = [8, 32], strides = [1, 1]} : vector<8x64xf32> to vector<8x32xf32>
    %28 = vector.extract_strided_slice %26 {offsets = [0, 32], sizes = [8, 32], strides = [1, 1]} : vector<8x64xf32> to vector<8x32xf32>
    %29 = arith.mulf %27, %20 : vector<8x32xf32>
    %30 = arith.addf %10, %29 : vector<8x32xf32>
    %31 = math.tanh %30 : vector<8x32xf32>
    %32 = arith.subf %8, %31 : vector<8x32xf32>
    %33 = arith.mulf %28, %32 : vector<8x32xf32>
    %34 = arith.addf %31, %33 : vector<8x32xf32>
    %c8 = arith.constant 8 : index
    %c0_23 = arith.constant 0 : index
    %35 = vector.load %arg25[%c8, %c0_23] : memref<64x96xf32, #tpu.memory_space<vmem>>, vector<8x64xf32>
    %c8_24 = arith.constant 8 : index
    %c64_25 = arith.constant 64 : index
    %36 = vector.load %arg25[%c8_24, %c64_25] : memref<64x96xf32, #tpu.memory_space<vmem>>, vector<8x32xf32>
    %c0_26 = arith.constant 0 : index
    %c0_27 = arith.constant 0 : index
    %37 = vector.load %arg4[%c0_26, %c0_27] : memref<32x64xf32, #tpu.memory_space<vmem>>, vector<32x64xf32>
    %cst_28 = arith.constant dense<0.000000e+00> : vector<8x64xf32>
    %38 = tpu.matmul %34, %37, %cst_28 {dimension_numbers = #tpu.dot_dimension_numbers<[1], [0], [0], [1], [0, 0, 1, 1], [], []>} : vector<8x32xf32>, vector<32x64xf32>, vector<8x64xf32> -> vector<8x64xf32>
    %c0_29 = arith.constant 0 : index
    %c0_30 = arith.constant 0 : index
    %39 = vector.load %arg6[%c0_29, %c0_30] : memref<1x64xf32, #tpu.memory_space<vmem>>, vector<1x64xf32>
    %40 = vector.broadcast %39 : vector<1x64xf32> to vector<8x64xf32>
    %41 = arith.addf %38, %40 : vector<8x64xf32>
    %c0_31 = arith.constant 0 : index
    %c0_32 = arith.constant 0 : index
    %42 = vector.load %arg5[%c0_31, %c0_32] : memref<32x32xf32, #tpu.memory_space<vmem>>, vector<32x32xf32>
    %cst_33 = arith.constant dense<0.000000e+00> : vector<8x32xf32>
    %43 = tpu.matmul %34, %42, %cst_33 {dimension_numbers = #tpu.dot_dimension_numbers<[1], [0], [0], [1], [0, 0, 1, 1], [], []>} : vector<8x32xf32>, vector<32x32xf32>, vector<8x32xf32> -> vector<8x32xf32>
    %c0_34 = arith.constant 0 : index
    %c0_35 = arith.constant 0 : index
    %44 = vector.load %arg7[%c0_34, %c0_35] : memref<1x32xf32, #tpu.memory_space<vmem>>, vector<1x32xf32>
    %45 = vector.broadcast %44 : vector<1x32xf32> to vector<8x32xf32>
    %46 = arith.addf %43, %45 : vector<8x32xf32>
    %47 = arith.addf %35, %41 : vector<8x64xf32>
    %48 = arith.negf %47 : vector<8x64xf32>
    %49 = math.exp %48 : vector<8x64xf32>
    %cst_36 = arith.constant 1.000000e+00 : f32
    %50 = vector.broadcast %cst_36 : f32 to vector<8x64xf32>
    %51 = arith.addf %50, %49 : vector<8x64xf32>
    %52 = arith.divf %50, %51 : vector<8x64xf32>
    %53 = vector.extract_strided_slice %52 {offsets = [0, 0], sizes = [8, 32], strides = [1, 1]} : vector<8x64xf32> to vector<8x32xf32>
    %54 = vector.extract_strided_slice %52 {offsets = [0, 32], sizes = [8, 32], strides = [1, 1]} : vector<8x64xf32> to vector<8x32xf32>
    %55 = arith.mulf %53, %46 : vector<8x32xf32>
    %56 = arith.addf %36, %55 : vector<8x32xf32>
    %57 = math.tanh %56 : vector<8x32xf32>
    %58 = arith.subf %34, %57 : vector<8x32xf32>
    %59 = arith.mulf %54, %58 : vector<8x32xf32>
    %60 = arith.addf %57, %59 : vector<8x32xf32>
    %c16 = arith.constant 16 : index
    %c0_37 = arith.constant 0 : index
    %61 = vector.load %arg25[%c16, %c0_37] : memref<64x96xf32, #tpu.memory_space<vmem>>, vector<8x64xf32>
    %c16_38 = arith.constant 16 : index
    %c64_39 = arith.constant 64 : index
    %62 = vector.load %arg25[%c16_38, %c64_39] : memref<64x96xf32, #tpu.memory_space<vmem>>, vector<8x32xf32>
    %c0_40 = arith.constant 0 : index
    %c0_41 = arith.constant 0 : index
    %63 = vector.load %arg4[%c0_40, %c0_41] : memref<32x64xf32, #tpu.memory_space<vmem>>, vector<32x64xf32>
    %cst_42 = arith.constant dense<0.000000e+00> : vector<8x64xf32>
    %64 = tpu.matmul %60, %63, %cst_42 {dimension_numbers = #tpu.dot_dimension_numbers<[1], [0], [0], [1], [0, 0, 1, 1], [], []>} : vector<8x32xf32>, vector<32x64xf32>, vector<8x64xf32> -> vector<8x64xf32>
    %c0_43 = arith.constant 0 : index
    %c0_44 = arith.constant 0 : index
    %65 = vector.load %arg6[%c0_43, %c0_44] : memref<1x64xf32, #tpu.memory_space<vmem>>, vector<1x64xf32>
    %66 = vector.broadcast %65 : vector<1x64xf32> to vector<8x64xf32>
    %67 = arith.addf %64, %66 : vector<8x64xf32>
    %c0_45 = arith.constant 0 : index
    %c0_46 = arith.constant 0 : index
    %68 = vector.load %arg5[%c0_45, %c0_46] : memref<32x32xf32, #tpu.memory_space<vmem>>, vector<32x32xf32>
    %cst_47 = arith.constant dense<0.000000e+00> : vector<8x32xf32>
    %69 = tpu.matmul %60, %68, %cst_47 {dimension_numbers = #tpu.dot_dimension_numbers<[1], [0], [0], [1], [0, 0, 1, 1], [], []>} : vector<8x32xf32>, vector<32x32xf32>, vector<8x32xf32> -> vector<8x32xf32>
    %c0_48 = arith.constant 0 : index
    %c0_49 = arith.constant 0 : index
    %70 = vector.load %arg7[%c0_48, %c0_49] : memref<1x32xf32, #tpu.memory_space<vmem>>, vector<1x32xf32>
    %71 = vector.broadcast %70 : vector<1x32xf32> to vector<8x32xf32>
    %72 = arith.addf %69, %71 : vector<8x32xf32>
    %73 = arith.addf %61, %67 : vector<8x64xf32>
    %74 = arith.negf %73 : vector<8x64xf32>
    %75 = math.exp %74 : vector<8x64xf32>
    %cst_50 = arith.constant 1.000000e+00 : f32
    %76 = vector.broadcast %cst_50 : f32 to vector<8x64xf32>
    %77 = arith.addf %76, %75 : vector<8x64xf32>
    %78 = arith.divf %76, %77 : vector<8x64xf32>
    %79 = vector.extract_strided_slice %78 {offsets = [0, 0], sizes = [8, 32], strides = [1, 1]} : vector<8x64xf32> to vector<8x32xf32>
    %80 = vector.extract_strided_slice %78 {offsets = [0, 32], sizes = [8, 32], strides = [1, 1]} : vector<8x64xf32> to vector<8x32xf32>
    %81 = arith.mulf %79, %72 : vector<8x32xf32>
    %82 = arith.addf %62, %81 : vector<8x32xf32>
    %83 = math.tanh %82 : vector<8x32xf32>
    %84 = arith.subf %60, %83 : vector<8x32xf32>
    %85 = arith.mulf %80, %84 : vector<8x32xf32>
    %86 = arith.addf %83, %85 : vector<8x32xf32>
    %c24 = arith.constant 24 : index
    %c0_51 = arith.constant 0 : index
    %87 = vector.load %arg25[%c24, %c0_51] : memref<64x96xf32, #tpu.memory_space<vmem>>, vector<8x64xf32>
    %c24_52 = arith.constant 24 : index
    %c64_53 = arith.constant 64 : index
    %88 = vector.load %arg25[%c24_52, %c64_53] : memref<64x96xf32, #tpu.memory_space<vmem>>, vector<8x32xf32>
    %c0_54 = arith.constant 0 : index
    %c0_55 = arith.constant 0 : index
    %89 = vector.load %arg4[%c0_54, %c0_55] : memref<32x64xf32, #tpu.memory_space<vmem>>, vector<32x64xf32>
    %cst_56 = arith.constant dense<0.000000e+00> : vector<8x64xf32>
    %90 = tpu.matmul %86, %89, %cst_56 {dimension_numbers = #tpu.dot_dimension_numbers<[1], [0], [0], [1], [0, 0, 1, 1], [], []>} : vector<8x32xf32>, vector<32x64xf32>, vector<8x64xf32> -> vector<8x64xf32>
    %c0_57 = arith.constant 0 : index
    %c0_58 = arith.constant 0 : index
    %91 = vector.load %arg6[%c0_57, %c0_58] : memref<1x64xf32, #tpu.memory_space<vmem>>, vector<1x64xf32>
    %92 = vector.broadcast %91 : vector<1x64xf32> to vector<8x64xf32>
    %93 = arith.addf %90, %92 : vector<8x64xf32>
    %c0_59 = arith.constant 0 : index
    %c0_60 = arith.constant 0 : index
    %94 = vector.load %arg5[%c0_59, %c0_60] : memref<32x32xf32, #tpu.memory_space<vmem>>, vector<32x32xf32>
    %cst_61 = arith.constant dense<0.000000e+00> : vector<8x32xf32>
    %95 = tpu.matmul %86, %94, %cst_61 {dimension_numbers = #tpu.dot_dimension_numbers<[1], [0], [0], [1], [0, 0, 1, 1], [], []>} : vector<8x32xf32>, vector<32x32xf32>, vector<8x32xf32> -> vector<8x32xf32>
    %c0_62 = arith.constant 0 : index
    %c0_63 = arith.constant 0 : index
    %96 = vector.load %arg7[%c0_62, %c0_63] : memref<1x32xf32, #tpu.memory_space<vmem>>, vector<1x32xf32>
    %97 = vector.broadcast %96 : vector<1x32xf32> to vector<8x32xf32>
    %98 = arith.addf %95, %97 : vector<8x32xf32>
    %99 = arith.addf %87, %93 : vector<8x64xf32>
    %100 = arith.negf %99 : vector<8x64xf32>
    %101 = math.exp %100 : vector<8x64xf32>
    %cst_64 = arith.constant 1.000000e+00 : f32
    %102 = vector.broadcast %cst_64 : f32 to vector<8x64xf32>
    %103 = arith.addf %102, %101 : vector<8x64xf32>
    %104 = arith.divf %102, %103 : vector<8x64xf32>
    %105 = vector.extract_strided_slice %104 {offsets = [0, 0], sizes = [8, 32], strides = [1, 1]} : vector<8x64xf32> to vector<8x32xf32>
    %106 = vector.extract_strided_slice %104 {offsets = [0, 32], sizes = [8, 32], strides = [1, 1]} : vector<8x64xf32> to vector<8x32xf32>
    %107 = arith.mulf %105, %98 : vector<8x32xf32>
    %108 = arith.addf %88, %107 : vector<8x32xf32>
    %109 = math.tanh %108 : vector<8x32xf32>
    %110 = arith.subf %86, %109 : vector<8x32xf32>
    %111 = arith.mulf %106, %110 : vector<8x32xf32>
    %112 = arith.addf %109, %111 : vector<8x32xf32>
    %c32 = arith.constant 32 : index
    %c0_65 = arith.constant 0 : index
    %113 = vector.load %arg25[%c32, %c0_65] : memref<64x96xf32, #tpu.memory_space<vmem>>, vector<8x64xf32>
    %c32_66 = arith.constant 32 : index
    %c64_67 = arith.constant 64 : index
    %114 = vector.load %arg25[%c32_66, %c64_67] : memref<64x96xf32, #tpu.memory_space<vmem>>, vector<8x32xf32>
    %c0_68 = arith.constant 0 : index
    %c0_69 = arith.constant 0 : index
    %115 = vector.load %arg4[%c0_68, %c0_69] : memref<32x64xf32, #tpu.memory_space<vmem>>, vector<32x64xf32>
    %cst_70 = arith.constant dense<0.000000e+00> : vector<8x64xf32>
    %116 = tpu.matmul %112, %115, %cst_70 {dimension_numbers = #tpu.dot_dimension_numbers<[1], [0], [0], [1], [0, 0, 1, 1], [], []>} : vector<8x32xf32>, vector<32x64xf32>, vector<8x64xf32> -> vector<8x64xf32>
    %c0_71 = arith.constant 0 : index
    %c0_72 = arith.constant 0 : index
    %117 = vector.load %arg6[%c0_71, %c0_72] : memref<1x64xf32, #tpu.memory_space<vmem>>, vector<1x64xf32>
    %118 = vector.broadcast %117 : vector<1x64xf32> to vector<8x64xf32>
    %119 = arith.addf %116, %118 : vector<8x64xf32>
    %c0_73 = arith.constant 0 : index
    %c0_74 = arith.constant 0 : index
    %120 = vector.load %arg5[%c0_73, %c0_74] : memref<32x32xf32, #tpu.memory_space<vmem>>, vector<32x32xf32>
    %cst_75 = arith.constant dense<0.000000e+00> : vector<8x32xf32>
    %121 = tpu.matmul %112, %120, %cst_75 {dimension_numbers = #tpu.dot_dimension_numbers<[1], [0], [0], [1], [0, 0, 1, 1], [], []>} : vector<8x32xf32>, vector<32x32xf32>, vector<8x32xf32> -> vector<8x32xf32>
    %c0_76 = arith.constant 0 : index
    %c0_77 = arith.constant 0 : index
    %122 = vector.load %arg7[%c0_76, %c0_77] : memref<1x32xf32, #tpu.memory_space<vmem>>, vector<1x32xf32>
    %123 = vector.broadcast %122 : vector<1x32xf32> to vector<8x32xf32>
    %124 = arith.addf %121, %123 : vector<8x32xf32>
    %125 = arith.addf %113, %119 : vector<8x64xf32>
    %126 = arith.negf %125 : vector<8x64xf32>
    %127 = math.exp %126 : vector<8x64xf32>
    %cst_78 = arith.constant 1.000000e+00 : f32
    %128 = vector.broadcast %cst_78 : f32 to vector<8x64xf32>
    %129 = arith.addf %128, %127 : vector<8x64xf32>
    %130 = arith.divf %128, %129 : vector<8x64xf32>
    %131 = vector.extract_strided_slice %130 {offsets = [0, 0], sizes = [8, 32], strides = [1, 1]} : vector<8x64xf32> to vector<8x32xf32>
    %132 = vector.extract_strided_slice %130 {offsets = [0, 32], sizes = [8, 32], strides = [1, 1]} : vector<8x64xf32> to vector<8x32xf32>
    %133 = arith.mulf %131, %124 : vector<8x32xf32>
    %134 = arith.addf %114, %133 : vector<8x32xf32>
    %135 = math.tanh %134 : vector<8x32xf32>
    %136 = arith.subf %112, %135 : vector<8x32xf32>
    %137 = arith.mulf %132, %136 : vector<8x32xf32>
    %138 = arith.addf %135, %137 : vector<8x32xf32>
    %c40 = arith.constant 40 : index
    %c0_79 = arith.constant 0 : index
    %139 = vector.load %arg25[%c40, %c0_79] : memref<64x96xf32, #tpu.memory_space<vmem>>, vector<8x64xf32>
    %c40_80 = arith.constant 40 : index
    %c64_81 = arith.constant 64 : index
    %140 = vector.load %arg25[%c40_80, %c64_81] : memref<64x96xf32, #tpu.memory_space<vmem>>, vector<8x32xf32>
    %c0_82 = arith.constant 0 : index
    %c0_83 = arith.constant 0 : index
    %141 = vector.load %arg4[%c0_82, %c0_83] : memref<32x64xf32, #tpu.memory_space<vmem>>, vector<32x64xf32>
    %cst_84 = arith.constant dense<0.000000e+00> : vector<8x64xf32>
    %142 = tpu.matmul %138, %141, %cst_84 {dimension_numbers = #tpu.dot_dimension_numbers<[1], [0], [0], [1], [0, 0, 1, 1], [], []>} : vector<8x32xf32>, vector<32x64xf32>, vector<8x64xf32> -> vector<8x64xf32>
    %c0_85 = arith.constant 0 : index
    %c0_86 = arith.constant 0 : index
    %143 = vector.load %arg6[%c0_85, %c0_86] : memref<1x64xf32, #tpu.memory_space<vmem>>, vector<1x64xf32>
    %144 = vector.broadcast %143 : vector<1x64xf32> to vector<8x64xf32>
    %145 = arith.addf %142, %144 : vector<8x64xf32>
    %c0_87 = arith.constant 0 : index
    %c0_88 = arith.constant 0 : index
    %146 = vector.load %arg5[%c0_87, %c0_88] : memref<32x32xf32, #tpu.memory_space<vmem>>, vector<32x32xf32>
    %cst_89 = arith.constant dense<0.000000e+00> : vector<8x32xf32>
    %147 = tpu.matmul %138, %146, %cst_89 {dimension_numbers = #tpu.dot_dimension_numbers<[1], [0], [0], [1], [0, 0, 1, 1], [], []>} : vector<8x32xf32>, vector<32x32xf32>, vector<8x32xf32> -> vector<8x32xf32>
    %c0_90 = arith.constant 0 : index
    %c0_91 = arith.constant 0 : index
    %148 = vector.load %arg7[%c0_90, %c0_91] : memref<1x32xf32, #tpu.memory_space<vmem>>, vector<1x32xf32>
    %149 = vector.broadcast %148 : vector<1x32xf32> to vector<8x32xf32>
    %150 = arith.addf %147, %149 : vector<8x32xf32>
    %151 = arith.addf %139, %145 : vector<8x64xf32>
    %152 = arith.negf %151 : vector<8x64xf32>
    %153 = math.exp %152 : vector<8x64xf32>
    %cst_92 = arith.constant 1.000000e+00 : f32
    %154 = vector.broadcast %cst_92 : f32 to vector<8x64xf32>
    %155 = arith.addf %154, %153 : vector<8x64xf32>
    %156 = arith.divf %154, %155 : vector<8x64xf32>
    %157 = vector.extract_strided_slice %156 {offsets = [0, 0], sizes = [8, 32], strides = [1, 1]} : vector<8x64xf32> to vector<8x32xf32>
    %158 = vector.extract_strided_slice %156 {offsets = [0, 32], sizes = [8, 32], strides = [1, 1]} : vector<8x64xf32> to vector<8x32xf32>
    %159 = arith.mulf %157, %150 : vector<8x32xf32>
    %160 = arith.addf %140, %159 : vector<8x32xf32>
    %161 = math.tanh %160 : vector<8x32xf32>
    %162 = arith.subf %138, %161 : vector<8x32xf32>
    %163 = arith.mulf %158, %162 : vector<8x32xf32>
    %164 = arith.addf %161, %163 : vector<8x32xf32>
    %c48 = arith.constant 48 : index
    %c0_93 = arith.constant 0 : index
    %165 = vector.load %arg25[%c48, %c0_93] : memref<64x96xf32, #tpu.memory_space<vmem>>, vector<8x64xf32>
    %c48_94 = arith.constant 48 : index
    %c64_95 = arith.constant 64 : index
    %166 = vector.load %arg25[%c48_94, %c64_95] : memref<64x96xf32, #tpu.memory_space<vmem>>, vector<8x32xf32>
    %c0_96 = arith.constant 0 : index
    %c0_97 = arith.constant 0 : index
    %167 = vector.load %arg4[%c0_96, %c0_97] : memref<32x64xf32, #tpu.memory_space<vmem>>, vector<32x64xf32>
    %cst_98 = arith.constant dense<0.000000e+00> : vector<8x64xf32>
    %168 = tpu.matmul %164, %167, %cst_98 {dimension_numbers = #tpu.dot_dimension_numbers<[1], [0], [0], [1], [0, 0, 1, 1], [], []>} : vector<8x32xf32>, vector<32x64xf32>, vector<8x64xf32> -> vector<8x64xf32>
    %c0_99 = arith.constant 0 : index
    %c0_100 = arith.constant 0 : index
    %169 = vector.load %arg6[%c0_99, %c0_100] : memref<1x64xf32, #tpu.memory_space<vmem>>, vector<1x64xf32>
    %170 = vector.broadcast %169 : vector<1x64xf32> to vector<8x64xf32>
    %171 = arith.addf %168, %170 : vector<8x64xf32>
    %c0_101 = arith.constant 0 : index
    %c0_102 = arith.constant 0 : index
    %172 = vector.load %arg5[%c0_101, %c0_102] : memref<32x32xf32, #tpu.memory_space<vmem>>, vector<32x32xf32>
    %cst_103 = arith.constant dense<0.000000e+00> : vector<8x32xf32>
    %173 = tpu.matmul %164, %172, %cst_103 {dimension_numbers = #tpu.dot_dimension_numbers<[1], [0], [0], [1], [0, 0, 1, 1], [], []>} : vector<8x32xf32>, vector<32x32xf32>, vector<8x32xf32> -> vector<8x32xf32>
    %c0_104 = arith.constant 0 : index
    %c0_105 = arith.constant 0 : index
    %174 = vector.load %arg7[%c0_104, %c0_105] : memref<1x32xf32, #tpu.memory_space<vmem>>, vector<1x32xf32>
    %175 = vector.broadcast %174 : vector<1x32xf32> to vector<8x32xf32>
    %176 = arith.addf %173, %175 : vector<8x32xf32>
    %177 = arith.addf %165, %171 : vector<8x64xf32>
    %178 = arith.negf %177 : vector<8x64xf32>
    %179 = math.exp %178 : vector<8x64xf32>
    %cst_106 = arith.constant 1.000000e+00 : f32
    %180 = vector.broadcast %cst_106 : f32 to vector<8x64xf32>
    %181 = arith.addf %180, %179 : vector<8x64xf32>
    %182 = arith.divf %180, %181 : vector<8x64xf32>
    %183 = vector.extract_strided_slice %182 {offsets = [0, 0], sizes = [8, 32], strides = [1, 1]} : vector<8x64xf32> to vector<8x32xf32>
    %184 = vector.extract_strided_slice %182 {offsets = [0, 32], sizes = [8, 32], strides = [1, 1]} : vector<8x64xf32> to vector<8x32xf32>
    %185 = arith.mulf %183, %176 : vector<8x32xf32>
    %186 = arith.addf %166, %185 : vector<8x32xf32>
    %187 = math.tanh %186 : vector<8x32xf32>
    %188 = arith.subf %164, %187 : vector<8x32xf32>
    %189 = arith.mulf %184, %188 : vector<8x32xf32>
    %190 = arith.addf %187, %189 : vector<8x32xf32>
    %c56 = arith.constant 56 : index
    %c0_107 = arith.constant 0 : index
    %191 = vector.load %arg25[%c56, %c0_107] : memref<64x96xf32, #tpu.memory_space<vmem>>, vector<8x64xf32>
    %c56_108 = arith.constant 56 : index
    %c64_109 = arith.constant 64 : index
    %192 = vector.load %arg25[%c56_108, %c64_109] : memref<64x96xf32, #tpu.memory_space<vmem>>, vector<8x32xf32>
    %c0_110 = arith.constant 0 : index
    %c0_111 = arith.constant 0 : index
    %193 = vector.load %arg4[%c0_110, %c0_111] : memref<32x64xf32, #tpu.memory_space<vmem>>, vector<32x64xf32>
    %cst_112 = arith.constant dense<0.000000e+00> : vector<8x64xf32>
    %194 = tpu.matmul %190, %193, %cst_112 {dimension_numbers = #tpu.dot_dimension_numbers<[1], [0], [0], [1], [0, 0, 1, 1], [], []>} : vector<8x32xf32>, vector<32x64xf32>, vector<8x64xf32> -> vector<8x64xf32>
    %c0_113 = arith.constant 0 : index
    %c0_114 = arith.constant 0 : index
    %195 = vector.load %arg6[%c0_113, %c0_114] : memref<1x64xf32, #tpu.memory_space<vmem>>, vector<1x64xf32>
    %196 = vector.broadcast %195 : vector<1x64xf32> to vector<8x64xf32>
    %197 = arith.addf %194, %196 : vector<8x64xf32>
    %c0_115 = arith.constant 0 : index
    %c0_116 = arith.constant 0 : index
    %198 = vector.load %arg5[%c0_115, %c0_116] : memref<32x32xf32, #tpu.memory_space<vmem>>, vector<32x32xf32>
    %cst_117 = arith.constant dense<0.000000e+00> : vector<8x32xf32>
    %199 = tpu.matmul %190, %198, %cst_117 {dimension_numbers = #tpu.dot_dimension_numbers<[1], [0], [0], [1], [0, 0, 1, 1], [], []>} : vector<8x32xf32>, vector<32x32xf32>, vector<8x32xf32> -> vector<8x32xf32>
    %c0_118 = arith.constant 0 : index
    %c0_119 = arith.constant 0 : index
    %200 = vector.load %arg7[%c0_118, %c0_119] : memref<1x32xf32, #tpu.memory_space<vmem>>, vector<1x32xf32>
    %201 = vector.broadcast %200 : vector<1x32xf32> to vector<8x32xf32>
    %202 = arith.addf %199, %201 : vector<8x32xf32>
    %203 = arith.addf %191, %197 : vector<8x64xf32>
    %204 = arith.negf %203 : vector<8x64xf32>
    %205 = math.exp %204 : vector<8x64xf32>
    %cst_120 = arith.constant 1.000000e+00 : f32
    %206 = vector.broadcast %cst_120 : f32 to vector<8x64xf32>
    %207 = arith.addf %206, %205 : vector<8x64xf32>
    %208 = arith.divf %206, %207 : vector<8x64xf32>
    %209 = vector.extract_strided_slice %208 {offsets = [0, 0], sizes = [8, 32], strides = [1, 1]} : vector<8x64xf32> to vector<8x32xf32>
    %210 = vector.extract_strided_slice %208 {offsets = [0, 32], sizes = [8, 32], strides = [1, 1]} : vector<8x64xf32> to vector<8x32xf32>
    %211 = arith.mulf %209, %202 : vector<8x32xf32>
    %212 = arith.addf %192, %211 : vector<8x32xf32>
    %213 = math.tanh %212 : vector<8x32xf32>
    %214 = arith.subf %190, %213 : vector<8x32xf32>
    %215 = arith.mulf %210, %214 : vector<8x32xf32>
    %216 = arith.addf %213, %215 : vector<8x32xf32>
    %c0_121 = arith.constant 0 : index
    %c0_122 = arith.constant 0 : index
    %217 = vector.load %arg8[%c0_121, %c0_122] : memref<32x16xf32, #tpu.memory_space<vmem>>, vector<32x16xf32>
    %cst_123 = arith.constant dense<0.000000e+00> : vector<8x16xf32>
    %218 = tpu.matmul %216, %217, %cst_123 {dimension_numbers = #tpu.dot_dimension_numbers<[1], [0], [0], [1], [0, 0, 1, 1], [], []>} : vector<8x32xf32>, vector<32x16xf32>, vector<8x16xf32> -> vector<8x16xf32>
    %c0_124 = arith.constant 0 : index
    %c0_125 = arith.constant 0 : index
    %219 = vector.load %arg9[%c0_124, %c0_125] : memref<1x16xf32, #tpu.memory_space<vmem>>, vector<1x16xf32>
    %220 = vector.broadcast %219 : vector<1x16xf32> to vector<8x16xf32>
    %221 = arith.addf %218, %220 : vector<8x16xf32>
    %222 = vector.extract_strided_slice %1 {offsets = [56, 0], sizes = [8, 16], strides = [1, 1]} : vector<64x16xf32> to vector<8x16xf32>
    %c56_126 = arith.constant 56 : index
    %c0_127 = arith.constant 0 : index
    %223 = vector.load %arg25[%c56_126, %c0_127] : memref<64x96xf32, #tpu.memory_space<vmem>>, vector<8x64xf32>
    %c56_128 = arith.constant 56 : index
    %c64_129 = arith.constant 64 : index
    %224 = vector.load %arg25[%c56_128, %c64_129] : memref<64x96xf32, #tpu.memory_space<vmem>>, vector<8x32xf32>
    %225 = vector.extract_strided_slice %1 {offsets = [40, 0], sizes = [8, 16], strides = [1, 1]} : vector<64x16xf32> to vector<8x16xf32>
    %226 = vector.extract_strided_slice %1 {offsets = [48, 0], sizes = [8, 16], strides = [1, 1]} : vector<64x16xf32> to vector<8x16xf32>
    %227 = vector.extract_strided_slice %1 {offsets = [56, 0], sizes = [8, 16], strides = [1, 1]} : vector<64x16xf32> to vector<8x16xf32>
    %228 = tpu.concatenate %221, %225, %226, %227 in 1 : vector<8x16xf32>, vector<8x16xf32>, vector<8x16xf32>, vector<8x16xf32> -> vector<8x64xf32>
    %229 = tpu.concatenate %228, %221 in 1 : vector<8x64xf32>, vector<8x16xf32> -> vector<8x80xf32>
    %c0_130 = arith.constant 0 : index
    %c0_131 = arith.constant 0 : index
    %230 = vector.load %arg10[%c0_130, %c0_131] : memref<64x80xf32, #tpu.memory_space<vmem>>, vector<64x80xf32>
    %cst_132 = arith.constant dense<0.000000e+00> : vector<8x80xf32>
    %231 = tpu.matmul %228, %230, %cst_132 {dimension_numbers = #tpu.dot_dimension_numbers<[1], [0], [0], [1], [0, 0, 1, 1], [], []>} : vector<8x64xf32>, vector<64x80xf32>, vector<8x80xf32> -> vector<8x80xf32>
    %c0_133 = arith.constant 0 : index
    %c0_134 = arith.constant 0 : index
    %232 = vector.load %arg11[%c0_133, %c0_134] : memref<32x80xf32, #tpu.memory_space<vmem>>, vector<32x80xf32>
    %cst_135 = arith.constant dense<0.000000e+00> : vector<8x80xf32>
    %233 = tpu.matmul %216, %232, %cst_135 {dimension_numbers = #tpu.dot_dimension_numbers<[1], [0], [0], [1], [0, 0, 1, 1], [], []>} : vector<8x32xf32>, vector<32x80xf32>, vector<8x80xf32> -> vector<8x80xf32>
    %234 = arith.addf %231, %233 : vector<8x80xf32>
    %c0_136 = arith.constant 0 : index
    %c0_137 = arith.constant 0 : index
    %235 = vector.load %arg12[%c0_136, %c0_137] : memref<1x80xf32, #tpu.memory_space<vmem>>, vector<1x80xf32>
    %236 = vector.broadcast %235 : vector<1x80xf32> to vector<8x80xf32>
    %237 = arith.addf %234, %236 : vector<8x80xf32>
    %238 = arith.mulf %237, %237 : vector<8x80xf32>
    %c0_138 = arith.constant 0 : index
    %c0_139 = arith.constant 0 : index
    %239 = vector.load %arg15[%c0_138, %c0_139] : memref<80x80xf32, #tpu.memory_space<vmem>>, vector<80x80xf32>
    %cst_140 = arith.constant dense<0.000000e+00> : vector<8x80xf32>
    %240 = tpu.matmul %238, %239, %cst_140 {dimension_numbers = #tpu.dot_dimension_numbers<[1], [0], [0], [1], [0, 0, 1, 1], [], []>} : vector<8x80xf32>, vector<80x80xf32>, vector<8x80xf32> -> vector<8x80xf32>
    %cst_141 = arith.constant 9.99999974E-6 : f32
    %241 = vector.broadcast %cst_141 : f32 to vector<8x80xf32>
    %242 = arith.addf %240, %241 : vector<8x80xf32>
    %243 = math.rsqrt %242 : vector<8x80xf32>
    %244 = arith.mulf %237, %243 : vector<8x80xf32>
    %c0_142 = arith.constant 0 : index
    %c0_143 = arith.constant 0 : index
    %c0_144 = arith.constant 0 : index
    %245 = vector.load %arg16[%c0_142, %c0_143, %c0_144] : memref<2x1x80xf32, #tpu.memory_space<vmem>>, vector<1x1x80xf32>
    %246 = vector.shape_cast %245 : vector<1x1x80xf32> to vector<1x80xf32>
    %247 = vector.broadcast %246 : vector<1x80xf32> to vector<8x80xf32>
    %248 = arith.mulf %244, %247 : vector<8x80xf32>
    %c0_145 = arith.constant 0 : index
    %c0_146 = arith.constant 0 : index
    %c0_147 = arith.constant 0 : index
    %249 = vector.load %arg17[%c0_145, %c0_146, %c0_147] : memref<2x1x80xf32, #tpu.memory_space<vmem>>, vector<1x1x80xf32>
    %250 = vector.shape_cast %249 : vector<1x1x80xf32> to vector<1x80xf32>
    %251 = vector.broadcast %250 : vector<1x80xf32> to vector<8x80xf32>
    %252 = arith.addf %248, %251 : vector<8x80xf32>
    %253 = arith.addf %229, %252 : vector<8x80xf32>
    %c0_148 = arith.constant 0 : index
    %c0_149 = arith.constant 0 : index
    %254 = vector.load %arg13[%c0_148, %c0_149] : memref<80x80xf32, #tpu.memory_space<vmem>>, vector<80x80xf32>
    %cst_150 = arith.constant dense<0.000000e+00> : vector<8x80xf32>
    %255 = tpu.matmul %253, %254, %cst_150 {dimension_numbers = #tpu.dot_dimension_numbers<[1], [0], [0], [1], [0, 0, 1, 1], [], []>} : vector<8x80xf32>, vector<80x80xf32>, vector<8x80xf32> -> vector<8x80xf32>
    %c0_151 = arith.constant 0 : index
    %c0_152 = arith.constant 0 : index
    %256 = vector.load %arg14[%c0_151, %c0_152] : memref<1x80xf32, #tpu.memory_space<vmem>>, vector<1x80xf32>
    %257 = vector.broadcast %256 : vector<1x80xf32> to vector<8x80xf32>
    %258 = arith.addf %255, %257 : vector<8x80xf32>
    %259 = arith.mulf %258, %258 : vector<8x80xf32>
    %c0_153 = arith.constant 0 : index
    %c0_154 = arith.constant 0 : index
    %260 = vector.load %arg15[%c0_153, %c0_154] : memref<80x80xf32, #tpu.memory_space<vmem>>, vector<80x80xf32>
    %cst_155 = arith.constant dense<0.000000e+00> : vector<8x80xf32>
    %261 = tpu.matmul %259, %260, %cst_155 {dimension_numbers = #tpu.dot_dimension_numbers<[1], [0], [0], [1], [0, 0, 1, 1], [], []>} : vector<8x80xf32>, vector<80x80xf32>, vector<8x80xf32> -> vector<8x80xf32>
    %cst_156 = arith.constant 9.99999974E-6 : f32
    %262 = vector.broadcast %cst_156 : f32 to vector<8x80xf32>
    %263 = arith.addf %261, %262 : vector<8x80xf32>
    %264 = math.rsqrt %263 : vector<8x80xf32>
    %265 = arith.mulf %258, %264 : vector<8x80xf32>
    %c1 = arith.constant 1 : index
    %c0_157 = arith.constant 0 : index
    %c0_158 = arith.constant 0 : index
    %266 = vector.load %arg16[%c1, %c0_157, %c0_158] : memref<2x1x80xf32, #tpu.memory_space<vmem>>, vector<1x1x80xf32>
    %267 = vector.shape_cast %266 : vector<1x1x80xf32> to vector<1x80xf32>
    %268 = vector.broadcast %267 : vector<1x80xf32> to vector<8x80xf32>
    %269 = arith.mulf %265, %268 : vector<8x80xf32>
    %c1_159 = arith.constant 1 : index
    %c0_160 = arith.constant 0 : index
    %c0_161 = arith.constant 0 : index
    %270 = vector.load %arg17[%c1_159, %c0_160, %c0_161] : memref<2x1x80xf32, #tpu.memory_space<vmem>>, vector<1x1x80xf32>
    %271 = vector.shape_cast %270 : vector<1x1x80xf32> to vector<1x80xf32>
    %272 = vector.broadcast %271 : vector<1x80xf32> to vector<8x80xf32>
    %273 = arith.addf %269, %272 : vector<8x80xf32>
    %274 = arith.addf %253, %273 : vector<8x80xf32>
    %c0_162 = arith.constant 0 : index
    %c0_163 = arith.constant 0 : index
    %275 = vector.load %arg18[%c0_162, %c0_163] : memref<80x16xf32, #tpu.memory_space<vmem>>, vector<80x16xf32>
    %cst_164 = arith.constant dense<0.000000e+00> : vector<8x16xf32>
    %276 = tpu.matmul %274, %275, %cst_164 {dimension_numbers = #tpu.dot_dimension_numbers<[1], [0], [0], [1], [0, 0, 1, 1], [], []>} : vector<8x80xf32>, vector<80x16xf32>, vector<8x16xf32> -> vector<8x16xf32>
    %c0_165 = arith.constant 0 : index
    %c0_166 = arith.constant 0 : index
    %277 = vector.load %arg19[%c0_165, %c0_166] : memref<1x16xf32, #tpu.memory_space<vmem>>, vector<1x16xf32>
    %278 = vector.broadcast %277 : vector<1x16xf32> to vector<8x16xf32>
    %279 = arith.addf %276, %278 : vector<8x16xf32>
    %280 = arith.addf %279, %222 : vector<8x16xf32>
    %c0_167 = arith.constant 0 : index
    %c0_168 = arith.constant 0 : index
    %281 = vector.load %arg20[%c0_167, %c0_168] : memref<80x64xf32, #tpu.memory_space<vmem>>, vector<80x64xf32>
    %cst_169 = arith.constant dense<0.000000e+00> : vector<8x64xf32>
    %282 = tpu.matmul %274, %281, %cst_169 {dimension_numbers = #tpu.dot_dimension_numbers<[1], [0], [0], [1], [0, 0, 1, 1], [], []>} : vector<8x80xf32>, vector<80x64xf32>, vector<8x64xf32> -> vector<8x64xf32>
    %c0_170 = arith.constant 0 : index
    %c0_171 = arith.constant 0 : index
    %283 = vector.load %arg22[%c0_170, %c0_171] : memref<1x64xf32, #tpu.memory_space<vmem>>, vector<1x64xf32>
    %284 = vector.broadcast %283 : vector<1x64xf32> to vector<8x64xf32>
    %285 = arith.addf %282, %284 : vector<8x64xf32>
    %286 = arith.addf %223, %285 : vector<8x64xf32>
    %c0_172 = arith.constant 0 : index
    %c0_173 = arith.constant 0 : index
    %287 = vector.load %arg21[%c0_172, %c0_173] : memref<80x32xf32, #tpu.memory_space<vmem>>, vector<80x32xf32>
    %cst_174 = arith.constant dense<0.000000e+00> : vector<8x32xf32>
    %288 = tpu.matmul %274, %287, %cst_174 {dimension_numbers = #tpu.dot_dimension_numbers<[1], [0], [0], [1], [0, 0, 1, 1], [], []>} : vector<8x80xf32>, vector<80x32xf32>, vector<8x32xf32> -> vector<8x32xf32>
    %c0_175 = arith.constant 0 : index
    %c0_176 = arith.constant 0 : index
    %289 = vector.load %arg23[%c0_175, %c0_176] : memref<1x32xf32, #tpu.memory_space<vmem>>, vector<1x32xf32>
    %290 = vector.broadcast %289 : vector<1x32xf32> to vector<8x32xf32>
    %291 = arith.addf %288, %290 : vector<8x32xf32>
    %292 = arith.addf %224, %291 : vector<8x32xf32>
    %c0_177 = arith.constant 0 : index
    %c0_178 = arith.constant 0 : index
    %293 = vector.load %arg4[%c0_177, %c0_178] : memref<32x64xf32, #tpu.memory_space<vmem>>, vector<32x64xf32>
    %cst_179 = arith.constant dense<0.000000e+00> : vector<8x64xf32>
    %294 = tpu.matmul %216, %293, %cst_179 {dimension_numbers = #tpu.dot_dimension_numbers<[1], [0], [0], [1], [0, 0, 1, 1], [], []>} : vector<8x32xf32>, vector<32x64xf32>, vector<8x64xf32> -> vector<8x64xf32>
    %c0_180 = arith.constant 0 : index
    %c0_181 = arith.constant 0 : index
    %295 = vector.load %arg6[%c0_180, %c0_181] : memref<1x64xf32, #tpu.memory_space<vmem>>, vector<1x64xf32>
    %296 = vector.broadcast %295 : vector<1x64xf32> to vector<8x64xf32>
    %297 = arith.addf %294, %296 : vector<8x64xf32>
    %c0_182 = arith.constant 0 : index
    %c0_183 = arith.constant 0 : index
    %298 = vector.load %arg5[%c0_182, %c0_183] : memref<32x32xf32, #tpu.memory_space<vmem>>, vector<32x32xf32>
    %cst_184 = arith.constant dense<0.000000e+00> : vector<8x32xf32>
    %299 = tpu.matmul %216, %298, %cst_184 {dimension_numbers = #tpu.dot_dimension_numbers<[1], [0], [0], [1], [0, 0, 1, 1], [], []>} : vector<8x32xf32>, vector<32x32xf32>, vector<8x32xf32> -> vector<8x32xf32>
    %c0_185 = arith.constant 0 : index
    %c0_186 = arith.constant 0 : index
    %300 = vector.load %arg7[%c0_185, %c0_186] : memref<1x32xf32, #tpu.memory_space<vmem>>, vector<1x32xf32>
    %301 = vector.broadcast %300 : vector<1x32xf32> to vector<8x32xf32>
    %302 = arith.addf %299, %301 : vector<8x32xf32>
    %303 = arith.addf %286, %297 : vector<8x64xf32>
    %304 = arith.negf %303 : vector<8x64xf32>
    %305 = math.exp %304 : vector<8x64xf32>
    %cst_187 = arith.constant 1.000000e+00 : f32
    %306 = vector.broadcast %cst_187 : f32 to vector<8x64xf32>
    %307 = arith.addf %306, %305 : vector<8x64xf32>
    %308 = arith.divf %306, %307 : vector<8x64xf32>
    %309 = vector.extract_strided_slice %308 {offsets = [0, 0], sizes = [8, 32], strides = [1, 1]} : vector<8x64xf32> to vector<8x32xf32>
    %310 = vector.extract_strided_slice %308 {offsets = [0, 32], sizes = [8, 32], strides = [1, 1]} : vector<8x64xf32> to vector<8x32xf32>
    %311 = arith.mulf %309, %302 : vector<8x32xf32>
    %312 = arith.addf %292, %311 : vector<8x32xf32>
    %313 = math.tanh %312 : vector<8x32xf32>
    %314 = arith.subf %216, %313 : vector<8x32xf32>
    %315 = arith.mulf %310, %314 : vector<8x32xf32>
    %316 = arith.addf %313, %315 : vector<8x32xf32>
    %c0_188 = arith.constant 0 : index
    %c0_189 = arith.constant 0 : index
    %317 = vector.load %arg8[%c0_188, %c0_189] : memref<32x16xf32, #tpu.memory_space<vmem>>, vector<32x16xf32>
    %cst_190 = arith.constant dense<0.000000e+00> : vector<8x16xf32>
    %318 = tpu.matmul %316, %317, %cst_190 {dimension_numbers = #tpu.dot_dimension_numbers<[1], [0], [0], [1], [0, 0, 1, 1], [], []>} : vector<8x32xf32>, vector<32x16xf32>, vector<8x16xf32> -> vector<8x16xf32>
    %c0_191 = arith.constant 0 : index
    %c0_192 = arith.constant 0 : index
    %319 = vector.load %arg9[%c0_191, %c0_192] : memref<1x16xf32, #tpu.memory_space<vmem>>, vector<1x16xf32>
    %320 = vector.broadcast %319 : vector<1x16xf32> to vector<8x16xf32>
    %321 = arith.addf %318, %320 : vector<8x16xf32>
    %322 = vector.extract_strided_slice %1 {offsets = [48, 0], sizes = [8, 16], strides = [1, 1]} : vector<64x16xf32> to vector<8x16xf32>
    %323 = vector.extract_strided_slice %1 {offsets = [56, 0], sizes = [8, 16], strides = [1, 1]} : vector<64x16xf32> to vector<8x16xf32>
    %324 = tpu.concatenate %221, %322, %323, %280 in 1 : vector<8x16xf32>, vector<8x16xf32>, vector<8x16xf32>, vector<8x16xf32> -> vector<8x64xf32>
    %325 = tpu.concatenate %324, %321 in 1 : vector<8x64xf32>, vector<8x16xf32> -> vector<8x80xf32>
    %c0_193 = arith.constant 0 : index
    %c0_194 = arith.constant 0 : index
    %326 = vector.load %arg10[%c0_193, %c0_194] : memref<64x80xf32, #tpu.memory_space<vmem>>, vector<64x80xf32>
    %cst_195 = arith.constant dense<0.000000e+00> : vector<8x80xf32>
    %327 = tpu.matmul %324, %326, %cst_195 {dimension_numbers = #tpu.dot_dimension_numbers<[1], [0], [0], [1], [0, 0, 1, 1], [], []>} : vector<8x64xf32>, vector<64x80xf32>, vector<8x80xf32> -> vector<8x80xf32>
    %c0_196 = arith.constant 0 : index
    %c0_197 = arith.constant 0 : index
    %328 = vector.load %arg11[%c0_196, %c0_197] : memref<32x80xf32, #tpu.memory_space<vmem>>, vector<32x80xf32>
    %cst_198 = arith.constant dense<0.000000e+00> : vector<8x80xf32>
    %329 = tpu.matmul %316, %328, %cst_198 {dimension_numbers = #tpu.dot_dimension_numbers<[1], [0], [0], [1], [0, 0, 1, 1], [], []>} : vector<8x32xf32>, vector<32x80xf32>, vector<8x80xf32> -> vector<8x80xf32>
    %330 = arith.addf %327, %329 : vector<8x80xf32>
    %c0_199 = arith.constant 0 : index
    %c0_200 = arith.constant 0 : index
    %331 = vector.load %arg12[%c0_199, %c0_200] : memref<1x80xf32, #tpu.memory_space<vmem>>, vector<1x80xf32>
    %332 = vector.broadcast %331 : vector<1x80xf32> to vector<8x80xf32>
    %333 = arith.addf %330, %332 : vector<8x80xf32>
    %334 = arith.mulf %333, %333 : vector<8x80xf32>
    %c0_201 = arith.constant 0 : index
    %c0_202 = arith.constant 0 : index
    %335 = vector.load %arg15[%c0_201, %c0_202] : memref<80x80xf32, #tpu.memory_space<vmem>>, vector<80x80xf32>
    %cst_203 = arith.constant dense<0.000000e+00> : vector<8x80xf32>
    %336 = tpu.matmul %334, %335, %cst_203 {dimension_numbers = #tpu.dot_dimension_numbers<[1], [0], [0], [1], [0, 0, 1, 1], [], []>} : vector<8x80xf32>, vector<80x80xf32>, vector<8x80xf32> -> vector<8x80xf32>
    %cst_204 = arith.constant 9.99999974E-6 : f32
    %337 = vector.broadcast %cst_204 : f32 to vector<8x80xf32>
    %338 = arith.addf %336, %337 : vector<8x80xf32>
    %339 = math.rsqrt %338 : vector<8x80xf32>
    %340 = arith.mulf %333, %339 : vector<8x80xf32>
    %c0_205 = arith.constant 0 : index
    %c0_206 = arith.constant 0 : index
    %c0_207 = arith.constant 0 : index
    %341 = vector.load %arg16[%c0_205, %c0_206, %c0_207] : memref<2x1x80xf32, #tpu.memory_space<vmem>>, vector<1x1x80xf32>
    %342 = vector.shape_cast %341 : vector<1x1x80xf32> to vector<1x80xf32>
    %343 = vector.broadcast %342 : vector<1x80xf32> to vector<8x80xf32>
    %344 = arith.mulf %340, %343 : vector<8x80xf32>
    %c0_208 = arith.constant 0 : index
    %c0_209 = arith.constant 0 : index
    %c0_210 = arith.constant 0 : index
    %345 = vector.load %arg17[%c0_208, %c0_209, %c0_210] : memref<2x1x80xf32, #tpu.memory_space<vmem>>, vector<1x1x80xf32>
    %346 = vector.shape_cast %345 : vector<1x1x80xf32> to vector<1x80xf32>
    %347 = vector.broadcast %346 : vector<1x80xf32> to vector<8x80xf32>
    %348 = arith.addf %344, %347 : vector<8x80xf32>
    %349 = arith.addf %325, %348 : vector<8x80xf32>
    %c0_211 = arith.constant 0 : index
    %c0_212 = arith.constant 0 : index
    %350 = vector.load %arg13[%c0_211, %c0_212] : memref<80x80xf32, #tpu.memory_space<vmem>>, vector<80x80xf32>
    %cst_213 = arith.constant dense<0.000000e+00> : vector<8x80xf32>
    %351 = tpu.matmul %349, %350, %cst_213 {dimension_numbers = #tpu.dot_dimension_numbers<[1], [0], [0], [1], [0, 0, 1, 1], [], []>} : vector<8x80xf32>, vector<80x80xf32>, vector<8x80xf32> -> vector<8x80xf32>
    %c0_214 = arith.constant 0 : index
    %c0_215 = arith.constant 0 : index
    %352 = vector.load %arg14[%c0_214, %c0_215] : memref<1x80xf32, #tpu.memory_space<vmem>>, vector<1x80xf32>
    %353 = vector.broadcast %352 : vector<1x80xf32> to vector<8x80xf32>
    %354 = arith.addf %351, %353 : vector<8x80xf32>
    %355 = arith.mulf %354, %354 : vector<8x80xf32>
    %c0_216 = arith.constant 0 : index
    %c0_217 = arith.constant 0 : index
    %356 = vector.load %arg15[%c0_216, %c0_217] : memref<80x80xf32, #tpu.memory_space<vmem>>, vector<80x80xf32>
    %cst_218 = arith.constant dense<0.000000e+00> : vector<8x80xf32>
    %357 = tpu.matmul %355, %356, %cst_218 {dimension_numbers = #tpu.dot_dimension_numbers<[1], [0], [0], [1], [0, 0, 1, 1], [], []>} : vector<8x80xf32>, vector<80x80xf32>, vector<8x80xf32> -> vector<8x80xf32>
    %cst_219 = arith.constant 9.99999974E-6 : f32
    %358 = vector.broadcast %cst_219 : f32 to vector<8x80xf32>
    %359 = arith.addf %357, %358 : vector<8x80xf32>
    %360 = math.rsqrt %359 : vector<8x80xf32>
    %361 = arith.mulf %354, %360 : vector<8x80xf32>
    %c1_220 = arith.constant 1 : index
    %c0_221 = arith.constant 0 : index
    %c0_222 = arith.constant 0 : index
    %362 = vector.load %arg16[%c1_220, %c0_221, %c0_222] : memref<2x1x80xf32, #tpu.memory_space<vmem>>, vector<1x1x80xf32>
    %363 = vector.shape_cast %362 : vector<1x1x80xf32> to vector<1x80xf32>
    %364 = vector.broadcast %363 : vector<1x80xf32> to vector<8x80xf32>
    %365 = arith.mulf %361, %364 : vector<8x80xf32>
    %c1_223 = arith.constant 1 : index
    %c0_224 = arith.constant 0 : index
    %c0_225 = arith.constant 0 : index
    %366 = vector.load %arg17[%c1_223, %c0_224, %c0_225] : memref<2x1x80xf32, #tpu.memory_space<vmem>>, vector<1x1x80xf32>
    %367 = vector.shape_cast %366 : vector<1x1x80xf32> to vector<1x80xf32>
    %368 = vector.broadcast %367 : vector<1x80xf32> to vector<8x80xf32>
    %369 = arith.addf %365, %368 : vector<8x80xf32>
    %370 = arith.addf %349, %369 : vector<8x80xf32>
    %c0_226 = arith.constant 0 : index
    %c0_227 = arith.constant 0 : index
    %371 = vector.load %arg18[%c0_226, %c0_227] : memref<80x16xf32, #tpu.memory_space<vmem>>, vector<80x16xf32>
    %cst_228 = arith.constant dense<0.000000e+00> : vector<8x16xf32>
    %372 = tpu.matmul %370, %371, %cst_228 {dimension_numbers = #tpu.dot_dimension_numbers<[1], [0], [0], [1], [0, 0, 1, 1], [], []>} : vector<8x80xf32>, vector<80x16xf32>, vector<8x16xf32> -> vector<8x16xf32>
    %c0_229 = arith.constant 0 : index
    %c0_230 = arith.constant 0 : index
    %373 = vector.load %arg19[%c0_229, %c0_230] : memref<1x16xf32, #tpu.memory_space<vmem>>, vector<1x16xf32>
    %374 = vector.broadcast %373 : vector<1x16xf32> to vector<8x16xf32>
    %375 = arith.addf %372, %374 : vector<8x16xf32>
    %376 = arith.addf %375, %280 : vector<8x16xf32>
    %c0_231 = arith.constant 0 : index
    %c0_232 = arith.constant 0 : index
    %377 = vector.load %arg20[%c0_231, %c0_232] : memref<80x64xf32, #tpu.memory_space<vmem>>, vector<80x64xf32>
    %cst_233 = arith.constant dense<0.000000e+00> : vector<8x64xf32>
    %378 = tpu.matmul %370, %377, %cst_233 {dimension_numbers = #tpu.dot_dimension_numbers<[1], [0], [0], [1], [0, 0, 1, 1], [], []>} : vector<8x80xf32>, vector<80x64xf32>, vector<8x64xf32> -> vector<8x64xf32>
    %c0_234 = arith.constant 0 : index
    %c0_235 = arith.constant 0 : index
    %379 = vector.load %arg22[%c0_234, %c0_235] : memref<1x64xf32, #tpu.memory_space<vmem>>, vector<1x64xf32>
    %380 = vector.broadcast %379 : vector<1x64xf32> to vector<8x64xf32>
    %381 = arith.addf %378, %380 : vector<8x64xf32>
    %382 = arith.addf %286, %381 : vector<8x64xf32>
    %c0_236 = arith.constant 0 : index
    %c0_237 = arith.constant 0 : index
    %383 = vector.load %arg21[%c0_236, %c0_237] : memref<80x32xf32, #tpu.memory_space<vmem>>, vector<80x32xf32>
    %cst_238 = arith.constant dense<0.000000e+00> : vector<8x32xf32>
    %384 = tpu.matmul %370, %383, %cst_238 {dimension_numbers = #tpu.dot_dimension_numbers<[1], [0], [0], [1], [0, 0, 1, 1], [], []>} : vector<8x80xf32>, vector<80x32xf32>, vector<8x32xf32> -> vector<8x32xf32>
    %c0_239 = arith.constant 0 : index
    %c0_240 = arith.constant 0 : index
    %385 = vector.load %arg23[%c0_239, %c0_240] : memref<1x32xf32, #tpu.memory_space<vmem>>, vector<1x32xf32>
    %386 = vector.broadcast %385 : vector<1x32xf32> to vector<8x32xf32>
    %387 = arith.addf %384, %386 : vector<8x32xf32>
    %388 = arith.addf %292, %387 : vector<8x32xf32>
    %c0_241 = arith.constant 0 : index
    %c0_242 = arith.constant 0 : index
    %389 = vector.load %arg4[%c0_241, %c0_242] : memref<32x64xf32, #tpu.memory_space<vmem>>, vector<32x64xf32>
    %cst_243 = arith.constant dense<0.000000e+00> : vector<8x64xf32>
    %390 = tpu.matmul %316, %389, %cst_243 {dimension_numbers = #tpu.dot_dimension_numbers<[1], [0], [0], [1], [0, 0, 1, 1], [], []>} : vector<8x32xf32>, vector<32x64xf32>, vector<8x64xf32> -> vector<8x64xf32>
    %c0_244 = arith.constant 0 : index
    %c0_245 = arith.constant 0 : index
    %391 = vector.load %arg6[%c0_244, %c0_245] : memref<1x64xf32, #tpu.memory_space<vmem>>, vector<1x64xf32>
    %392 = vector.broadcast %391 : vector<1x64xf32> to vector<8x64xf32>
    %393 = arith.addf %390, %392 : vector<8x64xf32>
    %c0_246 = arith.constant 0 : index
    %c0_247 = arith.constant 0 : index
    %394 = vector.load %arg5[%c0_246, %c0_247] : memref<32x32xf32, #tpu.memory_space<vmem>>, vector<32x32xf32>
    %cst_248 = arith.constant dense<0.000000e+00> : vector<8x32xf32>
    %395 = tpu.matmul %316, %394, %cst_248 {dimension_numbers = #tpu.dot_dimension_numbers<[1], [0], [0], [1], [0, 0, 1, 1], [], []>} : vector<8x32xf32>, vector<32x32xf32>, vector<8x32xf32> -> vector<8x32xf32>
    %c0_249 = arith.constant 0 : index
    %c0_250 = arith.constant 0 : index
    %396 = vector.load %arg7[%c0_249, %c0_250] : memref<1x32xf32, #tpu.memory_space<vmem>>, vector<1x32xf32>
    %397 = vector.broadcast %396 : vector<1x32xf32> to vector<8x32xf32>
    %398 = arith.addf %395, %397 : vector<8x32xf32>
    %399 = arith.addf %382, %393 : vector<8x64xf32>
    %400 = arith.negf %399 : vector<8x64xf32>
    %401 = math.exp %400 : vector<8x64xf32>
    %cst_251 = arith.constant 1.000000e+00 : f32
    %402 = vector.broadcast %cst_251 : f32 to vector<8x64xf32>
    %403 = arith.addf %402, %401 : vector<8x64xf32>
    %404 = arith.divf %402, %403 : vector<8x64xf32>
    %405 = vector.extract_strided_slice %404 {offsets = [0, 0], sizes = [8, 32], strides = [1, 1]} : vector<8x64xf32> to vector<8x32xf32>
    %406 = vector.extract_strided_slice %404 {offsets = [0, 32], sizes = [8, 32], strides = [1, 1]} : vector<8x64xf32> to vector<8x32xf32>
    %407 = arith.mulf %405, %398 : vector<8x32xf32>
    %408 = arith.addf %388, %407 : vector<8x32xf32>
    %409 = math.tanh %408 : vector<8x32xf32>
    %410 = arith.subf %316, %409 : vector<8x32xf32>
    %411 = arith.mulf %406, %410 : vector<8x32xf32>
    %412 = arith.addf %409, %411 : vector<8x32xf32>
    %c0_252 = arith.constant 0 : index
    %c0_253 = arith.constant 0 : index
    %413 = vector.load %arg8[%c0_252, %c0_253] : memref<32x16xf32, #tpu.memory_space<vmem>>, vector<32x16xf32>
    %cst_254 = arith.constant dense<0.000000e+00> : vector<8x16xf32>
    %414 = tpu.matmul %412, %413, %cst_254 {dimension_numbers = #tpu.dot_dimension_numbers<[1], [0], [0], [1], [0, 0, 1, 1], [], []>} : vector<8x32xf32>, vector<32x16xf32>, vector<8x16xf32> -> vector<8x16xf32>
    %c0_255 = arith.constant 0 : index
    %c0_256 = arith.constant 0 : index
    %415 = vector.load %arg9[%c0_255, %c0_256] : memref<1x16xf32, #tpu.memory_space<vmem>>, vector<1x16xf32>
    %416 = vector.broadcast %415 : vector<1x16xf32> to vector<8x16xf32>
    %417 = arith.addf %414, %416 : vector<8x16xf32>
    %418 = vector.extract_strided_slice %1 {offsets = [56, 0], sizes = [8, 16], strides = [1, 1]} : vector<64x16xf32> to vector<8x16xf32>
    %419 = tpu.concatenate %221, %418, %280, %376 in 1 : vector<8x16xf32>, vector<8x16xf32>, vector<8x16xf32>, vector<8x16xf32> -> vector<8x64xf32>
    %420 = tpu.concatenate %419, %417 in 1 : vector<8x64xf32>, vector<8x16xf32> -> vector<8x80xf32>
    %c0_257 = arith.constant 0 : index
    %c0_258 = arith.constant 0 : index
    %421 = vector.load %arg10[%c0_257, %c0_258] : memref<64x80xf32, #tpu.memory_space<vmem>>, vector<64x80xf32>
    %cst_259 = arith.constant dense<0.000000e+00> : vector<8x80xf32>
    %422 = tpu.matmul %419, %421, %cst_259 {dimension_numbers = #tpu.dot_dimension_numbers<[1], [0], [0], [1], [0, 0, 1, 1], [], []>} : vector<8x64xf32>, vector<64x80xf32>, vector<8x80xf32> -> vector<8x80xf32>
    %c0_260 = arith.constant 0 : index
    %c0_261 = arith.constant 0 : index
    %423 = vector.load %arg11[%c0_260, %c0_261] : memref<32x80xf32, #tpu.memory_space<vmem>>, vector<32x80xf32>
    %cst_262 = arith.constant dense<0.000000e+00> : vector<8x80xf32>
    %424 = tpu.matmul %412, %423, %cst_262 {dimension_numbers = #tpu.dot_dimension_numbers<[1], [0], [0], [1], [0, 0, 1, 1], [], []>} : vector<8x32xf32>, vector<32x80xf32>, vector<8x80xf32> -> vector<8x80xf32>
    %425 = arith.addf %422, %424 : vector<8x80xf32>
    %c0_263 = arith.constant 0 : index
    %c0_264 = arith.constant 0 : index
    %426 = vector.load %arg12[%c0_263, %c0_264] : memref<1x80xf32, #tpu.memory_space<vmem>>, vector<1x80xf32>
    %427 = vector.broadcast %426 : vector<1x80xf32> to vector<8x80xf32>
    %428 = arith.addf %425, %427 : vector<8x80xf32>
    %429 = arith.mulf %428, %428 : vector<8x80xf32>
    %c0_265 = arith.constant 0 : index
    %c0_266 = arith.constant 0 : index
    %430 = vector.load %arg15[%c0_265, %c0_266] : memref<80x80xf32, #tpu.memory_space<vmem>>, vector<80x80xf32>
    %cst_267 = arith.constant dense<0.000000e+00> : vector<8x80xf32>
    %431 = tpu.matmul %429, %430, %cst_267 {dimension_numbers = #tpu.dot_dimension_numbers<[1], [0], [0], [1], [0, 0, 1, 1], [], []>} : vector<8x80xf32>, vector<80x80xf32>, vector<8x80xf32> -> vector<8x80xf32>
    %cst_268 = arith.constant 9.99999974E-6 : f32
    %432 = vector.broadcast %cst_268 : f32 to vector<8x80xf32>
    %433 = arith.addf %431, %432 : vector<8x80xf32>
    %434 = math.rsqrt %433 : vector<8x80xf32>
    %435 = arith.mulf %428, %434 : vector<8x80xf32>
    %c0_269 = arith.constant 0 : index
    %c0_270 = arith.constant 0 : index
    %c0_271 = arith.constant 0 : index
    %436 = vector.load %arg16[%c0_269, %c0_270, %c0_271] : memref<2x1x80xf32, #tpu.memory_space<vmem>>, vector<1x1x80xf32>
    %437 = vector.shape_cast %436 : vector<1x1x80xf32> to vector<1x80xf32>
    %438 = vector.broadcast %437 : vector<1x80xf32> to vector<8x80xf32>
    %439 = arith.mulf %435, %438 : vector<8x80xf32>
    %c0_272 = arith.constant 0 : index
    %c0_273 = arith.constant 0 : index
    %c0_274 = arith.constant 0 : index
    %440 = vector.load %arg17[%c0_272, %c0_273, %c0_274] : memref<2x1x80xf32, #tpu.memory_space<vmem>>, vector<1x1x80xf32>
    %441 = vector.shape_cast %440 : vector<1x1x80xf32> to vector<1x80xf32>
    %442 = vector.broadcast %441 : vector<1x80xf32> to vector<8x80xf32>
    %443 = arith.addf %439, %442 : vector<8x80xf32>
    %444 = arith.addf %420, %443 : vector<8x80xf32>
    %c0_275 = arith.constant 0 : index
    %c0_276 = arith.constant 0 : index
    %445 = vector.load %arg13[%c0_275, %c0_276] : memref<80x80xf32, #tpu.memory_space<vmem>>, vector<80x80xf32>
    %cst_277 = arith.constant dense<0.000000e+00> : vector<8x80xf32>
    %446 = tpu.matmul %444, %445, %cst_277 {dimension_numbers = #tpu.dot_dimension_numbers<[1], [0], [0], [1], [0, 0, 1, 1], [], []>} : vector<8x80xf32>, vector<80x80xf32>, vector<8x80xf32> -> vector<8x80xf32>
    %c0_278 = arith.constant 0 : index
    %c0_279 = arith.constant 0 : index
    %447 = vector.load %arg14[%c0_278, %c0_279] : memref<1x80xf32, #tpu.memory_space<vmem>>, vector<1x80xf32>
    %448 = vector.broadcast %447 : vector<1x80xf32> to vector<8x80xf32>
    %449 = arith.addf %446, %448 : vector<8x80xf32>
    %450 = arith.mulf %449, %449 : vector<8x80xf32>
    %c0_280 = arith.constant 0 : index
    %c0_281 = arith.constant 0 : index
    %451 = vector.load %arg15[%c0_280, %c0_281] : memref<80x80xf32, #tpu.memory_space<vmem>>, vector<80x80xf32>
    %cst_282 = arith.constant dense<0.000000e+00> : vector<8x80xf32>
    %452 = tpu.matmul %450, %451, %cst_282 {dimension_numbers = #tpu.dot_dimension_numbers<[1], [0], [0], [1], [0, 0, 1, 1], [], []>} : vector<8x80xf32>, vector<80x80xf32>, vector<8x80xf32> -> vector<8x80xf32>
    %cst_283 = arith.constant 9.99999974E-6 : f32
    %453 = vector.broadcast %cst_283 : f32 to vector<8x80xf32>
    %454 = arith.addf %452, %453 : vector<8x80xf32>
    %455 = math.rsqrt %454 : vector<8x80xf32>
    %456 = arith.mulf %449, %455 : vector<8x80xf32>
    %c1_284 = arith.constant 1 : index
    %c0_285 = arith.constant 0 : index
    %c0_286 = arith.constant 0 : index
    %457 = vector.load %arg16[%c1_284, %c0_285, %c0_286] : memref<2x1x80xf32, #tpu.memory_space<vmem>>, vector<1x1x80xf32>
    %458 = vector.shape_cast %457 : vector<1x1x80xf32> to vector<1x80xf32>
    %459 = vector.broadcast %458 : vector<1x80xf32> to vector<8x80xf32>
    %460 = arith.mulf %456, %459 : vector<8x80xf32>
    %c1_287 = arith.constant 1 : index
    %c0_288 = arith.constant 0 : index
    %c0_289 = arith.constant 0 : index
    %461 = vector.load %arg17[%c1_287, %c0_288, %c0_289] : memref<2x1x80xf32, #tpu.memory_space<vmem>>, vector<1x1x80xf32>
    %462 = vector.shape_cast %461 : vector<1x1x80xf32> to vector<1x80xf32>
    %463 = vector.broadcast %462 : vector<1x80xf32> to vector<8x80xf32>
    %464 = arith.addf %460, %463 : vector<8x80xf32>
    %465 = arith.addf %444, %464 : vector<8x80xf32>
    %c0_290 = arith.constant 0 : index
    %c0_291 = arith.constant 0 : index
    %466 = vector.load %arg18[%c0_290, %c0_291] : memref<80x16xf32, #tpu.memory_space<vmem>>, vector<80x16xf32>
    %cst_292 = arith.constant dense<0.000000e+00> : vector<8x16xf32>
    %467 = tpu.matmul %465, %466, %cst_292 {dimension_numbers = #tpu.dot_dimension_numbers<[1], [0], [0], [1], [0, 0, 1, 1], [], []>} : vector<8x80xf32>, vector<80x16xf32>, vector<8x16xf32> -> vector<8x16xf32>
    %c0_293 = arith.constant 0 : index
    %c0_294 = arith.constant 0 : index
    %468 = vector.load %arg19[%c0_293, %c0_294] : memref<1x16xf32, #tpu.memory_space<vmem>>, vector<1x16xf32>
    %469 = vector.broadcast %468 : vector<1x16xf32> to vector<8x16xf32>
    %470 = arith.addf %467, %469 : vector<8x16xf32>
    %471 = arith.addf %470, %376 : vector<8x16xf32>
    %c0_295 = arith.constant 0 : index
    %c0_296 = arith.constant 0 : index
    %472 = vector.load %arg20[%c0_295, %c0_296] : memref<80x64xf32, #tpu.memory_space<vmem>>, vector<80x64xf32>
    %cst_297 = arith.constant dense<0.000000e+00> : vector<8x64xf32>
    %473 = tpu.matmul %465, %472, %cst_297 {dimension_numbers = #tpu.dot_dimension_numbers<[1], [0], [0], [1], [0, 0, 1, 1], [], []>} : vector<8x80xf32>, vector<80x64xf32>, vector<8x64xf32> -> vector<8x64xf32>
    %c0_298 = arith.constant 0 : index
    %c0_299 = arith.constant 0 : index
    %474 = vector.load %arg22[%c0_298, %c0_299] : memref<1x64xf32, #tpu.memory_space<vmem>>, vector<1x64xf32>
    %475 = vector.broadcast %474 : vector<1x64xf32> to vector<8x64xf32>
    %476 = arith.addf %473, %475 : vector<8x64xf32>
    %477 = arith.addf %382, %476 : vector<8x64xf32>
    %c0_300 = arith.constant 0 : index
    %c0_301 = arith.constant 0 : index
    %478 = vector.load %arg21[%c0_300, %c0_301] : memref<80x32xf32, #tpu.memory_space<vmem>>, vector<80x32xf32>
    %cst_302 = arith.constant dense<0.000000e+00> : vector<8x32xf32>
    %479 = tpu.matmul %465, %478, %cst_302 {dimension_numbers = #tpu.dot_dimension_numbers<[1], [0], [0], [1], [0, 0, 1, 1], [], []>} : vector<8x80xf32>, vector<80x32xf32>, vector<8x32xf32> -> vector<8x32xf32>
    %c0_303 = arith.constant 0 : index
    %c0_304 = arith.constant 0 : index
    %480 = vector.load %arg23[%c0_303, %c0_304] : memref<1x32xf32, #tpu.memory_space<vmem>>, vector<1x32xf32>
    %481 = vector.broadcast %480 : vector<1x32xf32> to vector<8x32xf32>
    %482 = arith.addf %479, %481 : vector<8x32xf32>
    %483 = arith.addf %388, %482 : vector<8x32xf32>
    %c0_305 = arith.constant 0 : index
    %c0_306 = arith.constant 0 : index
    %484 = vector.load %arg4[%c0_305, %c0_306] : memref<32x64xf32, #tpu.memory_space<vmem>>, vector<32x64xf32>
    %cst_307 = arith.constant dense<0.000000e+00> : vector<8x64xf32>
    %485 = tpu.matmul %412, %484, %cst_307 {dimension_numbers = #tpu.dot_dimension_numbers<[1], [0], [0], [1], [0, 0, 1, 1], [], []>} : vector<8x32xf32>, vector<32x64xf32>, vector<8x64xf32> -> vector<8x64xf32>
    %c0_308 = arith.constant 0 : index
    %c0_309 = arith.constant 0 : index
    %486 = vector.load %arg6[%c0_308, %c0_309] : memref<1x64xf32, #tpu.memory_space<vmem>>, vector<1x64xf32>
    %487 = vector.broadcast %486 : vector<1x64xf32> to vector<8x64xf32>
    %488 = arith.addf %485, %487 : vector<8x64xf32>
    %c0_310 = arith.constant 0 : index
    %c0_311 = arith.constant 0 : index
    %489 = vector.load %arg5[%c0_310, %c0_311] : memref<32x32xf32, #tpu.memory_space<vmem>>, vector<32x32xf32>
    %cst_312 = arith.constant dense<0.000000e+00> : vector<8x32xf32>
    %490 = tpu.matmul %412, %489, %cst_312 {dimension_numbers = #tpu.dot_dimension_numbers<[1], [0], [0], [1], [0, 0, 1, 1], [], []>} : vector<8x32xf32>, vector<32x32xf32>, vector<8x32xf32> -> vector<8x32xf32>
    %c0_313 = arith.constant 0 : index
    %c0_314 = arith.constant 0 : index
    %491 = vector.load %arg7[%c0_313, %c0_314] : memref<1x32xf32, #tpu.memory_space<vmem>>, vector<1x32xf32>
    %492 = vector.broadcast %491 : vector<1x32xf32> to vector<8x32xf32>
    %493 = arith.addf %490, %492 : vector<8x32xf32>
    %494 = arith.addf %477, %488 : vector<8x64xf32>
    %495 = arith.negf %494 : vector<8x64xf32>
    %496 = math.exp %495 : vector<8x64xf32>
    %cst_315 = arith.constant 1.000000e+00 : f32
    %497 = vector.broadcast %cst_315 : f32 to vector<8x64xf32>
    %498 = arith.addf %497, %496 : vector<8x64xf32>
    %499 = arith.divf %497, %498 : vector<8x64xf32>
    %500 = vector.extract_strided_slice %499 {offsets = [0, 0], sizes = [8, 32], strides = [1, 1]} : vector<8x64xf32> to vector<8x32xf32>
    %501 = vector.extract_strided_slice %499 {offsets = [0, 32], sizes = [8, 32], strides = [1, 1]} : vector<8x64xf32> to vector<8x32xf32>
    %502 = arith.mulf %500, %493 : vector<8x32xf32>
    %503 = arith.addf %483, %502 : vector<8x32xf32>
    %504 = math.tanh %503 : vector<8x32xf32>
    %505 = arith.subf %412, %504 : vector<8x32xf32>
    %506 = arith.mulf %501, %505 : vector<8x32xf32>
    %507 = arith.addf %504, %506 : vector<8x32xf32>
    %c0_316 = arith.constant 0 : index
    %c0_317 = arith.constant 0 : index
    %508 = vector.load %arg8[%c0_316, %c0_317] : memref<32x16xf32, #tpu.memory_space<vmem>>, vector<32x16xf32>
    %cst_318 = arith.constant dense<0.000000e+00> : vector<8x16xf32>
    %509 = tpu.matmul %507, %508, %cst_318 {dimension_numbers = #tpu.dot_dimension_numbers<[1], [0], [0], [1], [0, 0, 1, 1], [], []>} : vector<8x32xf32>, vector<32x16xf32>, vector<8x16xf32> -> vector<8x16xf32>
    %c0_319 = arith.constant 0 : index
    %c0_320 = arith.constant 0 : index
    %510 = vector.load %arg9[%c0_319, %c0_320] : memref<1x16xf32, #tpu.memory_space<vmem>>, vector<1x16xf32>
    %511 = vector.broadcast %510 : vector<1x16xf32> to vector<8x16xf32>
    %512 = arith.addf %509, %511 : vector<8x16xf32>
    %513 = tpu.concatenate %221, %280, %376, %471 in 1 : vector<8x16xf32>, vector<8x16xf32>, vector<8x16xf32>, vector<8x16xf32> -> vector<8x64xf32>
    %514 = tpu.concatenate %513, %512 in 1 : vector<8x64xf32>, vector<8x16xf32> -> vector<8x80xf32>
    %c0_321 = arith.constant 0 : index
    %c0_322 = arith.constant 0 : index
    %515 = vector.load %arg10[%c0_321, %c0_322] : memref<64x80xf32, #tpu.memory_space<vmem>>, vector<64x80xf32>
    %cst_323 = arith.constant dense<0.000000e+00> : vector<8x80xf32>
    %516 = tpu.matmul %513, %515, %cst_323 {dimension_numbers = #tpu.dot_dimension_numbers<[1], [0], [0], [1], [0, 0, 1, 1], [], []>} : vector<8x64xf32>, vector<64x80xf32>, vector<8x80xf32> -> vector<8x80xf32>
    %c0_324 = arith.constant 0 : index
    %c0_325 = arith.constant 0 : index
    %517 = vector.load %arg11[%c0_324, %c0_325] : memref<32x80xf32, #tpu.memory_space<vmem>>, vector<32x80xf32>
    %cst_326 = arith.constant dense<0.000000e+00> : vector<8x80xf32>
    %518 = tpu.matmul %507, %517, %cst_326 {dimension_numbers = #tpu.dot_dimension_numbers<[1], [0], [0], [1], [0, 0, 1, 1], [], []>} : vector<8x32xf32>, vector<32x80xf32>, vector<8x80xf32> -> vector<8x80xf32>
    %519 = arith.addf %516, %518 : vector<8x80xf32>
    %c0_327 = arith.constant 0 : index
    %c0_328 = arith.constant 0 : index
    %520 = vector.load %arg12[%c0_327, %c0_328] : memref<1x80xf32, #tpu.memory_space<vmem>>, vector<1x80xf32>
    %521 = vector.broadcast %520 : vector<1x80xf32> to vector<8x80xf32>
    %522 = arith.addf %519, %521 : vector<8x80xf32>
    %523 = arith.mulf %522, %522 : vector<8x80xf32>
    %c0_329 = arith.constant 0 : index
    %c0_330 = arith.constant 0 : index
    %524 = vector.load %arg15[%c0_329, %c0_330] : memref<80x80xf32, #tpu.memory_space<vmem>>, vector<80x80xf32>
    %cst_331 = arith.constant dense<0.000000e+00> : vector<8x80xf32>
    %525 = tpu.matmul %523, %524, %cst_331 {dimension_numbers = #tpu.dot_dimension_numbers<[1], [0], [0], [1], [0, 0, 1, 1], [], []>} : vector<8x80xf32>, vector<80x80xf32>, vector<8x80xf32> -> vector<8x80xf32>
    %cst_332 = arith.constant 9.99999974E-6 : f32
    %526 = vector.broadcast %cst_332 : f32 to vector<8x80xf32>
    %527 = arith.addf %525, %526 : vector<8x80xf32>
    %528 = math.rsqrt %527 : vector<8x80xf32>
    %529 = arith.mulf %522, %528 : vector<8x80xf32>
    %c0_333 = arith.constant 0 : index
    %c0_334 = arith.constant 0 : index
    %c0_335 = arith.constant 0 : index
    %530 = vector.load %arg16[%c0_333, %c0_334, %c0_335] : memref<2x1x80xf32, #tpu.memory_space<vmem>>, vector<1x1x80xf32>
    %531 = vector.shape_cast %530 : vector<1x1x80xf32> to vector<1x80xf32>
    %532 = vector.broadcast %531 : vector<1x80xf32> to vector<8x80xf32>
    %533 = arith.mulf %529, %532 : vector<8x80xf32>
    %c0_336 = arith.constant 0 : index
    %c0_337 = arith.constant 0 : index
    %c0_338 = arith.constant 0 : index
    %534 = vector.load %arg17[%c0_336, %c0_337, %c0_338] : memref<2x1x80xf32, #tpu.memory_space<vmem>>, vector<1x1x80xf32>
    %535 = vector.shape_cast %534 : vector<1x1x80xf32> to vector<1x80xf32>
    %536 = vector.broadcast %535 : vector<1x80xf32> to vector<8x80xf32>
    %537 = arith.addf %533, %536 : vector<8x80xf32>
    %538 = arith.addf %514, %537 : vector<8x80xf32>
    %c0_339 = arith.constant 0 : index
    %c0_340 = arith.constant 0 : index
    %539 = vector.load %arg13[%c0_339, %c0_340] : memref<80x80xf32, #tpu.memory_space<vmem>>, vector<80x80xf32>
    %cst_341 = arith.constant dense<0.000000e+00> : vector<8x80xf32>
    %540 = tpu.matmul %538, %539, %cst_341 {dimension_numbers = #tpu.dot_dimension_numbers<[1], [0], [0], [1], [0, 0, 1, 1], [], []>} : vector<8x80xf32>, vector<80x80xf32>, vector<8x80xf32> -> vector<8x80xf32>
    %c0_342 = arith.constant 0 : index
    %c0_343 = arith.constant 0 : index
    %541 = vector.load %arg14[%c0_342, %c0_343] : memref<1x80xf32, #tpu.memory_space<vmem>>, vector<1x80xf32>
    %542 = vector.broadcast %541 : vector<1x80xf32> to vector<8x80xf32>
    %543 = arith.addf %540, %542 : vector<8x80xf32>
    %544 = arith.mulf %543, %543 : vector<8x80xf32>
    %c0_344 = arith.constant 0 : index
    %c0_345 = arith.constant 0 : index
    %545 = vector.load %arg15[%c0_344, %c0_345] : memref<80x80xf32, #tpu.memory_space<vmem>>, vector<80x80xf32>
    %cst_346 = arith.constant dense<0.000000e+00> : vector<8x80xf32>
    %546 = tpu.matmul %544, %545, %cst_346 {dimension_numbers = #tpu.dot_dimension_numbers<[1], [0], [0], [1], [0, 0, 1, 1], [], []>} : vector<8x80xf32>, vector<80x80xf32>, vector<8x80xf32> -> vector<8x80xf32>
    %cst_347 = arith.constant 9.99999974E-6 : f32
    %547 = vector.broadcast %cst_347 : f32 to vector<8x80xf32>
    %548 = arith.addf %546, %547 : vector<8x80xf32>
    %549 = math.rsqrt %548 : vector<8x80xf32>
    %550 = arith.mulf %543, %549 : vector<8x80xf32>
    %c1_348 = arith.constant 1 : index
    %c0_349 = arith.constant 0 : index
    %c0_350 = arith.constant 0 : index
    %551 = vector.load %arg16[%c1_348, %c0_349, %c0_350] : memref<2x1x80xf32, #tpu.memory_space<vmem>>, vector<1x1x80xf32>
    %552 = vector.shape_cast %551 : vector<1x1x80xf32> to vector<1x80xf32>
    %553 = vector.broadcast %552 : vector<1x80xf32> to vector<8x80xf32>
    %554 = arith.mulf %550, %553 : vector<8x80xf32>
    %c1_351 = arith.constant 1 : index
    %c0_352 = arith.constant 0 : index
    %c0_353 = arith.constant 0 : index
    %555 = vector.load %arg17[%c1_351, %c0_352, %c0_353] : memref<2x1x80xf32, #tpu.memory_space<vmem>>, vector<1x1x80xf32>
    %556 = vector.shape_cast %555 : vector<1x1x80xf32> to vector<1x80xf32>
    %557 = vector.broadcast %556 : vector<1x80xf32> to vector<8x80xf32>
    %558 = arith.addf %554, %557 : vector<8x80xf32>
    %559 = arith.addf %538, %558 : vector<8x80xf32>
    %c0_354 = arith.constant 0 : index
    %c0_355 = arith.constant 0 : index
    %560 = vector.load %arg18[%c0_354, %c0_355] : memref<80x16xf32, #tpu.memory_space<vmem>>, vector<80x16xf32>
    %cst_356 = arith.constant dense<0.000000e+00> : vector<8x16xf32>
    %561 = tpu.matmul %559, %560, %cst_356 {dimension_numbers = #tpu.dot_dimension_numbers<[1], [0], [0], [1], [0, 0, 1, 1], [], []>} : vector<8x80xf32>, vector<80x16xf32>, vector<8x16xf32> -> vector<8x16xf32>
    %c0_357 = arith.constant 0 : index
    %c0_358 = arith.constant 0 : index
    %562 = vector.load %arg19[%c0_357, %c0_358] : memref<1x16xf32, #tpu.memory_space<vmem>>, vector<1x16xf32>
    %563 = vector.broadcast %562 : vector<1x16xf32> to vector<8x16xf32>
    %564 = arith.addf %561, %563 : vector<8x16xf32>
    %565 = arith.addf %564, %471 : vector<8x16xf32>
    %c0_359 = arith.constant 0 : index
    %c0_360 = arith.constant 0 : index
    %566 = vector.load %arg20[%c0_359, %c0_360] : memref<80x64xf32, #tpu.memory_space<vmem>>, vector<80x64xf32>
    %cst_361 = arith.constant dense<0.000000e+00> : vector<8x64xf32>
    %567 = tpu.matmul %559, %566, %cst_361 {dimension_numbers = #tpu.dot_dimension_numbers<[1], [0], [0], [1], [0, 0, 1, 1], [], []>} : vector<8x80xf32>, vector<80x64xf32>, vector<8x64xf32> -> vector<8x64xf32>
    %c0_362 = arith.constant 0 : index
    %c0_363 = arith.constant 0 : index
    %568 = vector.load %arg22[%c0_362, %c0_363] : memref<1x64xf32, #tpu.memory_space<vmem>>, vector<1x64xf32>
    %569 = vector.broadcast %568 : vector<1x64xf32> to vector<8x64xf32>
    %570 = arith.addf %567, %569 : vector<8x64xf32>
    %571 = arith.addf %477, %570 : vector<8x64xf32>
    %c0_364 = arith.constant 0 : index
    %c0_365 = arith.constant 0 : index
    %572 = vector.load %arg21[%c0_364, %c0_365] : memref<80x32xf32, #tpu.memory_space<vmem>>, vector<80x32xf32>
    %cst_366 = arith.constant dense<0.000000e+00> : vector<8x32xf32>
    %573 = tpu.matmul %559, %572, %cst_366 {dimension_numbers = #tpu.dot_dimension_numbers<[1], [0], [0], [1], [0, 0, 1, 1], [], []>} : vector<8x80xf32>, vector<80x32xf32>, vector<8x32xf32> -> vector<8x32xf32>
    %c0_367 = arith.constant 0 : index
    %c0_368 = arith.constant 0 : index
    %574 = vector.load %arg23[%c0_367, %c0_368] : memref<1x32xf32, #tpu.memory_space<vmem>>, vector<1x32xf32>
    %575 = vector.broadcast %574 : vector<1x32xf32> to vector<8x32xf32>
    %576 = arith.addf %573, %575 : vector<8x32xf32>
    %577 = arith.addf %483, %576 : vector<8x32xf32>
    %c0_369 = arith.constant 0 : index
    %c0_370 = arith.constant 0 : index
    %578 = vector.load %arg4[%c0_369, %c0_370] : memref<32x64xf32, #tpu.memory_space<vmem>>, vector<32x64xf32>
    %cst_371 = arith.constant dense<0.000000e+00> : vector<8x64xf32>
    %579 = tpu.matmul %507, %578, %cst_371 {dimension_numbers = #tpu.dot_dimension_numbers<[1], [0], [0], [1], [0, 0, 1, 1], [], []>} : vector<8x32xf32>, vector<32x64xf32>, vector<8x64xf32> -> vector<8x64xf32>
    %c0_372 = arith.constant 0 : index
    %c0_373 = arith.constant 0 : index
    %580 = vector.load %arg6[%c0_372, %c0_373] : memref<1x64xf32, #tpu.memory_space<vmem>>, vector<1x64xf32>
    %581 = vector.broadcast %580 : vector<1x64xf32> to vector<8x64xf32>
    %582 = arith.addf %579, %581 : vector<8x64xf32>
    %c0_374 = arith.constant 0 : index
    %c0_375 = arith.constant 0 : index
    %583 = vector.load %arg5[%c0_374, %c0_375] : memref<32x32xf32, #tpu.memory_space<vmem>>, vector<32x32xf32>
    %cst_376 = arith.constant dense<0.000000e+00> : vector<8x32xf32>
    %584 = tpu.matmul %507, %583, %cst_376 {dimension_numbers = #tpu.dot_dimension_numbers<[1], [0], [0], [1], [0, 0, 1, 1], [], []>} : vector<8x32xf32>, vector<32x32xf32>, vector<8x32xf32> -> vector<8x32xf32>
    %c0_377 = arith.constant 0 : index
    %c0_378 = arith.constant 0 : index
    %585 = vector.load %arg7[%c0_377, %c0_378] : memref<1x32xf32, #tpu.memory_space<vmem>>, vector<1x32xf32>
    %586 = vector.broadcast %585 : vector<1x32xf32> to vector<8x32xf32>
    %587 = arith.addf %584, %586 : vector<8x32xf32>
    %588 = arith.addf %571, %582 : vector<8x64xf32>
    %589 = arith.negf %588 : vector<8x64xf32>
    %590 = math.exp %589 : vector<8x64xf32>
    %cst_379 = arith.constant 1.000000e+00 : f32
    %591 = vector.broadcast %cst_379 : f32 to vector<8x64xf32>
    %592 = arith.addf %591, %590 : vector<8x64xf32>
    %593 = arith.divf %591, %592 : vector<8x64xf32>
    %594 = vector.extract_strided_slice %593 {offsets = [0, 0], sizes = [8, 32], strides = [1, 1]} : vector<8x64xf32> to vector<8x32xf32>
    %595 = vector.extract_strided_slice %593 {offsets = [0, 32], sizes = [8, 32], strides = [1, 1]} : vector<8x64xf32> to vector<8x32xf32>
    %596 = arith.mulf %594, %587 : vector<8x32xf32>
    %597 = arith.addf %577, %596 : vector<8x32xf32>
    %598 = math.tanh %597 : vector<8x32xf32>
    %599 = arith.subf %507, %598 : vector<8x32xf32>
    %600 = arith.mulf %595, %599 : vector<8x32xf32>
    %601 = arith.addf %598, %600 : vector<8x32xf32>
    %c0_380 = arith.constant 0 : index
    %c0_381 = arith.constant 0 : index
    %602 = vector.load %arg8[%c0_380, %c0_381] : memref<32x16xf32, #tpu.memory_space<vmem>>, vector<32x16xf32>
    %cst_382 = arith.constant dense<0.000000e+00> : vector<8x16xf32>
    %603 = tpu.matmul %601, %602, %cst_382 {dimension_numbers = #tpu.dot_dimension_numbers<[1], [0], [0], [1], [0, 0, 1, 1], [], []>} : vector<8x32xf32>, vector<32x16xf32>, vector<8x16xf32> -> vector<8x16xf32>
    %c0_383 = arith.constant 0 : index
    %c0_384 = arith.constant 0 : index
    %604 = vector.load %arg9[%c0_383, %c0_384] : memref<1x16xf32, #tpu.memory_space<vmem>>, vector<1x16xf32>
    %605 = vector.broadcast %604 : vector<1x16xf32> to vector<8x16xf32>
    %606 = arith.addf %603, %605 : vector<8x16xf32>
    %607 = tpu.concatenate %221, %376, %471, %565 in 1 : vector<8x16xf32>, vector<8x16xf32>, vector<8x16xf32>, vector<8x16xf32> -> vector<8x64xf32>
    %608 = tpu.concatenate %607, %606 in 1 : vector<8x64xf32>, vector<8x16xf32> -> vector<8x80xf32>
    %c0_385 = arith.constant 0 : index
    %c0_386 = arith.constant 0 : index
    %609 = vector.load %arg10[%c0_385, %c0_386] : memref<64x80xf32, #tpu.memory_space<vmem>>, vector<64x80xf32>
    %cst_387 = arith.constant dense<0.000000e+00> : vector<8x80xf32>
    %610 = tpu.matmul %607, %609, %cst_387 {dimension_numbers = #tpu.dot_dimension_numbers<[1], [0], [0], [1], [0, 0, 1, 1], [], []>} : vector<8x64xf32>, vector<64x80xf32>, vector<8x80xf32> -> vector<8x80xf32>
    %c0_388 = arith.constant 0 : index
    %c0_389 = arith.constant 0 : index
    %611 = vector.load %arg11[%c0_388, %c0_389] : memref<32x80xf32, #tpu.memory_space<vmem>>, vector<32x80xf32>
    %cst_390 = arith.constant dense<0.000000e+00> : vector<8x80xf32>
    %612 = tpu.matmul %601, %611, %cst_390 {dimension_numbers = #tpu.dot_dimension_numbers<[1], [0], [0], [1], [0, 0, 1, 1], [], []>} : vector<8x32xf32>, vector<32x80xf32>, vector<8x80xf32> -> vector<8x80xf32>
    %613 = arith.addf %610, %612 : vector<8x80xf32>
    %c0_391 = arith.constant 0 : index
    %c0_392 = arith.constant 0 : index
    %614 = vector.load %arg12[%c0_391, %c0_392] : memref<1x80xf32, #tpu.memory_space<vmem>>, vector<1x80xf32>
    %615 = vector.broadcast %614 : vector<1x80xf32> to vector<8x80xf32>
    %616 = arith.addf %613, %615 : vector<8x80xf32>
    %617 = arith.mulf %616, %616 : vector<8x80xf32>
    %c0_393 = arith.constant 0 : index
    %c0_394 = arith.constant 0 : index
    %618 = vector.load %arg15[%c0_393, %c0_394] : memref<80x80xf32, #tpu.memory_space<vmem>>, vector<80x80xf32>
    %cst_395 = arith.constant dense<0.000000e+00> : vector<8x80xf32>
    %619 = tpu.matmul %617, %618, %cst_395 {dimension_numbers = #tpu.dot_dimension_numbers<[1], [0], [0], [1], [0, 0, 1, 1], [], []>} : vector<8x80xf32>, vector<80x80xf32>, vector<8x80xf32> -> vector<8x80xf32>
    %cst_396 = arith.constant 9.99999974E-6 : f32
    %620 = vector.broadcast %cst_396 : f32 to vector<8x80xf32>
    %621 = arith.addf %619, %620 : vector<8x80xf32>
    %622 = math.rsqrt %621 : vector<8x80xf32>
    %623 = arith.mulf %616, %622 : vector<8x80xf32>
    %c0_397 = arith.constant 0 : index
    %c0_398 = arith.constant 0 : index
    %c0_399 = arith.constant 0 : index
    %624 = vector.load %arg16[%c0_397, %c0_398, %c0_399] : memref<2x1x80xf32, #tpu.memory_space<vmem>>, vector<1x1x80xf32>
    %625 = vector.shape_cast %624 : vector<1x1x80xf32> to vector<1x80xf32>
    %626 = vector.broadcast %625 : vector<1x80xf32> to vector<8x80xf32>
    %627 = arith.mulf %623, %626 : vector<8x80xf32>
    %c0_400 = arith.constant 0 : index
    %c0_401 = arith.constant 0 : index
    %c0_402 = arith.constant 0 : index
    %628 = vector.load %arg17[%c0_400, %c0_401, %c0_402] : memref<2x1x80xf32, #tpu.memory_space<vmem>>, vector<1x1x80xf32>
    %629 = vector.shape_cast %628 : vector<1x1x80xf32> to vector<1x80xf32>
    %630 = vector.broadcast %629 : vector<1x80xf32> to vector<8x80xf32>
    %631 = arith.addf %627, %630 : vector<8x80xf32>
    %632 = arith.addf %608, %631 : vector<8x80xf32>
    %c0_403 = arith.constant 0 : index
    %c0_404 = arith.constant 0 : index
    %633 = vector.load %arg13[%c0_403, %c0_404] : memref<80x80xf32, #tpu.memory_space<vmem>>, vector<80x80xf32>
    %cst_405 = arith.constant dense<0.000000e+00> : vector<8x80xf32>
    %634 = tpu.matmul %632, %633, %cst_405 {dimension_numbers = #tpu.dot_dimension_numbers<[1], [0], [0], [1], [0, 0, 1, 1], [], []>} : vector<8x80xf32>, vector<80x80xf32>, vector<8x80xf32> -> vector<8x80xf32>
    %c0_406 = arith.constant 0 : index
    %c0_407 = arith.constant 0 : index
    %635 = vector.load %arg14[%c0_406, %c0_407] : memref<1x80xf32, #tpu.memory_space<vmem>>, vector<1x80xf32>
    %636 = vector.broadcast %635 : vector<1x80xf32> to vector<8x80xf32>
    %637 = arith.addf %634, %636 : vector<8x80xf32>
    %638 = arith.mulf %637, %637 : vector<8x80xf32>
    %c0_408 = arith.constant 0 : index
    %c0_409 = arith.constant 0 : index
    %639 = vector.load %arg15[%c0_408, %c0_409] : memref<80x80xf32, #tpu.memory_space<vmem>>, vector<80x80xf32>
    %cst_410 = arith.constant dense<0.000000e+00> : vector<8x80xf32>
    %640 = tpu.matmul %638, %639, %cst_410 {dimension_numbers = #tpu.dot_dimension_numbers<[1], [0], [0], [1], [0, 0, 1, 1], [], []>} : vector<8x80xf32>, vector<80x80xf32>, vector<8x80xf32> -> vector<8x80xf32>
    %cst_411 = arith.constant 9.99999974E-6 : f32
    %641 = vector.broadcast %cst_411 : f32 to vector<8x80xf32>
    %642 = arith.addf %640, %641 : vector<8x80xf32>
    %643 = math.rsqrt %642 : vector<8x80xf32>
    %644 = arith.mulf %637, %643 : vector<8x80xf32>
    %c1_412 = arith.constant 1 : index
    %c0_413 = arith.constant 0 : index
    %c0_414 = arith.constant 0 : index
    %645 = vector.load %arg16[%c1_412, %c0_413, %c0_414] : memref<2x1x80xf32, #tpu.memory_space<vmem>>, vector<1x1x80xf32>
    %646 = vector.shape_cast %645 : vector<1x1x80xf32> to vector<1x80xf32>
    %647 = vector.broadcast %646 : vector<1x80xf32> to vector<8x80xf32>
    %648 = arith.mulf %644, %647 : vector<8x80xf32>
    %c1_415 = arith.constant 1 : index
    %c0_416 = arith.constant 0 : index
    %c0_417 = arith.constant 0 : index
    %649 = vector.load %arg17[%c1_415, %c0_416, %c0_417] : memref<2x1x80xf32, #tpu.memory_space<vmem>>, vector<1x1x80xf32>
    %650 = vector.shape_cast %649 : vector<1x1x80xf32> to vector<1x80xf32>
    %651 = vector.broadcast %650 : vector<1x80xf32> to vector<8x80xf32>
    %652 = arith.addf %648, %651 : vector<8x80xf32>
    %653 = arith.addf %632, %652 : vector<8x80xf32>
    %c0_418 = arith.constant 0 : index
    %c0_419 = arith.constant 0 : index
    %654 = vector.load %arg18[%c0_418, %c0_419] : memref<80x16xf32, #tpu.memory_space<vmem>>, vector<80x16xf32>
    %cst_420 = arith.constant dense<0.000000e+00> : vector<8x16xf32>
    %655 = tpu.matmul %653, %654, %cst_420 {dimension_numbers = #tpu.dot_dimension_numbers<[1], [0], [0], [1], [0, 0, 1, 1], [], []>} : vector<8x80xf32>, vector<80x16xf32>, vector<8x16xf32> -> vector<8x16xf32>
    %c0_421 = arith.constant 0 : index
    %c0_422 = arith.constant 0 : index
    %656 = vector.load %arg19[%c0_421, %c0_422] : memref<1x16xf32, #tpu.memory_space<vmem>>, vector<1x16xf32>
    %657 = vector.broadcast %656 : vector<1x16xf32> to vector<8x16xf32>
    %658 = arith.addf %655, %657 : vector<8x16xf32>
    %659 = arith.addf %658, %565 : vector<8x16xf32>
    %c0_423 = arith.constant 0 : index
    %c0_424 = arith.constant 0 : index
    %660 = vector.load %arg20[%c0_423, %c0_424] : memref<80x64xf32, #tpu.memory_space<vmem>>, vector<80x64xf32>
    %cst_425 = arith.constant dense<0.000000e+00> : vector<8x64xf32>
    %661 = tpu.matmul %653, %660, %cst_425 {dimension_numbers = #tpu.dot_dimension_numbers<[1], [0], [0], [1], [0, 0, 1, 1], [], []>} : vector<8x80xf32>, vector<80x64xf32>, vector<8x64xf32> -> vector<8x64xf32>
    %c0_426 = arith.constant 0 : index
    %c0_427 = arith.constant 0 : index
    %662 = vector.load %arg22[%c0_426, %c0_427] : memref<1x64xf32, #tpu.memory_space<vmem>>, vector<1x64xf32>
    %663 = vector.broadcast %662 : vector<1x64xf32> to vector<8x64xf32>
    %664 = arith.addf %661, %663 : vector<8x64xf32>
    %665 = arith.addf %571, %664 : vector<8x64xf32>
    %c0_428 = arith.constant 0 : index
    %c0_429 = arith.constant 0 : index
    %666 = vector.load %arg21[%c0_428, %c0_429] : memref<80x32xf32, #tpu.memory_space<vmem>>, vector<80x32xf32>
    %cst_430 = arith.constant dense<0.000000e+00> : vector<8x32xf32>
    %667 = tpu.matmul %653, %666, %cst_430 {dimension_numbers = #tpu.dot_dimension_numbers<[1], [0], [0], [1], [0, 0, 1, 1], [], []>} : vector<8x80xf32>, vector<80x32xf32>, vector<8x32xf32> -> vector<8x32xf32>
    %c0_431 = arith.constant 0 : index
    %c0_432 = arith.constant 0 : index
    %668 = vector.load %arg23[%c0_431, %c0_432] : memref<1x32xf32, #tpu.memory_space<vmem>>, vector<1x32xf32>
    %669 = vector.broadcast %668 : vector<1x32xf32> to vector<8x32xf32>
    %670 = arith.addf %667, %669 : vector<8x32xf32>
    %671 = arith.addf %577, %670 : vector<8x32xf32>
    %c0_433 = arith.constant 0 : index
    %c0_434 = arith.constant 0 : index
    %672 = vector.load %arg4[%c0_433, %c0_434] : memref<32x64xf32, #tpu.memory_space<vmem>>, vector<32x64xf32>
    %cst_435 = arith.constant dense<0.000000e+00> : vector<8x64xf32>
    %673 = tpu.matmul %601, %672, %cst_435 {dimension_numbers = #tpu.dot_dimension_numbers<[1], [0], [0], [1], [0, 0, 1, 1], [], []>} : vector<8x32xf32>, vector<32x64xf32>, vector<8x64xf32> -> vector<8x64xf32>
    %c0_436 = arith.constant 0 : index
    %c0_437 = arith.constant 0 : index
    %674 = vector.load %arg6[%c0_436, %c0_437] : memref<1x64xf32, #tpu.memory_space<vmem>>, vector<1x64xf32>
    %675 = vector.broadcast %674 : vector<1x64xf32> to vector<8x64xf32>
    %676 = arith.addf %673, %675 : vector<8x64xf32>
    %c0_438 = arith.constant 0 : index
    %c0_439 = arith.constant 0 : index
    %677 = vector.load %arg5[%c0_438, %c0_439] : memref<32x32xf32, #tpu.memory_space<vmem>>, vector<32x32xf32>
    %cst_440 = arith.constant dense<0.000000e+00> : vector<8x32xf32>
    %678 = tpu.matmul %601, %677, %cst_440 {dimension_numbers = #tpu.dot_dimension_numbers<[1], [0], [0], [1], [0, 0, 1, 1], [], []>} : vector<8x32xf32>, vector<32x32xf32>, vector<8x32xf32> -> vector<8x32xf32>
    %c0_441 = arith.constant 0 : index
    %c0_442 = arith.constant 0 : index
    %679 = vector.load %arg7[%c0_441, %c0_442] : memref<1x32xf32, #tpu.memory_space<vmem>>, vector<1x32xf32>
    %680 = vector.broadcast %679 : vector<1x32xf32> to vector<8x32xf32>
    %681 = arith.addf %678, %680 : vector<8x32xf32>
    %682 = arith.addf %665, %676 : vector<8x64xf32>
    %683 = arith.negf %682 : vector<8x64xf32>
    %684 = math.exp %683 : vector<8x64xf32>
    %cst_443 = arith.constant 1.000000e+00 : f32
    %685 = vector.broadcast %cst_443 : f32 to vector<8x64xf32>
    %686 = arith.addf %685, %684 : vector<8x64xf32>
    %687 = arith.divf %685, %686 : vector<8x64xf32>
    %688 = vector.extract_strided_slice %687 {offsets = [0, 0], sizes = [8, 32], strides = [1, 1]} : vector<8x64xf32> to vector<8x32xf32>
    %689 = vector.extract_strided_slice %687 {offsets = [0, 32], sizes = [8, 32], strides = [1, 1]} : vector<8x64xf32> to vector<8x32xf32>
    %690 = arith.mulf %688, %681 : vector<8x32xf32>
    %691 = arith.addf %671, %690 : vector<8x32xf32>
    %692 = math.tanh %691 : vector<8x32xf32>
    %693 = arith.subf %601, %692 : vector<8x32xf32>
    %694 = arith.mulf %689, %693 : vector<8x32xf32>
    %695 = arith.addf %692, %694 : vector<8x32xf32>
    %c0_444 = arith.constant 0 : index
    %c0_445 = arith.constant 0 : index
    %696 = vector.load %arg8[%c0_444, %c0_445] : memref<32x16xf32, #tpu.memory_space<vmem>>, vector<32x16xf32>
    %cst_446 = arith.constant dense<0.000000e+00> : vector<8x16xf32>
    %697 = tpu.matmul %695, %696, %cst_446 {dimension_numbers = #tpu.dot_dimension_numbers<[1], [0], [0], [1], [0, 0, 1, 1], [], []>} : vector<8x32xf32>, vector<32x16xf32>, vector<8x16xf32> -> vector<8x16xf32>
    %c0_447 = arith.constant 0 : index
    %c0_448 = arith.constant 0 : index
    %698 = vector.load %arg9[%c0_447, %c0_448] : memref<1x16xf32, #tpu.memory_space<vmem>>, vector<1x16xf32>
    %699 = vector.broadcast %698 : vector<1x16xf32> to vector<8x16xf32>
    %700 = arith.addf %697, %699 : vector<8x16xf32>
    %701 = tpu.concatenate %221, %471, %565, %659 in 1 : vector<8x16xf32>, vector<8x16xf32>, vector<8x16xf32>, vector<8x16xf32> -> vector<8x64xf32>
    %702 = tpu.concatenate %701, %700 in 1 : vector<8x64xf32>, vector<8x16xf32> -> vector<8x80xf32>
    %c0_449 = arith.constant 0 : index
    %c0_450 = arith.constant 0 : index
    %703 = vector.load %arg10[%c0_449, %c0_450] : memref<64x80xf32, #tpu.memory_space<vmem>>, vector<64x80xf32>
    %cst_451 = arith.constant dense<0.000000e+00> : vector<8x80xf32>
    %704 = tpu.matmul %701, %703, %cst_451 {dimension_numbers = #tpu.dot_dimension_numbers<[1], [0], [0], [1], [0, 0, 1, 1], [], []>} : vector<8x64xf32>, vector<64x80xf32>, vector<8x80xf32> -> vector<8x80xf32>
    %c0_452 = arith.constant 0 : index
    %c0_453 = arith.constant 0 : index
    %705 = vector.load %arg11[%c0_452, %c0_453] : memref<32x80xf32, #tpu.memory_space<vmem>>, vector<32x80xf32>
    %cst_454 = arith.constant dense<0.000000e+00> : vector<8x80xf32>
    %706 = tpu.matmul %695, %705, %cst_454 {dimension_numbers = #tpu.dot_dimension_numbers<[1], [0], [0], [1], [0, 0, 1, 1], [], []>} : vector<8x32xf32>, vector<32x80xf32>, vector<8x80xf32> -> vector<8x80xf32>
    %707 = arith.addf %704, %706 : vector<8x80xf32>
    %c0_455 = arith.constant 0 : index
    %c0_456 = arith.constant 0 : index
    %708 = vector.load %arg12[%c0_455, %c0_456] : memref<1x80xf32, #tpu.memory_space<vmem>>, vector<1x80xf32>
    %709 = vector.broadcast %708 : vector<1x80xf32> to vector<8x80xf32>
    %710 = arith.addf %707, %709 : vector<8x80xf32>
    %711 = arith.mulf %710, %710 : vector<8x80xf32>
    %c0_457 = arith.constant 0 : index
    %c0_458 = arith.constant 0 : index
    %712 = vector.load %arg15[%c0_457, %c0_458] : memref<80x80xf32, #tpu.memory_space<vmem>>, vector<80x80xf32>
    %cst_459 = arith.constant dense<0.000000e+00> : vector<8x80xf32>
    %713 = tpu.matmul %711, %712, %cst_459 {dimension_numbers = #tpu.dot_dimension_numbers<[1], [0], [0], [1], [0, 0, 1, 1], [], []>} : vector<8x80xf32>, vector<80x80xf32>, vector<8x80xf32> -> vector<8x80xf32>
    %cst_460 = arith.constant 9.99999974E-6 : f32
    %714 = vector.broadcast %cst_460 : f32 to vector<8x80xf32>
    %715 = arith.addf %713, %714 : vector<8x80xf32>
    %716 = math.rsqrt %715 : vector<8x80xf32>
    %717 = arith.mulf %710, %716 : vector<8x80xf32>
    %c0_461 = arith.constant 0 : index
    %c0_462 = arith.constant 0 : index
    %c0_463 = arith.constant 0 : index
    %718 = vector.load %arg16[%c0_461, %c0_462, %c0_463] : memref<2x1x80xf32, #tpu.memory_space<vmem>>, vector<1x1x80xf32>
    %719 = vector.shape_cast %718 : vector<1x1x80xf32> to vector<1x80xf32>
    %720 = vector.broadcast %719 : vector<1x80xf32> to vector<8x80xf32>
    %721 = arith.mulf %717, %720 : vector<8x80xf32>
    %c0_464 = arith.constant 0 : index
    %c0_465 = arith.constant 0 : index
    %c0_466 = arith.constant 0 : index
    %722 = vector.load %arg17[%c0_464, %c0_465, %c0_466] : memref<2x1x80xf32, #tpu.memory_space<vmem>>, vector<1x1x80xf32>
    %723 = vector.shape_cast %722 : vector<1x1x80xf32> to vector<1x80xf32>
    %724 = vector.broadcast %723 : vector<1x80xf32> to vector<8x80xf32>
    %725 = arith.addf %721, %724 : vector<8x80xf32>
    %726 = arith.addf %702, %725 : vector<8x80xf32>
    %c0_467 = arith.constant 0 : index
    %c0_468 = arith.constant 0 : index
    %727 = vector.load %arg13[%c0_467, %c0_468] : memref<80x80xf32, #tpu.memory_space<vmem>>, vector<80x80xf32>
    %cst_469 = arith.constant dense<0.000000e+00> : vector<8x80xf32>
    %728 = tpu.matmul %726, %727, %cst_469 {dimension_numbers = #tpu.dot_dimension_numbers<[1], [0], [0], [1], [0, 0, 1, 1], [], []>} : vector<8x80xf32>, vector<80x80xf32>, vector<8x80xf32> -> vector<8x80xf32>
    %c0_470 = arith.constant 0 : index
    %c0_471 = arith.constant 0 : index
    %729 = vector.load %arg14[%c0_470, %c0_471] : memref<1x80xf32, #tpu.memory_space<vmem>>, vector<1x80xf32>
    %730 = vector.broadcast %729 : vector<1x80xf32> to vector<8x80xf32>
    %731 = arith.addf %728, %730 : vector<8x80xf32>
    %732 = arith.mulf %731, %731 : vector<8x80xf32>
    %c0_472 = arith.constant 0 : index
    %c0_473 = arith.constant 0 : index
    %733 = vector.load %arg15[%c0_472, %c0_473] : memref<80x80xf32, #tpu.memory_space<vmem>>, vector<80x80xf32>
    %cst_474 = arith.constant dense<0.000000e+00> : vector<8x80xf32>
    %734 = tpu.matmul %732, %733, %cst_474 {dimension_numbers = #tpu.dot_dimension_numbers<[1], [0], [0], [1], [0, 0, 1, 1], [], []>} : vector<8x80xf32>, vector<80x80xf32>, vector<8x80xf32> -> vector<8x80xf32>
    %cst_475 = arith.constant 9.99999974E-6 : f32
    %735 = vector.broadcast %cst_475 : f32 to vector<8x80xf32>
    %736 = arith.addf %734, %735 : vector<8x80xf32>
    %737 = math.rsqrt %736 : vector<8x80xf32>
    %738 = arith.mulf %731, %737 : vector<8x80xf32>
    %c1_476 = arith.constant 1 : index
    %c0_477 = arith.constant 0 : index
    %c0_478 = arith.constant 0 : index
    %739 = vector.load %arg16[%c1_476, %c0_477, %c0_478] : memref<2x1x80xf32, #tpu.memory_space<vmem>>, vector<1x1x80xf32>
    %740 = vector.shape_cast %739 : vector<1x1x80xf32> to vector<1x80xf32>
    %741 = vector.broadcast %740 : vector<1x80xf32> to vector<8x80xf32>
    %742 = arith.mulf %738, %741 : vector<8x80xf32>
    %c1_479 = arith.constant 1 : index
    %c0_480 = arith.constant 0 : index
    %c0_481 = arith.constant 0 : index
    %743 = vector.load %arg17[%c1_479, %c0_480, %c0_481] : memref<2x1x80xf32, #tpu.memory_space<vmem>>, vector<1x1x80xf32>
    %744 = vector.shape_cast %743 : vector<1x1x80xf32> to vector<1x80xf32>
    %745 = vector.broadcast %744 : vector<1x80xf32> to vector<8x80xf32>
    %746 = arith.addf %742, %745 : vector<8x80xf32>
    %747 = arith.addf %726, %746 : vector<8x80xf32>
    %c0_482 = arith.constant 0 : index
    %c0_483 = arith.constant 0 : index
    %748 = vector.load %arg18[%c0_482, %c0_483] : memref<80x16xf32, #tpu.memory_space<vmem>>, vector<80x16xf32>
    %cst_484 = arith.constant dense<0.000000e+00> : vector<8x16xf32>
    %749 = tpu.matmul %747, %748, %cst_484 {dimension_numbers = #tpu.dot_dimension_numbers<[1], [0], [0], [1], [0, 0, 1, 1], [], []>} : vector<8x80xf32>, vector<80x16xf32>, vector<8x16xf32> -> vector<8x16xf32>
    %c0_485 = arith.constant 0 : index
    %c0_486 = arith.constant 0 : index
    %750 = vector.load %arg19[%c0_485, %c0_486] : memref<1x16xf32, #tpu.memory_space<vmem>>, vector<1x16xf32>
    %751 = vector.broadcast %750 : vector<1x16xf32> to vector<8x16xf32>
    %752 = arith.addf %749, %751 : vector<8x16xf32>
    %753 = arith.addf %752, %659 : vector<8x16xf32>
    %c0_487 = arith.constant 0 : index
    %c0_488 = arith.constant 0 : index
    %754 = vector.load %arg20[%c0_487, %c0_488] : memref<80x64xf32, #tpu.memory_space<vmem>>, vector<80x64xf32>
    %cst_489 = arith.constant dense<0.000000e+00> : vector<8x64xf32>
    %755 = tpu.matmul %747, %754, %cst_489 {dimension_numbers = #tpu.dot_dimension_numbers<[1], [0], [0], [1], [0, 0, 1, 1], [], []>} : vector<8x80xf32>, vector<80x64xf32>, vector<8x64xf32> -> vector<8x64xf32>
    %c0_490 = arith.constant 0 : index
    %c0_491 = arith.constant 0 : index
    %756 = vector.load %arg22[%c0_490, %c0_491] : memref<1x64xf32, #tpu.memory_space<vmem>>, vector<1x64xf32>
    %757 = vector.broadcast %756 : vector<1x64xf32> to vector<8x64xf32>
    %758 = arith.addf %755, %757 : vector<8x64xf32>
    %759 = arith.addf %665, %758 : vector<8x64xf32>
    %c0_492 = arith.constant 0 : index
    %c0_493 = arith.constant 0 : index
    %760 = vector.load %arg21[%c0_492, %c0_493] : memref<80x32xf32, #tpu.memory_space<vmem>>, vector<80x32xf32>
    %cst_494 = arith.constant dense<0.000000e+00> : vector<8x32xf32>
    %761 = tpu.matmul %747, %760, %cst_494 {dimension_numbers = #tpu.dot_dimension_numbers<[1], [0], [0], [1], [0, 0, 1, 1], [], []>} : vector<8x80xf32>, vector<80x32xf32>, vector<8x32xf32> -> vector<8x32xf32>
    %c0_495 = arith.constant 0 : index
    %c0_496 = arith.constant 0 : index
    %762 = vector.load %arg23[%c0_495, %c0_496] : memref<1x32xf32, #tpu.memory_space<vmem>>, vector<1x32xf32>
    %763 = vector.broadcast %762 : vector<1x32xf32> to vector<8x32xf32>
    %764 = arith.addf %761, %763 : vector<8x32xf32>
    %765 = arith.addf %671, %764 : vector<8x32xf32>
    %c0_497 = arith.constant 0 : index
    %c0_498 = arith.constant 0 : index
    %766 = vector.load %arg4[%c0_497, %c0_498] : memref<32x64xf32, #tpu.memory_space<vmem>>, vector<32x64xf32>
    %cst_499 = arith.constant dense<0.000000e+00> : vector<8x64xf32>
    %767 = tpu.matmul %695, %766, %cst_499 {dimension_numbers = #tpu.dot_dimension_numbers<[1], [0], [0], [1], [0, 0, 1, 1], [], []>} : vector<8x32xf32>, vector<32x64xf32>, vector<8x64xf32> -> vector<8x64xf32>
    %c0_500 = arith.constant 0 : index
    %c0_501 = arith.constant 0 : index
    %768 = vector.load %arg6[%c0_500, %c0_501] : memref<1x64xf32, #tpu.memory_space<vmem>>, vector<1x64xf32>
    %769 = vector.broadcast %768 : vector<1x64xf32> to vector<8x64xf32>
    %770 = arith.addf %767, %769 : vector<8x64xf32>
    %c0_502 = arith.constant 0 : index
    %c0_503 = arith.constant 0 : index
    %771 = vector.load %arg5[%c0_502, %c0_503] : memref<32x32xf32, #tpu.memory_space<vmem>>, vector<32x32xf32>
    %cst_504 = arith.constant dense<0.000000e+00> : vector<8x32xf32>
    %772 = tpu.matmul %695, %771, %cst_504 {dimension_numbers = #tpu.dot_dimension_numbers<[1], [0], [0], [1], [0, 0, 1, 1], [], []>} : vector<8x32xf32>, vector<32x32xf32>, vector<8x32xf32> -> vector<8x32xf32>
    %c0_505 = arith.constant 0 : index
    %c0_506 = arith.constant 0 : index
    %773 = vector.load %arg7[%c0_505, %c0_506] : memref<1x32xf32, #tpu.memory_space<vmem>>, vector<1x32xf32>
    %774 = vector.broadcast %773 : vector<1x32xf32> to vector<8x32xf32>
    %775 = arith.addf %772, %774 : vector<8x32xf32>
    %776 = arith.addf %759, %770 : vector<8x64xf32>
    %777 = arith.negf %776 : vector<8x64xf32>
    %778 = math.exp %777 : vector<8x64xf32>
    %cst_507 = arith.constant 1.000000e+00 : f32
    %779 = vector.broadcast %cst_507 : f32 to vector<8x64xf32>
    %780 = arith.addf %779, %778 : vector<8x64xf32>
    %781 = arith.divf %779, %780 : vector<8x64xf32>
    %782 = vector.extract_strided_slice %781 {offsets = [0, 0], sizes = [8, 32], strides = [1, 1]} : vector<8x64xf32> to vector<8x32xf32>
    %783 = vector.extract_strided_slice %781 {offsets = [0, 32], sizes = [8, 32], strides = [1, 1]} : vector<8x64xf32> to vector<8x32xf32>
    %784 = arith.mulf %782, %775 : vector<8x32xf32>
    %785 = arith.addf %765, %784 : vector<8x32xf32>
    %786 = math.tanh %785 : vector<8x32xf32>
    %787 = arith.subf %695, %786 : vector<8x32xf32>
    %788 = arith.mulf %783, %787 : vector<8x32xf32>
    %789 = arith.addf %786, %788 : vector<8x32xf32>
    %c0_508 = arith.constant 0 : index
    %c0_509 = arith.constant 0 : index
    %790 = vector.load %arg8[%c0_508, %c0_509] : memref<32x16xf32, #tpu.memory_space<vmem>>, vector<32x16xf32>
    %cst_510 = arith.constant dense<0.000000e+00> : vector<8x16xf32>
    %791 = tpu.matmul %789, %790, %cst_510 {dimension_numbers = #tpu.dot_dimension_numbers<[1], [0], [0], [1], [0, 0, 1, 1], [], []>} : vector<8x32xf32>, vector<32x16xf32>, vector<8x16xf32> -> vector<8x16xf32>
    %c0_511 = arith.constant 0 : index
    %c0_512 = arith.constant 0 : index
    %792 = vector.load %arg9[%c0_511, %c0_512] : memref<1x16xf32, #tpu.memory_space<vmem>>, vector<1x16xf32>
    %793 = vector.broadcast %792 : vector<1x16xf32> to vector<8x16xf32>
    %794 = arith.addf %791, %793 : vector<8x16xf32>
    %795 = tpu.concatenate %221, %565, %659, %753 in 1 : vector<8x16xf32>, vector<8x16xf32>, vector<8x16xf32>, vector<8x16xf32> -> vector<8x64xf32>
    %796 = tpu.concatenate %795, %794 in 1 : vector<8x64xf32>, vector<8x16xf32> -> vector<8x80xf32>
    %c0_513 = arith.constant 0 : index
    %c0_514 = arith.constant 0 : index
    %797 = vector.load %arg10[%c0_513, %c0_514] : memref<64x80xf32, #tpu.memory_space<vmem>>, vector<64x80xf32>
    %cst_515 = arith.constant dense<0.000000e+00> : vector<8x80xf32>
    %798 = tpu.matmul %795, %797, %cst_515 {dimension_numbers = #tpu.dot_dimension_numbers<[1], [0], [0], [1], [0, 0, 1, 1], [], []>} : vector<8x64xf32>, vector<64x80xf32>, vector<8x80xf32> -> vector<8x80xf32>
    %c0_516 = arith.constant 0 : index
    %c0_517 = arith.constant 0 : index
    %799 = vector.load %arg11[%c0_516, %c0_517] : memref<32x80xf32, #tpu.memory_space<vmem>>, vector<32x80xf32>
    %cst_518 = arith.constant dense<0.000000e+00> : vector<8x80xf32>
    %800 = tpu.matmul %789, %799, %cst_518 {dimension_numbers = #tpu.dot_dimension_numbers<[1], [0], [0], [1], [0, 0, 1, 1], [], []>} : vector<8x32xf32>, vector<32x80xf32>, vector<8x80xf32> -> vector<8x80xf32>
    %801 = arith.addf %798, %800 : vector<8x80xf32>
    %c0_519 = arith.constant 0 : index
    %c0_520 = arith.constant 0 : index
    %802 = vector.load %arg12[%c0_519, %c0_520] : memref<1x80xf32, #tpu.memory_space<vmem>>, vector<1x80xf32>
    %803 = vector.broadcast %802 : vector<1x80xf32> to vector<8x80xf32>
    %804 = arith.addf %801, %803 : vector<8x80xf32>
    %805 = arith.mulf %804, %804 : vector<8x80xf32>
    %c0_521 = arith.constant 0 : index
    %c0_522 = arith.constant 0 : index
    %806 = vector.load %arg15[%c0_521, %c0_522] : memref<80x80xf32, #tpu.memory_space<vmem>>, vector<80x80xf32>
    %cst_523 = arith.constant dense<0.000000e+00> : vector<8x80xf32>
    %807 = tpu.matmul %805, %806, %cst_523 {dimension_numbers = #tpu.dot_dimension_numbers<[1], [0], [0], [1], [0, 0, 1, 1], [], []>} : vector<8x80xf32>, vector<80x80xf32>, vector<8x80xf32> -> vector<8x80xf32>
    %cst_524 = arith.constant 9.99999974E-6 : f32
    %808 = vector.broadcast %cst_524 : f32 to vector<8x80xf32>
    %809 = arith.addf %807, %808 : vector<8x80xf32>
    %810 = math.rsqrt %809 : vector<8x80xf32>
    %811 = arith.mulf %804, %810 : vector<8x80xf32>
    %c0_525 = arith.constant 0 : index
    %c0_526 = arith.constant 0 : index
    %c0_527 = arith.constant 0 : index
    %812 = vector.load %arg16[%c0_525, %c0_526, %c0_527] : memref<2x1x80xf32, #tpu.memory_space<vmem>>, vector<1x1x80xf32>
    %813 = vector.shape_cast %812 : vector<1x1x80xf32> to vector<1x80xf32>
    %814 = vector.broadcast %813 : vector<1x80xf32> to vector<8x80xf32>
    %815 = arith.mulf %811, %814 : vector<8x80xf32>
    %c0_528 = arith.constant 0 : index
    %c0_529 = arith.constant 0 : index
    %c0_530 = arith.constant 0 : index
    %816 = vector.load %arg17[%c0_528, %c0_529, %c0_530] : memref<2x1x80xf32, #tpu.memory_space<vmem>>, vector<1x1x80xf32>
    %817 = vector.shape_cast %816 : vector<1x1x80xf32> to vector<1x80xf32>
    %818 = vector.broadcast %817 : vector<1x80xf32> to vector<8x80xf32>
    %819 = arith.addf %815, %818 : vector<8x80xf32>
    %820 = arith.addf %796, %819 : vector<8x80xf32>
    %c0_531 = arith.constant 0 : index
    %c0_532 = arith.constant 0 : index
    %821 = vector.load %arg13[%c0_531, %c0_532] : memref<80x80xf32, #tpu.memory_space<vmem>>, vector<80x80xf32>
    %cst_533 = arith.constant dense<0.000000e+00> : vector<8x80xf32>
    %822 = tpu.matmul %820, %821, %cst_533 {dimension_numbers = #tpu.dot_dimension_numbers<[1], [0], [0], [1], [0, 0, 1, 1], [], []>} : vector<8x80xf32>, vector<80x80xf32>, vector<8x80xf32> -> vector<8x80xf32>
    %c0_534 = arith.constant 0 : index
    %c0_535 = arith.constant 0 : index
    %823 = vector.load %arg14[%c0_534, %c0_535] : memref<1x80xf32, #tpu.memory_space<vmem>>, vector<1x80xf32>
    %824 = vector.broadcast %823 : vector<1x80xf32> to vector<8x80xf32>
    %825 = arith.addf %822, %824 : vector<8x80xf32>
    %826 = arith.mulf %825, %825 : vector<8x80xf32>
    %c0_536 = arith.constant 0 : index
    %c0_537 = arith.constant 0 : index
    %827 = vector.load %arg15[%c0_536, %c0_537] : memref<80x80xf32, #tpu.memory_space<vmem>>, vector<80x80xf32>
    %cst_538 = arith.constant dense<0.000000e+00> : vector<8x80xf32>
    %828 = tpu.matmul %826, %827, %cst_538 {dimension_numbers = #tpu.dot_dimension_numbers<[1], [0], [0], [1], [0, 0, 1, 1], [], []>} : vector<8x80xf32>, vector<80x80xf32>, vector<8x80xf32> -> vector<8x80xf32>
    %cst_539 = arith.constant 9.99999974E-6 : f32
    %829 = vector.broadcast %cst_539 : f32 to vector<8x80xf32>
    %830 = arith.addf %828, %829 : vector<8x80xf32>
    %831 = math.rsqrt %830 : vector<8x80xf32>
    %832 = arith.mulf %825, %831 : vector<8x80xf32>
    %c1_540 = arith.constant 1 : index
    %c0_541 = arith.constant 0 : index
    %c0_542 = arith.constant 0 : index
    %833 = vector.load %arg16[%c1_540, %c0_541, %c0_542] : memref<2x1x80xf32, #tpu.memory_space<vmem>>, vector<1x1x80xf32>
    %834 = vector.shape_cast %833 : vector<1x1x80xf32> to vector<1x80xf32>
    %835 = vector.broadcast %834 : vector<1x80xf32> to vector<8x80xf32>
    %836 = arith.mulf %832, %835 : vector<8x80xf32>
    %c1_543 = arith.constant 1 : index
    %c0_544 = arith.constant 0 : index
    %c0_545 = arith.constant 0 : index
    %837 = vector.load %arg17[%c1_543, %c0_544, %c0_545] : memref<2x1x80xf32, #tpu.memory_space<vmem>>, vector<1x1x80xf32>
    %838 = vector.shape_cast %837 : vector<1x1x80xf32> to vector<1x80xf32>
    %839 = vector.broadcast %838 : vector<1x80xf32> to vector<8x80xf32>
    %840 = arith.addf %836, %839 : vector<8x80xf32>
    %841 = arith.addf %820, %840 : vector<8x80xf32>
    %c0_546 = arith.constant 0 : index
    %c0_547 = arith.constant 0 : index
    %842 = vector.load %arg18[%c0_546, %c0_547] : memref<80x16xf32, #tpu.memory_space<vmem>>, vector<80x16xf32>
    %cst_548 = arith.constant dense<0.000000e+00> : vector<8x16xf32>
    %843 = tpu.matmul %841, %842, %cst_548 {dimension_numbers = #tpu.dot_dimension_numbers<[1], [0], [0], [1], [0, 0, 1, 1], [], []>} : vector<8x80xf32>, vector<80x16xf32>, vector<8x16xf32> -> vector<8x16xf32>
    %c0_549 = arith.constant 0 : index
    %c0_550 = arith.constant 0 : index
    %844 = vector.load %arg19[%c0_549, %c0_550] : memref<1x16xf32, #tpu.memory_space<vmem>>, vector<1x16xf32>
    %845 = vector.broadcast %844 : vector<1x16xf32> to vector<8x16xf32>
    %846 = arith.addf %843, %845 : vector<8x16xf32>
    %847 = arith.addf %846, %753 : vector<8x16xf32>
    %c0_551 = arith.constant 0 : index
    %c0_552 = arith.constant 0 : index
    %848 = vector.load %arg20[%c0_551, %c0_552] : memref<80x64xf32, #tpu.memory_space<vmem>>, vector<80x64xf32>
    %cst_553 = arith.constant dense<0.000000e+00> : vector<8x64xf32>
    %849 = tpu.matmul %841, %848, %cst_553 {dimension_numbers = #tpu.dot_dimension_numbers<[1], [0], [0], [1], [0, 0, 1, 1], [], []>} : vector<8x80xf32>, vector<80x64xf32>, vector<8x64xf32> -> vector<8x64xf32>
    %c0_554 = arith.constant 0 : index
    %c0_555 = arith.constant 0 : index
    %850 = vector.load %arg22[%c0_554, %c0_555] : memref<1x64xf32, #tpu.memory_space<vmem>>, vector<1x64xf32>
    %851 = vector.broadcast %850 : vector<1x64xf32> to vector<8x64xf32>
    %852 = arith.addf %849, %851 : vector<8x64xf32>
    %853 = arith.addf %759, %852 : vector<8x64xf32>
    %c0_556 = arith.constant 0 : index
    %c0_557 = arith.constant 0 : index
    %854 = vector.load %arg21[%c0_556, %c0_557] : memref<80x32xf32, #tpu.memory_space<vmem>>, vector<80x32xf32>
    %cst_558 = arith.constant dense<0.000000e+00> : vector<8x32xf32>
    %855 = tpu.matmul %841, %854, %cst_558 {dimension_numbers = #tpu.dot_dimension_numbers<[1], [0], [0], [1], [0, 0, 1, 1], [], []>} : vector<8x80xf32>, vector<80x32xf32>, vector<8x32xf32> -> vector<8x32xf32>
    %c0_559 = arith.constant 0 : index
    %c0_560 = arith.constant 0 : index
    %856 = vector.load %arg23[%c0_559, %c0_560] : memref<1x32xf32, #tpu.memory_space<vmem>>, vector<1x32xf32>
    %857 = vector.broadcast %856 : vector<1x32xf32> to vector<8x32xf32>
    %858 = arith.addf %855, %857 : vector<8x32xf32>
    %859 = arith.addf %765, %858 : vector<8x32xf32>
    %c0_561 = arith.constant 0 : index
    %c0_562 = arith.constant 0 : index
    %860 = vector.load %arg4[%c0_561, %c0_562] : memref<32x64xf32, #tpu.memory_space<vmem>>, vector<32x64xf32>
    %cst_563 = arith.constant dense<0.000000e+00> : vector<8x64xf32>
    %861 = tpu.matmul %789, %860, %cst_563 {dimension_numbers = #tpu.dot_dimension_numbers<[1], [0], [0], [1], [0, 0, 1, 1], [], []>} : vector<8x32xf32>, vector<32x64xf32>, vector<8x64xf32> -> vector<8x64xf32>
    %c0_564 = arith.constant 0 : index
    %c0_565 = arith.constant 0 : index
    %862 = vector.load %arg6[%c0_564, %c0_565] : memref<1x64xf32, #tpu.memory_space<vmem>>, vector<1x64xf32>
    %863 = vector.broadcast %862 : vector<1x64xf32> to vector<8x64xf32>
    %864 = arith.addf %861, %863 : vector<8x64xf32>
    %c0_566 = arith.constant 0 : index
    %c0_567 = arith.constant 0 : index
    %865 = vector.load %arg5[%c0_566, %c0_567] : memref<32x32xf32, #tpu.memory_space<vmem>>, vector<32x32xf32>
    %cst_568 = arith.constant dense<0.000000e+00> : vector<8x32xf32>
    %866 = tpu.matmul %789, %865, %cst_568 {dimension_numbers = #tpu.dot_dimension_numbers<[1], [0], [0], [1], [0, 0, 1, 1], [], []>} : vector<8x32xf32>, vector<32x32xf32>, vector<8x32xf32> -> vector<8x32xf32>
    %c0_569 = arith.constant 0 : index
    %c0_570 = arith.constant 0 : index
    %867 = vector.load %arg7[%c0_569, %c0_570] : memref<1x32xf32, #tpu.memory_space<vmem>>, vector<1x32xf32>
    %868 = vector.broadcast %867 : vector<1x32xf32> to vector<8x32xf32>
    %869 = arith.addf %866, %868 : vector<8x32xf32>
    %870 = arith.addf %853, %864 : vector<8x64xf32>
    %871 = arith.negf %870 : vector<8x64xf32>
    %872 = math.exp %871 : vector<8x64xf32>
    %cst_571 = arith.constant 1.000000e+00 : f32
    %873 = vector.broadcast %cst_571 : f32 to vector<8x64xf32>
    %874 = arith.addf %873, %872 : vector<8x64xf32>
    %875 = arith.divf %873, %874 : vector<8x64xf32>
    %876 = vector.extract_strided_slice %875 {offsets = [0, 0], sizes = [8, 32], strides = [1, 1]} : vector<8x64xf32> to vector<8x32xf32>
    %877 = vector.extract_strided_slice %875 {offsets = [0, 32], sizes = [8, 32], strides = [1, 1]} : vector<8x64xf32> to vector<8x32xf32>
    %878 = arith.mulf %876, %869 : vector<8x32xf32>
    %879 = arith.addf %859, %878 : vector<8x32xf32>
    %880 = math.tanh %879 : vector<8x32xf32>
    %881 = arith.subf %789, %880 : vector<8x32xf32>
    %882 = arith.mulf %877, %881 : vector<8x32xf32>
    %883 = arith.addf %880, %882 : vector<8x32xf32>
    %c0_572 = arith.constant 0 : index
    %c0_573 = arith.constant 0 : index
    %884 = vector.load %arg8[%c0_572, %c0_573] : memref<32x16xf32, #tpu.memory_space<vmem>>, vector<32x16xf32>
    %cst_574 = arith.constant dense<0.000000e+00> : vector<8x16xf32>
    %885 = tpu.matmul %883, %884, %cst_574 {dimension_numbers = #tpu.dot_dimension_numbers<[1], [0], [0], [1], [0, 0, 1, 1], [], []>} : vector<8x32xf32>, vector<32x16xf32>, vector<8x16xf32> -> vector<8x16xf32>
    %c0_575 = arith.constant 0 : index
    %c0_576 = arith.constant 0 : index
    %886 = vector.load %arg9[%c0_575, %c0_576] : memref<1x16xf32, #tpu.memory_space<vmem>>, vector<1x16xf32>
    %887 = vector.broadcast %886 : vector<1x16xf32> to vector<8x16xf32>
    %888 = arith.addf %885, %887 : vector<8x16xf32>
    %889 = tpu.concatenate %221, %659, %753, %847 in 1 : vector<8x16xf32>, vector<8x16xf32>, vector<8x16xf32>, vector<8x16xf32> -> vector<8x64xf32>
    %890 = tpu.concatenate %889, %888 in 1 : vector<8x64xf32>, vector<8x16xf32> -> vector<8x80xf32>
    %c0_577 = arith.constant 0 : index
    %c0_578 = arith.constant 0 : index
    %891 = vector.load %arg10[%c0_577, %c0_578] : memref<64x80xf32, #tpu.memory_space<vmem>>, vector<64x80xf32>
    %cst_579 = arith.constant dense<0.000000e+00> : vector<8x80xf32>
    %892 = tpu.matmul %889, %891, %cst_579 {dimension_numbers = #tpu.dot_dimension_numbers<[1], [0], [0], [1], [0, 0, 1, 1], [], []>} : vector<8x64xf32>, vector<64x80xf32>, vector<8x80xf32> -> vector<8x80xf32>
    %c0_580 = arith.constant 0 : index
    %c0_581 = arith.constant 0 : index
    %893 = vector.load %arg11[%c0_580, %c0_581] : memref<32x80xf32, #tpu.memory_space<vmem>>, vector<32x80xf32>
    %cst_582 = arith.constant dense<0.000000e+00> : vector<8x80xf32>
    %894 = tpu.matmul %883, %893, %cst_582 {dimension_numbers = #tpu.dot_dimension_numbers<[1], [0], [0], [1], [0, 0, 1, 1], [], []>} : vector<8x32xf32>, vector<32x80xf32>, vector<8x80xf32> -> vector<8x80xf32>
    %895 = arith.addf %892, %894 : vector<8x80xf32>
    %c0_583 = arith.constant 0 : index
    %c0_584 = arith.constant 0 : index
    %896 = vector.load %arg12[%c0_583, %c0_584] : memref<1x80xf32, #tpu.memory_space<vmem>>, vector<1x80xf32>
    %897 = vector.broadcast %896 : vector<1x80xf32> to vector<8x80xf32>
    %898 = arith.addf %895, %897 : vector<8x80xf32>
    %899 = arith.mulf %898, %898 : vector<8x80xf32>
    %c0_585 = arith.constant 0 : index
    %c0_586 = arith.constant 0 : index
    %900 = vector.load %arg15[%c0_585, %c0_586] : memref<80x80xf32, #tpu.memory_space<vmem>>, vector<80x80xf32>
    %cst_587 = arith.constant dense<0.000000e+00> : vector<8x80xf32>
    %901 = tpu.matmul %899, %900, %cst_587 {dimension_numbers = #tpu.dot_dimension_numbers<[1], [0], [0], [1], [0, 0, 1, 1], [], []>} : vector<8x80xf32>, vector<80x80xf32>, vector<8x80xf32> -> vector<8x80xf32>
    %cst_588 = arith.constant 9.99999974E-6 : f32
    %902 = vector.broadcast %cst_588 : f32 to vector<8x80xf32>
    %903 = arith.addf %901, %902 : vector<8x80xf32>
    %904 = math.rsqrt %903 : vector<8x80xf32>
    %905 = arith.mulf %898, %904 : vector<8x80xf32>
    %c0_589 = arith.constant 0 : index
    %c0_590 = arith.constant 0 : index
    %c0_591 = arith.constant 0 : index
    %906 = vector.load %arg16[%c0_589, %c0_590, %c0_591] : memref<2x1x80xf32, #tpu.memory_space<vmem>>, vector<1x1x80xf32>
    %907 = vector.shape_cast %906 : vector<1x1x80xf32> to vector<1x80xf32>
    %908 = vector.broadcast %907 : vector<1x80xf32> to vector<8x80xf32>
    %909 = arith.mulf %905, %908 : vector<8x80xf32>
    %c0_592 = arith.constant 0 : index
    %c0_593 = arith.constant 0 : index
    %c0_594 = arith.constant 0 : index
    %910 = vector.load %arg17[%c0_592, %c0_593, %c0_594] : memref<2x1x80xf32, #tpu.memory_space<vmem>>, vector<1x1x80xf32>
    %911 = vector.shape_cast %910 : vector<1x1x80xf32> to vector<1x80xf32>
    %912 = vector.broadcast %911 : vector<1x80xf32> to vector<8x80xf32>
    %913 = arith.addf %909, %912 : vector<8x80xf32>
    %914 = arith.addf %890, %913 : vector<8x80xf32>
    %c0_595 = arith.constant 0 : index
    %c0_596 = arith.constant 0 : index
    %915 = vector.load %arg13[%c0_595, %c0_596] : memref<80x80xf32, #tpu.memory_space<vmem>>, vector<80x80xf32>
    %cst_597 = arith.constant dense<0.000000e+00> : vector<8x80xf32>
    %916 = tpu.matmul %914, %915, %cst_597 {dimension_numbers = #tpu.dot_dimension_numbers<[1], [0], [0], [1], [0, 0, 1, 1], [], []>} : vector<8x80xf32>, vector<80x80xf32>, vector<8x80xf32> -> vector<8x80xf32>
    %c0_598 = arith.constant 0 : index
    %c0_599 = arith.constant 0 : index
    %917 = vector.load %arg14[%c0_598, %c0_599] : memref<1x80xf32, #tpu.memory_space<vmem>>, vector<1x80xf32>
    %918 = vector.broadcast %917 : vector<1x80xf32> to vector<8x80xf32>
    %919 = arith.addf %916, %918 : vector<8x80xf32>
    %920 = arith.mulf %919, %919 : vector<8x80xf32>
    %c0_600 = arith.constant 0 : index
    %c0_601 = arith.constant 0 : index
    %921 = vector.load %arg15[%c0_600, %c0_601] : memref<80x80xf32, #tpu.memory_space<vmem>>, vector<80x80xf32>
    %cst_602 = arith.constant dense<0.000000e+00> : vector<8x80xf32>
    %922 = tpu.matmul %920, %921, %cst_602 {dimension_numbers = #tpu.dot_dimension_numbers<[1], [0], [0], [1], [0, 0, 1, 1], [], []>} : vector<8x80xf32>, vector<80x80xf32>, vector<8x80xf32> -> vector<8x80xf32>
    %cst_603 = arith.constant 9.99999974E-6 : f32
    %923 = vector.broadcast %cst_603 : f32 to vector<8x80xf32>
    %924 = arith.addf %922, %923 : vector<8x80xf32>
    %925 = math.rsqrt %924 : vector<8x80xf32>
    %926 = arith.mulf %919, %925 : vector<8x80xf32>
    %c1_604 = arith.constant 1 : index
    %c0_605 = arith.constant 0 : index
    %c0_606 = arith.constant 0 : index
    %927 = vector.load %arg16[%c1_604, %c0_605, %c0_606] : memref<2x1x80xf32, #tpu.memory_space<vmem>>, vector<1x1x80xf32>
    %928 = vector.shape_cast %927 : vector<1x1x80xf32> to vector<1x80xf32>
    %929 = vector.broadcast %928 : vector<1x80xf32> to vector<8x80xf32>
    %930 = arith.mulf %926, %929 : vector<8x80xf32>
    %c1_607 = arith.constant 1 : index
    %c0_608 = arith.constant 0 : index
    %c0_609 = arith.constant 0 : index
    %931 = vector.load %arg17[%c1_607, %c0_608, %c0_609] : memref<2x1x80xf32, #tpu.memory_space<vmem>>, vector<1x1x80xf32>
    %932 = vector.shape_cast %931 : vector<1x1x80xf32> to vector<1x80xf32>
    %933 = vector.broadcast %932 : vector<1x80xf32> to vector<8x80xf32>
    %934 = arith.addf %930, %933 : vector<8x80xf32>
    %935 = arith.addf %914, %934 : vector<8x80xf32>
    %c0_610 = arith.constant 0 : index
    %c0_611 = arith.constant 0 : index
    %936 = vector.load %arg18[%c0_610, %c0_611] : memref<80x16xf32, #tpu.memory_space<vmem>>, vector<80x16xf32>
    %cst_612 = arith.constant dense<0.000000e+00> : vector<8x16xf32>
    %937 = tpu.matmul %935, %936, %cst_612 {dimension_numbers = #tpu.dot_dimension_numbers<[1], [0], [0], [1], [0, 0, 1, 1], [], []>} : vector<8x80xf32>, vector<80x16xf32>, vector<8x16xf32> -> vector<8x16xf32>
    %c0_613 = arith.constant 0 : index
    %c0_614 = arith.constant 0 : index
    %938 = vector.load %arg19[%c0_613, %c0_614] : memref<1x16xf32, #tpu.memory_space<vmem>>, vector<1x16xf32>
    %939 = vector.broadcast %938 : vector<1x16xf32> to vector<8x16xf32>
    %940 = arith.addf %937, %939 : vector<8x16xf32>
    %941 = arith.addf %940, %847 : vector<8x16xf32>
    %942 = tpu.concatenate %280, %376, %471, %565, %659, %753, %847, %941 in 1 : vector<8x16xf32>, vector<8x16xf32>, vector<8x16xf32>, vector<8x16xf32>, vector<8x16xf32>, vector<8x16xf32>, vector<8x16xf32>, vector<8x16xf32> -> vector<8x128xf32>
    %c0_615 = arith.constant 0 : index
    %c0_616 = arith.constant 0 : index
    %c0_617 = arith.constant 0 : index
    %943 = vector.load %arg24[%c0_615, %c0_616, %c0_617] : memref<1x8x128xf32, #tpu.memory_space<vmem>>, vector<1x8x128xf32>
    %944 = vector.shape_cast %943 : vector<1x8x128xf32> to vector<8x128xf32>
    %945 = vector.shape_cast %942 : vector<8x128xf32> to vector<1x8x128xf32>
    tpu.vector_store %arg24[%c0_615, %c0_616, %c0_617], %945 {strides = array<i32>} : memref<1x8x128xf32, #tpu.memory_space<vmem>>, vector<1x8x128xf32>,
    return
  }
  func.func @transform_0(%arg0: i32) -> (i32, i32, i32) {
    %c0_i32 = arith.constant 0 : i32
    %c0_i32_0 = arith.constant 0 : i32
    %c0_i32_1 = arith.constant 0 : i32
    return %arg0, %c0_i32, %c0_i32_0 : i32, i32, i32
  }
  func.func @transform_1(%arg0: i32) -> (i32, i32) {
    %c0_i32 = arith.constant 0 : i32
    %c0_i32_0 = arith.constant 0 : i32
    %c0_i32_1 = arith.constant 0 : i32
    return %c0_i32, %c0_i32_0 : i32, i32
  }
  func.func @transform_2(%arg0: i32) -> (i32, i32) {
    %c0_i32 = arith.constant 0 : i32
    %c0_i32_0 = arith.constant 0 : i32
    %c0_i32_1 = arith.constant 0 : i32
    return %c0_i32, %c0_i32_0 : i32, i32
  }
  func.func @transform_3(%arg0: i32) -> (i32, i32) {
    %c0_i32 = arith.constant 0 : i32
    %c0_i32_0 = arith.constant 0 : i32
    %c0_i32_1 = arith.constant 0 : i32
    return %c0_i32, %c0_i32_0 : i32, i32
  }
  func.func @transform_4(%arg0: i32) -> (i32, i32) {
    %c0_i32 = arith.constant 0 : i32
    %c0_i32_0 = arith.constant 0 : i32
    %c0_i32_1 = arith.constant 0 : i32
    return %c0_i32, %c0_i32_0 : i32, i32
  }
  func.func @transform_5(%arg0: i32) -> (i32, i32) {
    %c0_i32 = arith.constant 0 : i32
    %c0_i32_0 = arith.constant 0 : i32
    %c0_i32_1 = arith.constant 0 : i32
    return %c0_i32, %c0_i32_0 : i32, i32
  }
  func.func @transform_6(%arg0: i32) -> (i32, i32) {
    %c0_i32 = arith.constant 0 : i32
    %c0_i32_0 = arith.constant 0 : i32
    %c0_i32_1 = arith.constant 0 : i32
    return %c0_i32, %c0_i32_0 : i32, i32
  }
  func.func @transform_7(%arg0: i32) -> (i32, i32) {
    %c0_i32 = arith.constant 0 : i32
    %c0_i32_0 = arith.constant 0 : i32
    %c0_i32_1 = arith.constant 0 : i32
    return %c0_i32, %c0_i32_0 : i32, i32
  }
  func.func @transform_8(%arg0: i32) -> (i32, i32) {
    %c0_i32 = arith.constant 0 : i32
    %c0_i32_0 = arith.constant 0 : i32
    %c0_i32_1 = arith.constant 0 : i32
    return %c0_i32, %c0_i32_0 : i32, i32
  }
  func.func @transform_9(%arg0: i32) -> (i32, i32) {
    %c0_i32 = arith.constant 0 : i32
    %c0_i32_0 = arith.constant 0 : i32
    %c0_i32_1 = arith.constant 0 : i32
    return %c0_i32, %c0_i32_0 : i32, i32
  }
  func.func @transform_10(%arg0: i32) -> (i32, i32) {
    %c0_i32 = arith.constant 0 : i32
    %c0_i32_0 = arith.constant 0 : i32
    %c0_i32_1 = arith.constant 0 : i32
    return %c0_i32, %c0_i32_0 : i32, i32
  }
  func.func @transform_11(%arg0: i32) -> (i32, i32) {
    %c0_i32 = arith.constant 0 : i32
    %c0_i32_0 = arith.constant 0 : i32
    %c0_i32_1 = arith.constant 0 : i32
    return %c0_i32, %c0_i32_0 : i32, i32
  }
  func.func @transform_12(%arg0: i32) -> (i32, i32) {
    %c0_i32 = arith.constant 0 : i32
    %c0_i32_0 = arith.constant 0 : i32
    %c0_i32_1 = arith.constant 0 : i32
    return %c0_i32, %c0_i32_0 : i32, i32
  }
  func.func @transform_13(%arg0: i32) -> (i32, i32) {
    %c0_i32 = arith.constant 0 : i32
    %c0_i32_0 = arith.constant 0 : i32
    %c0_i32_1 = arith.constant 0 : i32
    return %c0_i32, %c0_i32_0 : i32, i32
  }
  func.func @transform_14(%arg0: i32) -> (i32, i32) {
    %c0_i32 = arith.constant 0 : i32
    %c0_i32_0 = arith.constant 0 : i32
    %c0_i32_1 = arith.constant 0 : i32
    return %c0_i32, %c0_i32_0 : i32, i32
  }
  func.func @transform_15(%arg0: i32) -> (i32, i32, i32) {
    %c0_i32 = arith.constant 0 : i32
    %c0_i32_0 = arith.constant 0 : i32
    %c0_i32_1 = arith.constant 0 : i32
    %c0_i32_2 = arith.constant 0 : i32
    return %c0_i32, %c0_i32_0, %c0_i32_1 : i32, i32, i32
  }
  func.func @transform_16(%arg0: i32) -> (i32, i32, i32) {
    %c0_i32 = arith.constant 0 : i32
    %c0_i32_0 = arith.constant 0 : i32
    %c0_i32_1 = arith.constant 0 : i32
    %c0_i32_2 = arith.constant 0 : i32
    return %c0_i32, %c0_i32_0, %c0_i32_1 : i32, i32, i32
  }
  func.func @transform_17(%arg0: i32) -> (i32, i32) {
    %c0_i32 = arith.constant 0 : i32
    %c0_i32_0 = arith.constant 0 : i32
    %c0_i32_1 = arith.constant 0 : i32
    return %c0_i32, %c0_i32_0 : i32, i32
  }
  func.func @transform_18(%arg0: i32) -> (i32, i32) {
    %c0_i32 = arith.constant 0 : i32
    %c0_i32_0 = arith.constant 0 : i32
    %c0_i32_1 = arith.constant 0 : i32
    return %c0_i32, %c0_i32_0 : i32, i32
  }
  func.func @transform_19(%arg0: i32) -> (i32, i32) {
    %c0_i32 = arith.constant 0 : i32
    %c0_i32_0 = arith.constant 0 : i32
    %c0_i32_1 = arith.constant 0 : i32
    return %c0_i32, %c0_i32_0 : i32, i32
  }
  func.func @transform_20(%arg0: i32) -> (i32, i32) {
    %c0_i32 = arith.constant 0 : i32
    %c0_i32_0 = arith.constant 0 : i32
    %c0_i32_1 = arith.constant 0 : i32
    return %c0_i32, %c0_i32_0 : i32, i32
  }
  func.func @transform_21(%arg0: i32) -> (i32, i32) {
    %c0_i32 = arith.constant 0 : i32
    %c0_i32_0 = arith.constant 0 : i32
    %c0_i32_1 = arith.constant 0 : i32
    return %c0_i32, %c0_i32_0 : i32, i32
  }
  func.func @transform_22(%arg0: i32) -> (i32, i32) {
    %c0_i32 = arith.constant 0 : i32
    %c0_i32_0 = arith.constant 0 : i32
    %c0_i32_1 = arith.constant 0 : i32
    return %c0_i32, %c0_i32_0 : i32, i32
  }
  func.func @transform_23(%arg0: i32) -> (i32, i32, i32) {
    %c0_i32 = arith.constant 0 : i32
    %c0_i32_0 = arith.constant 0 : i32
    %c0_i32_1 = arith.constant 0 : i32
    return %arg0, %c0_i32, %c0_i32_0 : i32, i32, i32
  }
}

</mosaic_0001>

<llo_original>
// kernel: tpu_custom_call.1
$region0: #{tpu_custom_call.1}
  #allocation0 [shape = 'u32[]', space=smem, size = 0x4, offset = 0x4, fixed_abs, tag = 'smem constant byte address 0x4 - core index']
  #allocation1 [shape = 'u32[72,128]{1,0:T(1,128)}', space=vmem, size = 0x9000, scoped, tag = 'internal scratch']
  #allocation2 [shape = 'f32[64,96]{1,0:T(8,128)}', space=vmem, size = 0x8000, scoped, tag = 'scratch operand']
  %s0 = inlined_call_operand.vmem [shape: f32[1,64,16], index: 0, kind: input, shape index: {}]
  %s1 = inlined_call_operand.vmem [shape: f32[16,96], index: 1, kind: input, shape index: {}]
  %s2 = inlined_call_operand.vmem [shape: f32[1,96], index: 2, kind: input, shape index: {}]
  %s3 = inlined_call_operand.vmem [shape: f32[32,64], index: 3, kind: input, shape index: {}]
  %s4 = inlined_call_operand.vmem [shape: f32[32,32], index: 4, kind: input, shape index: {}]
  %s5 = inlined_call_operand.vmem [shape: f32[1,64], index: 5, kind: input, shape index: {}]
  %s6 = inlined_call_operand.vmem [shape: f32[1,32], index: 6, kind: input, shape index: {}]
  %s7 = inlined_call_operand.vmem [shape: f32[32,16], index: 7, kind: input, shape index: {}]
  %s8 = inlined_call_operand.vmem [shape: f32[1,16], index: 8, kind: input, shape index: {}]
  %s9 = inlined_call_operand.vmem [shape: f32[64,80], index: 9, kind: input, shape index: {}]
  %s10 = inlined_call_operand.vmem [shape: f32[32,80], index: 10, kind: input, shape index: {}]
  %s11 = inlined_call_operand.vmem [shape: f32[1,80], index: 11, kind: input, shape index: {}]
  %s12 = inlined_call_operand.vmem [shape: f32[80,80], index: 12, kind: input, shape index: {}]
  %s13 = inlined_call_operand.vmem [shape: f32[1,80], index: 13, kind: input, shape index: {}]
  %s14 = inlined_call_operand.vmem [shape: f32[80,80], index: 14, kind: input, shape index: {}]
  %s15 = inlined_call_operand.vmem [shape: f32[2,1,80], index: 15, kind: input, shape index: {}]
  %s16 = inlined_call_operand.vmem [shape: f32[2,1,80], index: 16, kind: input, shape index: {}]
  %s17 = inlined_call_operand.vmem [shape: f32[80,16], index: 17, kind: input, shape index: {}]
  %s18 = inlined_call_operand.vmem [shape: f32[1,16], index: 18, kind: input, shape index: {}]
  %s19 = inlined_call_operand.vmem [shape: f32[80,64], index: 19, kind: input, shape index: {}]
  %s20 = inlined_call_operand.vmem [shape: f32[80,32], index: 20, kind: input, shape index: {}]
  %s21 = inlined_call_operand.vmem [shape: f32[1,64], index: 21, kind: input, shape index: {}]
  %s22 = inlined_call_operand.vmem [shape: f32[1,32], index: 22, kind: input, shape index: {}]
  %s23 = inlined_call_operand.hbm [shape: f32[1,8,128], index: 23, kind: output, shape index: {}]
  %s24 = sld [smem:[#allocation0]]
  $region102: #{tpu_custom_call.1} parent=0
    _
  %s26 = ssub.s32 1, %s24
  %s27 = scalar_select 0, %s26, %s24
  $region1: #{tpu_custom_call.1} parent=0
    #allocation3 [shape = 'u8[4096]{0}', space=vmem, size = 0x1000, scoped, tag = 'output window, operand 0, single buffered']
    #allocation4 [shape = 's32[1]{0}', space=sflag, size = 0x4, scoped, tag = 'scoped memory for tpu_custom_call.1']
    %28 = vsyncpa [#allocation4], 0
    // Predicated region
    $region2: #{tpu_custom_call.1} parent=1 // pred_check
      _
    $region3: #{tpu_custom_call.1} parent=1 // pred_check_branch
      %30 = sbr.rel (0) target = $region5
    $region4: #{tpu_custom_call.1} parent=1 // pred_region
      _
    $region5: #{tpu_custom_call.1} parent=1 // pred_fallthru
      _
    // Predicated region
    $region6: #{tpu_custom_call.1} parent=1 // pred_check
      _
    $region7: #{tpu_custom_call.1} parent=1 // pred_check_branch
      %32 = sbr.rel (0) target = $region9
    $region8: #{tpu_custom_call.1} parent=1 // pred_region
      _
    $region9: #{tpu_custom_call.1} parent=1 // pred_fallthru
      _
    // Predicated region
    $region10: #{tpu_custom_call.1} parent=1 // pred_check
      _
    $region11: #{tpu_custom_call.1} parent=1 // pred_check_branch
      %34 = sbr.rel (0) target = $region13
    $region12: #{tpu_custom_call.1} parent=1 // pred_region
      _
    $region13: #{tpu_custom_call.1} parent=1 // pred_fallthru
      _
    // Predicated region
    $region14: #{tpu_custom_call.1} parent=1 // pred_check
      _
    $region15: #{tpu_custom_call.1} parent=1 // pred_check_branch
      %36 = sbr.rel (0) target = $region17
    $region16: #{tpu_custom_call.1} parent=1 // pred_region
      _
    $region17: #{tpu_custom_call.1} parent=1 // pred_fallthru
      _
    // Predicated region
    $region18: #{tpu_custom_call.1} parent=1 // pred_check
      _
    $region19: #{tpu_custom_call.1} parent=1 // pred_check_branch
      %38 = sbr.rel (0) target = $region21
    $region20: #{tpu_custom_call.1} parent=1 // pred_region
      _
    $region21: #{tpu_custom_call.1} parent=1 // pred_fallthru
      _
    // Predicated region
    $region22: #{tpu_custom_call.1} parent=1 // pred_check
      _
    $region23: #{tpu_custom_call.1} parent=1 // pred_check_branch
      %40 = sbr.rel (0) target = $region25
    $region24: #{tpu_custom_call.1} parent=1 // pred_region
      _
    $region25: #{tpu_custom_call.1} parent=1 // pred_fallthru
      _
    // Predicated region
    $region26: #{tpu_custom_call.1} parent=1 // pred_check
      _
    $region27: #{tpu_custom_call.1} parent=1 // pred_check_branch
      %42 = sbr.rel (0) target = $region29
    $region28: #{tpu_custom_call.1} parent=1 // pred_region
      _
    $region29: #{tpu_custom_call.1} parent=1 // pred_fallthru
      _
    // Predicated region
    $region30: #{tpu_custom_call.1} parent=1 // pred_check
      _
    $region31: #{tpu_custom_call.1} parent=1 // pred_check_branch
      %44 = sbr.rel (0) target = $region33
    $region32: #{tpu_custom_call.1} parent=1 // pred_region
      _
    $region33: #{tpu_custom_call.1} parent=1 // pred_fallthru
      _
    // Predicated region
    $region34: #{tpu_custom_call.1} parent=1 // pred_check
      _
    $region35: #{tpu_custom_call.1} parent=1 // pred_check_branch
      %46 = sbr.rel (0) target = $region37
    $region36: #{tpu_custom_call.1} parent=1 // pred_region
      _
    $region37: #{tpu_custom_call.1} parent=1 // pred_fallthru
      _
    // Predicated region
    $region38: #{tpu_custom_call.1} parent=1 // pred_check
      _
    $region39: #{tpu_custom_call.1} parent=1 // pred_check_branch
      %48 = sbr.rel (0) target = $region41
    $region40: #{tpu_custom_call.1} parent=1 // pred_region
      _
    $region41: #{tpu_custom_call.1} parent=1 // pred_fallthru
      _
    // Predicated region
    $region42: #{tpu_custom_call.1} parent=1 // pred_check
      _
    $region43: #{tpu_custom_call.1} parent=1 // pred_check_branch
      %50 = sbr.rel (0) target = $region45
    $region44: #{tpu_custom_call.1} parent=1 // pred_region
      _
    $region45: #{tpu_custom_call.1} parent=1 // pred_fallthru
      _
    // Predicated region
    $region46: #{tpu_custom_call.1} parent=1 // pred_check
      _
    $region47: #{tpu_custom_call.1} parent=1 // pred_check_branch
      %52 = sbr.rel (0) target = $region49
    $region48: #{tpu_custom_call.1} parent=1 // pred_region
      _
    $region49: #{tpu_custom_call.1} parent=1 // pred_fallthru
      _
    // Predicated region
    $region50: #{tpu_custom_call.1} parent=1 // pred_check
      _
    $region51: #{tpu_custom_call.1} parent=1 // pred_check_branch
      %54 = sbr.rel (0) target = $region53
    $region52: #{tpu_custom_call.1} parent=1 // pred_region
      _
    $region53: #{tpu_custom_call.1} parent=1 // pred_fallthru
      _
    // Predicated region
    $region54: #{tpu_custom_call.1} parent=1 // pred_check
      _
    $region55: #{tpu_custom_call.1} parent=1 // pred_check_branch
      %56 = sbr.rel (0) target = $region57
    $region56: #{tpu_custom_call.1} parent=1 // pred_region
      _
    $region57: #{tpu_custom_call.1} parent=1 // pred_fallthru
      _
    // Predicated region
    $region58: #{tpu_custom_call.1} parent=1 // pred_check
      _
    $region59: #{tpu_custom_call.1} parent=1 // pred_check_branch
      %58 = sbr.rel (0) target = $region61
    $region60: #{tpu_custom_call.1} parent=1 // pred_region
      _
    $region61: #{tpu_custom_call.1} parent=1 // pred_fallthru
      _
    // Predicated region
    $region62: #{tpu_custom_call.1} parent=1 // pred_check
      _
    $region63: #{tpu_custom_call.1} parent=1 // pred_check_branch
      %60 = sbr.rel (0) target = $region65
    $region64: #{tpu_custom_call.1} parent=1 // pred_region
      _
    $region65: #{tpu_custom_call.1} parent=1 // pred_fallthru
      _
    // Predicated region
    $region66: #{tpu_custom_call.1} parent=1 // pred_check
      _
    $region67: #{tpu_custom_call.1} parent=1 // pred_check_branch
      %62 = sbr.rel (0) target = $region69
    $region68: #{tpu_custom_call.1} parent=1 // pred_region
      _
    $region69: #{tpu_custom_call.1} parent=1 // pred_fallthru
      _
    // Predicated region
    $region70: #{tpu_custom_call.1} parent=1 // pred_check
      _
    $region71: #{tpu_custom_call.1} parent=1 // pred_check_branch
      %64 = sbr.rel (0) target = $region73
    $region72: #{tpu_custom_call.1} parent=1 // pred_region
      _
    $region73: #{tpu_custom_call.1} parent=1 // pred_fallthru
      _
    // Predicated region
    $region74: #{tpu_custom_call.1} parent=1 // pred_check
      _
    $region75: #{tpu_custom_call.1} parent=1 // pred_check_branch
      %66 = sbr.rel (0) target = $region77
    $region76: #{tpu_custom_call.1} parent=1 // pred_region
      _
    $region77: #{tpu_custom_call.1} parent=1 // pred_fallthru
      _
    // Predicated region
    $region78: #{tpu_custom_call.1} parent=1 // pred_check
      _
    $region79: #{tpu_custom_call.1} parent=1 // pred_check_branch
      %68 = sbr.rel (0) target = $region81
    $region80: #{tpu_custom_call.1} parent=1 // pred_region
      _
    $region81: #{tpu_custom_call.1} parent=1 // pred_fallthru
      _
    // Predicated region
    $region82: #{tpu_custom_call.1} parent=1 // pred_check
      _
    $region83: #{tpu_custom_call.1} parent=1 // pred_check_branch
      %70 = sbr.rel (0) target = $region85
    $region84: #{tpu_custom_call.1} parent=1 // pred_region
      _
    $region85: #{tpu_custom_call.1} parent=1 // pred_fallthru
      _
    // Predicated region
    $region86: #{tpu_custom_call.1} parent=1 // pred_check
      _
    $region87: #{tpu_custom_call.1} parent=1 // pred_check_branch
      %72 = sbr.rel (0) target = $region89
    $region88: #{tpu_custom_call.1} parent=1 // pred_region
      _
    $region89: #{tpu_custom_call.1} parent=1 // pred_fallthru
      _
    // Predicated region
    $region90: #{tpu_custom_call.1} parent=1 // pred_check
      _
    $region91: #{tpu_custom_call.1} parent=1 // pred_check_branch
      %74 = sbr.rel (0) target = $region93
    $region92: #{tpu_custom_call.1} parent=1 // pred_region
      _
    $region93: #{tpu_custom_call.1} parent=1 // pred_fallthru
      _
    %v75 = vld [vmem:[%s0] sm:$0xff]
    %v76 = vld [vmem:[%s0 + $0x8] sm:$0xff]
    %v77 = vld [vmem:[%s0 + $0x10] sm:$0xff]
    %v78 = vld [vmem:[%s0 + $0x18] sm:$0xff]
    %v79 = vld [vmem:[%s0 + $0x20] sm:$0xff]
    %v80 = vld [vmem:[%s0 + $0x28] sm:$0xff]
    %v81 = vld [vmem:[%s0 + $0x30] sm:$0xff]
    %v82 = vld [vmem:[%s0 + $0x38] sm:$0xff]
    %v83 = vld [vmem:[%s1] sm:$0xff]
    %v84 = vld [vmem:[%s1 + $0x8] sm:$0xff]
    %v85 = vld [vmem:[%s2] sm:$0x1]
    %v87 = vperm.slane %v85, 0
    %vm89 = vcmask 130048
    %v91 = vsel %vm89, %v75, 0
    %v94 = vsel %vm89, %v76, 0
    %v97 = vsel %vm89, %v77, 0
    %v100 = vsel %vm89, %v78, 0
    %v103 = vsel %vm89, %v79, 0
    %v106 = vsel %vm89, %v80, 0
    %v109 = vsel %vm89, %v81, 0
    %v112 = vsel %vm89, %v82, 0
    %114 = vmatpush.msra.mxu0 0.0
    %115 = vmatpush.msra.mxu0 0.0
    %116 = vmatpush.msra.mxu0 0.0
    %117 = vmatpush.msra.mxu0 0.0
    %118 = vmatpush.msra.mxu0 0.0
    %119 = vmatpush.msra.mxu0 0.0
    %120 = vmatpush.msra.mxu0 0.0
    %121 = vmatpush.msra.mxu0 0.0
    %122 = vmatpush.msra.mxu0 0.0
    %123 = vmatpush.msra.mxu0 0.0
    %124 = vmatpush.msra.mxu0 0.0
    %125 = vmatpush.msra.mxu0 0.0
    %126 = vmatpush.msra.mxu0 0.0
    %127 = vmatpush.msra.mxu0 0.0
    %128 = vmatpush.msra.mxu0 %v84
    %129 = vmatpush.msra.mxu0 %v83
    %130 = vmatmul.f32.gmra.mxu0 %v91
    %v131 = vpop.f32.mrf.mxu0
    %v132 = vadd.f32 %v87, %v131
    %133 = vmatmul.f32.gmra.mxu0 %v94
    %v134 = vpop.f32.mrf.mxu0
    %v135 = vadd.f32 %v87, %v134
    %136 = vmatmul.f32.gmra.mxu0 %v97
    %v137 = vpop.f32.mrf.mxu0
    %v138 = vadd.f32 %v87, %v137
    %139 = vmatmul.f32.gmra.mxu0 %v100
    %v140 = vpop.f32.mrf.mxu0
    %v141 = vadd.f32 %v87, %v140
    %142 = vmatmul.f32.gmra.mxu0 %v103
    %v143 = vpop.f32.mrf.mxu0
    %v144 = vadd.f32 %v87, %v143
    %145 = vmatmul.f32.gmra.mxu0 %v106
    %v146 = vpop.f32.mrf.mxu0
    %v147 = vadd.f32 %v87, %v146
    %148 = vmatmul.f32.gmra.mxu0 %v109
    %v149 = vpop.f32.mrf.mxu0
    %v150 = vadd.f32 %v87, %v149
    %151 = vmatmul.f32.gmra.mxu0 %v112
    %v152 = vpop.f32.mrf.mxu0
    %v153 = vadd.f32 %v87, %v152
    %154 = vdwg.mxu0
    %vm155 = vcmask 785408
    %156 = vst.msk [vmem:[#allocation2] sm:$0xff] %vm155, %v132
    %157 = vst.msk [vmem:[#allocation2 + $0x8] sm:$0xff] %vm155, %v135
    %158 = vst.msk [vmem:[#allocation2 + $0x10] sm:$0xff] %vm155, %v138
    %159 = vst.msk [vmem:[#allocation2 + $0x18] sm:$0xff] %vm155, %v141
    %160 = vst.msk [vmem:[#allocation2 + $0x20] sm:$0xff] %vm155, %v144
    %161 = vst.msk [vmem:[#allocation2 + $0x28] sm:$0xff] %vm155, %v147
    %162 = vst.msk [vmem:[#allocation2 + $0x30] sm:$0xff] %vm155, %v150
    %163 = vst.msk [vmem:[#allocation2 + $0x38] sm:$0xff] %vm155, %v153
    %v164 = vld [vmem:[#allocation2] sm:$0xff]
    %v165 = vld [vmem:[%s3] sm:$0xff]
    %v166 = vld [vmem:[%s3 + $0x8] sm:$0xff]
    %v167 = vld [vmem:[%s3 + $0x10] sm:$0xff]
    %v168 = vld [vmem:[%s3 + $0x18] sm:$0xff]
    %v169 = vld [vmem:[%s5] sm:$0x1]
    %v171 = vperm.slane %v169, 0
    %vm173 = vcmask 261120
    %v175 = vsel %vm173, 0.0, 0
    %177 = vmatpush.msra.mxu0 0.0
    %178 = vmatpush.msra.mxu0 0.0
    %179 = vmatpush.msra.mxu0 0.0
    %180 = vmatpush.msra.mxu0 0.0
    %181 = vmatpush.msra.mxu0 0.0
    %182 = vmatpush.msra.mxu0 0.0
    %183 = vmatpush.msra.mxu0 0.0
    %184 = vmatpush.msra.mxu0 0.0
    %185 = vmatpush.msra.mxu0 0.0
    %186 = vmatpush.msra.mxu0 0.0
    %187 = vmatpush.msra.mxu0 0.0
    %188 = vmatpush.msra.mxu0 0.0
    %189 = vmatpush.msra.mxu0 %v168
    %190 = vmatpush.msra.mxu0 %v167
    %191 = vmatpush.msra.mxu0 %v166
    %192 = vmatpush.msra.mxu0 %v165
    %193 = vmatmul.f32.gmra.mxu0 %v175
    %v194 = vpop.f32.mrf.mxu0
    %v195 = vadd.f32 %v171, %v194
    %196 = vdwg.mxu0
    %v197 = vld [vmem:[%s4] sm:$0xff]
    %v198 = vld [vmem:[%s4 + $0x8] sm:$0xff]
    %v199 = vld [vmem:[%s4 + $0x10] sm:$0xff]
    %v200 = vld [vmem:[%s4 + $0x18] sm:$0xff]
    %v201 = vld [vmem:[%s6] sm:$0x1]
    %v203 = vperm.slane %v201, 0
    %205 = vmatpush.msra.mxu0 0.0
    %206 = vmatpush.msra.mxu0 0.0
    %207 = vmatpush.msra.mxu0 0.0
    %208 = vmatpush.msra.mxu0 0.0
    %209 = vmatpush.msra.mxu0 0.0
    %210 = vmatpush.msra.mxu0 0.0
    %211 = vmatpush.msra.mxu0 0.0
    %212 = vmatpush.msra.mxu0 0.0
    %213 = vmatpush.msra.mxu0 0.0
    %214 = vmatpush.msra.mxu0 0.0
    %215 = vmatpush.msra.mxu0 0.0
    %216 = vmatpush.msra.mxu0 0.0
    %217 = vmatpush.msra.mxu0 %v200
    %218 = vmatpush.msra.mxu0 %v199
    %219 = vmatpush.msra.mxu0 %v198
    %220 = vmatpush.msra.mxu0 %v197
    %221 = vmatmul.f32.gmra.mxu0 %v175
    %v222 = vpop.f32.mrf.mxu0
    %v223 = vadd.f32 %v203, %v222
    %224 = vdwg.mxu0
    %v225 = vadd.f32 %v164, %v195
    %v226 = vxor.u32 %v225, 2147483648
    %v227 = vmul.f32 %v226, 1.442695
    %v228 = vpow.pop %v227
    %v229 = vadd.f32 %v228, 1.0
    %v230 = vrcp.pop %v229
    %v231 = vmul.f32 %v229, %v230
    %v232 = vsub.f32 1.0, %v231
    %v233 = vmul.f32 %v230, %v232
    %v234 = vadd.f32 %v230, %v233
    %vm235 = vweird.f32 %v229
    %vm236 = vweird.f32 %v230
    %vm237 = vmor %vm235, %vm236
    %v238 = vsel %vm237, %v230, %v234
    %v239 = vand.u32 2147483647, %v229
    %vm240 = vcmp.eq.f32.partialorder %v239, 8.507059e+37
    %v241 = vand.u32 %v229, 2147483648
    %v242 = vor.u32 1.1754944e-38, %v241
    %v243 = vsel %vm240, %v242, %v238
    %v244 = vmul.f32 1.0, %v243
    %v245 = vmul.f32 %v244, %v223
    %247 = vrot.lane.b32.xlu0 %v245, 64
    %v248 = vpop.permute.xlu0 %247
    %v250 = vadd.f32 %v164, %v248
    %v251 = vtanh.pop %v250
    %v252 = vsub.f32 0.0, %v251
    %254 = vrot.lane.b32.xlu0 %v252, 96
    %v255 = vpop.permute.xlu0 %254
    %v257 = vmul.f32 %v244, %v255
    %259 = vrot.lane.b32.xlu0 %v257, 32
    %v260 = vpop.permute.xlu0 %259
    %v262 = vadd.f32 %v251, %v260
    %v263 = vld [vmem:[#allocation2 + $0x8] sm:$0xff]
    %265 = vrot.lane.b32.xlu0 %v262, 64
    %v266 = vpop.permute.xlu0 %265
    %v267 = vsel %vm173, %v266, 0
    %269 = vmatpush.msra.mxu0 0.0
    %270 = vmatpush.msra.mxu0 0.0
    %271 = vmatpush.msra.mxu0 0.0
    %272 = vmatpush.msra.mxu0 0.0
    %273 = vmatpush.msra.mxu0 0.0
    %274 = vmatpush.msra.mxu0 0.0
    %275 = vmatpush.msra.mxu0 0.0
    %276 = vmatpush.msra.mxu0 0.0
    %277 = vmatpush.msra.mxu0 0.0
    %278 = vmatpush.msra.mxu0 0.0
    %279 = vmatpush.msra.mxu0 0.0
    %280 = vmatpush.msra.mxu0 0.0
    %281 = vmatpush.msra.mxu0 %v168
    %282 = vmatpush.msra.mxu0 %v167
    %283 = vmatpush.msra.mxu0 %v166
    %284 = vmatpush.msra.mxu0 %v165
    %285 = vmatmul.f32.gmra.mxu0 %v267
    %v286 = vpop.f32.mrf.mxu0
    %v287 = vadd.f32 %v171, %v286
    %288 = vdwg.mxu0
    %289 = vmatpush.msra.mxu0 0.0
    %290 = vmatpush.msra.mxu0 0.0
    %291 = vmatpush.msra.mxu0 0.0
    %292 = vmatpush.msra.mxu0 0.0
    %293 = vmatpush.msra.mxu0 0.0
    %294 = vmatpush.msra.mxu0 0.0
    %295 = vmatpush.msra.mxu0 0.0
    %296 = vmatpush.msra.mxu0 0.0
    %297 = vmatpush.msra.mxu0 0.0
    %298 = vmatpush.msra.mxu0 0.0
    %299 = vmatpush.msra.mxu0 0.0
    %300 = vmatpush.msra.mxu0 0.0
    %301 = vmatpush.msra.mxu0 %v200
    %302 = vmatpush.msra.mxu0 %v199
    %303 = vmatpush.msra.mxu0 %v198
    %304 = vmatpush.msra.mxu0 %v197
    %305 = vmatmul.f32.gmra.mxu0 %v267
    %v306 = vpop.f32.mrf.mxu0
    %v307 = vadd.f32 %v203, %v306
    %308 = vdwg.mxu0
    %v309 = vadd.f32 %v263, %v287
    %v310 = vxor.u32 %v309, 2147483648
    %v311 = vmul.f32 %v310, 1.442695
    %v312 = vpow.pop %v311
    %v313 = vadd.f32 %v312, 1.0
    %v314 = vrcp.pop %v313
    %v315 = vmul.f32 %v313, %v314
    %v316 = vsub.f32 1.0, %v315
    %v317 = vmul.f32 %v314, %v316
    %v318 = vadd.f32 %v314, %v317
    %vm319 = vweird.f32 %v313
    %vm320 = vweird.f32 %v314
    %vm321 = vmor %vm319, %vm320
    %v322 = vsel %vm321, %v314, %v318
    %v323 = vand.u32 2147483647, %v313
    %vm324 = vcmp.eq.f32.partialorder %v323, 8.507059e+37
    %v325 = vand.u32 %v313, 2147483648
    %v326 = vor.u32 1.1754944e-38, %v325
    %v327 = vsel %vm324, %v326, %v322
    %v328 = vmul.f32 1.0, %v327
    %v329 = vmul.f32 %v328, %v307
    %331 = vrot.lane.b32.xlu0 %v329, 64
    %v332 = vpop.permute.xlu0 %331
    %v334 = vadd.f32 %v263, %v332
    %v335 = vtanh.pop %v334
    %v336 = vsub.f32 %v262, %v335
    %338 = vrot.lane.b32.xlu0 %v336, 96
    %v339 = vpop.permute.xlu0 %338
    %v341 = vmul.f32 %v328, %v339
    %343 = vrot.lane.b32.xlu0 %v341, 32
    %v344 = vpop.permute.xlu0 %343
    %v346 = vadd.f32 %v335, %v344
    %v347 = vld [vmem:[#allocation2 + $0x10] sm:$0xff]
    %349 = vrot.lane.b32.xlu0 %v346, 64
    %v350 = vpop.permute.xlu0 %349
    %v351 = vsel %vm173, %v350, 0
    %353 = vmatpush.msra.mxu0 0.0
    %354 = vmatpush.msra.mxu0 0.0
    %355 = vmatpush.msra.mxu0 0.0
    %356 = vmatpush.msra.mxu0 0.0
    %357 = vmatpush.msra.mxu0 0.0
    %358 = vmatpush.msra.mxu0 0.0
    %359 = vmatpush.msra.mxu0 0.0
    %360 = vmatpush.msra.mxu0 0.0
    %361 = vmatpush.msra.mxu0 0.0
    %362 = vmatpush.msra.mxu0 0.0
    %363 = vmatpush.msra.mxu0 0.0
    %364 = vmatpush.msra.mxu0 0.0
    %365 = vmatpush.msra.mxu0 %v168
    %366 = vmatpush.msra.mxu0 %v167
    %367 = vmatpush.msra.mxu0 %v166
    %368 = vmatpush.msra.mxu0 %v165
    %369 = vmatmul.f32.gmra.mxu0 %v351
    %v370 = vpop.f32.mrf.mxu0
    %v371 = vadd.f32 %v171, %v370
    %372 = vdwg.mxu0
    %373 = vmatpush.msra.mxu0 0.0
    %374 = vmatpush.msra.mxu0 0.0
    %375 = vmatpush.msra.mxu0 0.0
    %376 = vmatpush.msra.mxu0 0.0
    %377 = vmatpush.msra.mxu0 0.0
    %378 = vmatpush.msra.mxu0 0.0
    %379 = vmatpush.msra.mxu0 0.0
    %380 = vmatpush.msra.mxu0 0.0
    %381 = vmatpush.msra.mxu0 0.0
    %382 = vmatpush.msra.mxu0 0.0
    %383 = vmatpush.msra.mxu0 0.0
    %384 = vmatpush.msra.mxu0 0.0
    %385 = vmatpush.msra.mxu0 %v200
    %386 = vmatpush.msra.mxu0 %v199
    %387 = vmatpush.msra.mxu0 %v198
    %388 = vmatpush.msra.mxu0 %v197
    %389 = vmatmul.f32.gmra.mxu0 %v351
    %v390 = vpop.f32.mrf.mxu0
    %v391 = vadd.f32 %v203, %v390
    %392 = vdwg.mxu0
    %v393 = vadd.f32 %v347, %v371
    %v394 = vxor.u32 %v393, 2147483648
    %v395 = vmul.f32 %v394, 1.442695
    %v396 = vpow.pop %v395
    %v397 = vadd.f32 %v396, 1.0
    %v398 = vrcp.pop %v397
    %v399 = vmul.f32 %v397, %v398
    %v400 = vsub.f32 1.0, %v399
    %v401 = vmul.f32 %v398, %v400
    %v402 = vadd.f32 %v398, %v401
    %vm403 = vweird.f32 %v397
    %vm404 = vweird.f32 %v398
    %vm405 = vmor %vm403, %vm404
    %v406 = vsel %vm405, %v398, %v402
    %v407 = vand.u32 2147483647, %v397
    %vm408 = vcmp.eq.f32.partialorder %v407, 8.507059e+37
    %v409 = vand.u32 %v397, 2147483648
    %v410 = vor.u32 1.1754944e-38, %v409
    %v411 = vsel %vm408, %v410, %v406
    %v412 = vmul.f32 1.0, %v411
    %v413 = vmul.f32 %v412, %v391
    %415 = vrot.lane.b32.xlu0 %v413, 64
    %v416 = vpop.permute.xlu0 %415
    %v418 = vadd.f32 %v347, %v416
    %v419 = vtanh.pop %v418
    %v420 = vsub.f32 %v346, %v419
    %422 = vrot.lane.b32.xlu0 %v420, 96
    %v423 = vpop.permute.xlu0 %422
    %v425 = vmul.f32 %v412, %v423
    %427 = vrot.lane.b32.xlu0 %v425, 32
    %v428 = vpop.permute.xlu0 %427
    %v430 = vadd.f32 %v419, %v428
    %v431 = vld [vmem:[#allocation2 + $0x18] sm:$0xff]
    %433 = vrot.lane.b32.xlu0 %v430, 64
    %v434 = vpop.permute.xlu0 %433
    %v435 = vsel %vm173, %v434, 0
    %437 = vmatpush.msra.mxu0 0.0
    %438 = vmatpush.msra.mxu0 0.0
    %439 = vmatpush.msra.mxu0 0.0
    %440 = vmatpush.msra.mxu0 0.0
    %441 = vmatpush.msra.mxu0 0.0
    %442 = vmatpush.msra.mxu0 0.0
    %443 = vmatpush.msra.mxu0 0.0
    %444 = vmatpush.msra.mxu0 0.0
    %445 = vmatpush.msra.mxu0 0.0
    %446 = vmatpush.msra.mxu0 0.0
    %447 = vmatpush.msra.mxu0 0.0
    %448 = vmatpush.msra.mxu0 0.0
    %449 = vmatpush.msra.mxu0 %v168
    %450 = vmatpush.msra.mxu0 %v167
    %451 = vmatpush.msra.mxu0 %v166
    %452 = vmatpush.msra.mxu0 %v165
    %453 = vmatmul.f32.gmra.mxu0 %v435
    %v454 = vpop.f32.mrf.mxu0
    %v455 = vadd.f32 %v171, %v454
    %456 = vdwg.mxu0
    %457 = vmatpush.msra.mxu0 0.0
    %458 = vmatpush.msra.mxu0 0.0
    %459 = vmatpush.msra.mxu0 0.0
    %460 = vmatpush.msra.mxu0 0.0
    %461 = vmatpush.msra.mxu0 0.0
    %462 = vmatpush.msra.mxu0 0.0
    %463 = vmatpush.msra.mxu0 0.0
    %464 = vmatpush.msra.mxu0 0.0
    %465 = vmatpush.msra.mxu0 0.0
    %466 = vmatpush.msra.mxu0 0.0
    %467 = vmatpush.msra.mxu0 0.0
    %468 = vmatpush.msra.mxu0 0.0
    %469 = vmatpush.msra.mxu0 %v200
    %470 = vmatpush.msra.mxu0 %v199
    %471 = vmatpush.msra.mxu0 %v198
    %472 = vmatpush.msra.mxu0 %v197
    %473 = vmatmul.f32.gmra.mxu0 %v435
    %v474 = vpop.f32.mrf.mxu0
    %v475 = vadd.f32 %v203, %v474
    %476 = vdwg.mxu0
    %v477 = vadd.f32 %v431, %v455
    %v478 = vxor.u32 %v477, 2147483648
    %v479 = vmul.f32 %v478, 1.442695
    %v480 = vpow.pop %v479
    %v481 = vadd.f32 %v480, 1.0
    %v482 = vrcp.pop %v481
    %v483 = vmul.f32 %v481, %v482
    %v484 = vsub.f32 1.0, %v483
    %v485 = vmul.f32 %v482, %v484
    %v486 = vadd.f32 %v482, %v485
    %vm487 = vweird.f32 %v481
    %vm488 = vweird.f32 %v482
    %vm489 = vmor %vm487, %vm488
    %v490 = vsel %vm489, %v482, %v486
    %v491 = vand.u32 2147483647, %v481
    %vm492 = vcmp.eq.f32.partialorder %v491, 8.507059e+37
    %v493 = vand.u32 %v481, 2147483648
    %v494 = vor.u32 1.1754944e-38, %v493
    %v495 = vsel %vm492, %v494, %v490
    %v496 = vmul.f32 1.0, %v495
    %v497 = vmul.f32 %v496, %v475
    %499 = vrot.lane.b32.xlu0 %v497, 64
    %v500 = vpop.permute.xlu0 %499
    %v502 = vadd.f32 %v431, %v500
    %v503 = vtanh.pop %v502
    %v504 = vsub.f32 %v430, %v503
    %506 = vrot.lane.b32.xlu0 %v504, 96
    %v507 = vpop.permute.xlu0 %506
    %v509 = vmul.f32 %v496, %v507
    %511 = vrot.lane.b32.xlu0 %v509, 32
    %v512 = vpop.permute.xlu0 %511
    %v514 = vadd.f32 %v503, %v512
    %v515 = vld [vmem:[#allocation2 + $0x20] sm:$0xff]
    %517 = vrot.lane.b32.xlu0 %v514, 64
    %v518 = vpop.permute.xlu0 %517
    %v519 = vsel %vm173, %v518, 0
    %521 = vmatpush.msra.mxu0 0.0
    %522 = vmatpush.msra.mxu0 0.0
    %523 = vmatpush.msra.mxu0 0.0
    %524 = vmatpush.msra.mxu0 0.0
    %525 = vmatpush.msra.mxu0 0.0
    %526 = vmatpush.msra.mxu0 0.0
    %527 = vmatpush.msra.mxu0 0.0
    %528 = vmatpush.msra.mxu0 0.0
    %529 = vmatpush.msra.mxu0 0.0
    %530 = vmatpush.msra.mxu0 0.0
    %531 = vmatpush.msra.mxu0 0.0
    %532 = vmatpush.msra.mxu0 0.0
    %533 = vmatpush.msra.mxu0 %v168
    %534 = vmatpush.msra.mxu0 %v167
    %535 = vmatpush.msra.mxu0 %v166
    %536 = vmatpush.msra.mxu0 %v165
    %537 = vmatmul.f32.gmra.mxu0 %v519
    %v538 = vpop.f32.mrf.mxu0
    %v539 = vadd.f32 %v171, %v538
    %540 = vdwg.mxu0
    %541 = vmatpush.msra.mxu0 0.0
    %542 = vmatpush.msra.mxu0 0.0
    %543 = vmatpush.msra.mxu0 0.0
    %544 = vmatpush.msra.mxu0 0.0
    %545 = vmatpush.msra.mxu0 0.0
    %546 = vmatpush.msra.mxu0 0.0
    %547 = vmatpush.msra.mxu0 0.0
    %548 = vmatpush.msra.mxu0 0.0
    %549 = vmatpush.msra.mxu0 0.0
    %550 = vmatpush.msra.mxu0 0.0
    %551 = vmatpush.msra.mxu0 0.0
    %552 = vmatpush.msra.mxu0 0.0
    %553 = vmatpush.msra.mxu0 %v200
    %554 = vmatpush.msra.mxu0 %v199
    %555 = vmatpush.msra.mxu0 %v198
    %556 = vmatpush.msra.mxu0 %v197
    %557 = vmatmul.f32.gmra.mxu0 %v519
    %v558 = vpop.f32.mrf.mxu0
    %v559 = vadd.f32 %v203, %v558
    %560 = vdwg.mxu0
    %v561 = vadd.f32 %v515, %v539
    %v562 = vxor.u32 %v561, 2147483648
    %v563 = vmul.f32 %v562, 1.442695
    %v564 = vpow.pop %v563
    %v565 = vadd.f32 %v564, 1.0
    %v566 = vrcp.pop %v565
    %v567 = vmul.f32 %v565, %v566
    %v568 = vsub.f32 1.0, %v567
    %v569 = vmul.f32 %v566, %v568
    %v570 = vadd.f32 %v566, %v569
    %vm571 = vweird.f32 %v565
    %vm572 = vweird.f32 %v566
    %vm573 = vmor %vm571, %vm572
    %v574 = vsel %vm573, %v566, %v570
    %v575 = vand.u32 2147483647, %v565
    %vm576 = vcmp.eq.f32.partialorder %v575, 8.507059e+37
    %v577 = vand.u32 %v565, 2147483648
    %v578 = vor.u32 1.1754944e-38, %v577
    %v579 = vsel %vm576, %v578, %v574
    %v580 = vmul.f32 1.0, %v579
    %v581 = vmul.f32 %v580, %v559
    %583 = vrot.lane.b32.xlu0 %v581, 64
    %v584 = vpop.permute.xlu0 %583
    %v586 = vadd.f32 %v515, %v584
    %v587 = vtanh.pop %v586
    %v588 = vsub.f32 %v514, %v587
    %590 = vrot.lane.b32.xlu0 %v588, 96
    %v591 = vpop.permute.xlu0 %590
    %v593 = vmul.f32 %v580, %v591
    %595 = vrot.lane.b32.xlu0 %v593, 32
    %v596 = vpop.permute.xlu0 %595
    %v598 = vadd.f32 %v587, %v596
    %v599 = vld [vmem:[#allocation2 + $0x28] sm:$0xff]
    %601 = vrot.lane.b32.xlu0 %v598, 64
    %v602 = vpop.permute.xlu0 %601
    %v603 = vsel %vm173, %v602, 0
    %605 = vmatpush.msra.mxu0 0.0
    %606 = vmatpush.msra.mxu0 0.0
    %607 = vmatpush.msra.mxu0 0.0
    %608 = vmatpush.msra.mxu0 0.0
    %609 = vmatpush.msra.mxu0 0.0
    %610 = vmatpush.msra.mxu0 0.0
    %611 = vmatpush.msra.mxu0 0.0
    %612 = vmatpush.msra.mxu0 0.0
    %613 = vmatpush.msra.mxu0 0.0
    %614 = vmatpush.msra.mxu0 0.0
    %615 = vmatpush.msra.mxu0 0.0
    %616 = vmatpush.msra.mxu0 0.0
    %617 = vmatpush.msra.mxu0 %v168
    %618 = vmatpush.msra.mxu0 %v167
    %619 = vmatpush.msra.mxu0 %v166
    %620 = vmatpush.msra.mxu0 %v165
    %621 = vmatmul.f32.gmra.mxu0 %v603
    %v622 = vpop.f32.mrf.mxu0
    %v623 = vadd.f32 %v171, %v622
    %624 = vdwg.mxu0
    %625 = vmatpush.msra.mxu0 0.0
    %626 = vmatpush.msra.mxu0 0.0
    %627 = vmatpush.msra.mxu0 0.0
    %628 = vmatpush.msra.mxu0 0.0
    %629 = vmatpush.msra.mxu0 0.0
    %630 = vmatpush.msra.mxu0 0.0
    %631 = vmatpush.msra.mxu0 0.0
    %632 = vmatpush.msra.mxu0 0.0
    %633 = vmatpush.msra.mxu0 0.0
    %634 = vmatpush.msra.mxu0 0.0
    %635 = vmatpush.msra.mxu0 0.0
    %636 = vmatpush.msra.mxu0 0.0
    %637 = vmatpush.msra.mxu0 %v200
    %638 = vmatpush.msra.mxu0 %v199
    %639 = vmatpush.msra.mxu0 %v198
    %640 = vmatpush.msra.mxu0 %v197
    %641 = vmatmul.f32.gmra.mxu0 %v603
    %v642 = vpop.f32.mrf.mxu0
    %v643 = vadd.f32 %v203, %v642
    %644 = vdwg.mxu0
    %v645 = vadd.f32 %v599, %v623
    %v646 = vxor.u32 %v645, 2147483648
    %v647 = vmul.f32 %v646, 1.442695
    %v648 = vpow.pop %v647
    %v649 = vadd.f32 %v648, 1.0
    %v650 = vrcp.pop %v649
    %v651 = vmul.f32 %v649, %v650
    %v652 = vsub.f32 1.0, %v651
    %v653 = vmul.f32 %v650, %v652
    %v654 = vadd.f32 %v650, %v653
    %vm655 = vweird.f32 %v649
    %vm656 = vweird.f32 %v650
    %vm657 = vmor %vm655, %vm656
    %v658 = vsel %vm657, %v650, %v654
    %v659 = vand.u32 2147483647, %v649
    %vm660 = vcmp.eq.f32.partialorder %v659, 8.507059e+37
    %v661 = vand.u32 %v649, 2147483648
    %v662 = vor.u32 1.1754944e-38, %v661
    %v663 = vsel %vm660, %v662, %v658
    %v664 = vmul.f32 1.0, %v663
    %v665 = vmul.f32 %v664, %v643
    %667 = vrot.lane.b32.xlu0 %v665, 64
    %v668 = vpop.permute.xlu0 %667
    %v670 = vadd.f32 %v599, %v668
    %v671 = vtanh.pop %v670
    %v672 = vsub.f32 %v598, %v671
    %674 = vrot.lane.b32.xlu0 %v672, 96
    %v675 = vpop.permute.xlu0 %674
    %v677 = vmul.f32 %v664, %v675
    %679 = vrot.lane.b32.xlu0 %v677, 32
    %v680 = vpop.permute.xlu0 %679
    %v682 = vadd.f32 %v671, %v680
    %v683 = vld [vmem:[#allocation2 + $0x30] sm:$0xff]
    %685 = vrot.lane.b32.xlu0 %v682, 64
    %v686 = vpop.permute.xlu0 %685
    %v687 = vsel %vm173, %v686, 0
    %689 = vmatpush.msra.mxu0 0.0
    %690 = vmatpush.msra.mxu0 0.0
    %691 = vmatpush.msra.mxu0 0.0
    %692 = vmatpush.msra.mxu0 0.0
    %693 = vmatpush.msra.mxu0 0.0
    %694 = vmatpush.msra.mxu0 0.0
    %695 = vmatpush.msra.mxu0 0.0
    %696 = vmatpush.msra.mxu0 0.0
    %697 = vmatpush.msra.mxu0 0.0
    %698 = vmatpush.msra.mxu0 0.0
    %699 = vmatpush.msra.mxu0 0.0
    %700 = vmatpush.msra.mxu0 0.0
    %701 = vmatpush.msra.mxu0 %v168
    %702 = vmatpush.msra.mxu0 %v167
    %703 = vmatpush.msra.mxu0 %v166
    %704 = vmatpush.msra.mxu0 %v165
    %705 = vmatmul.f32.gmra.mxu0 %v687
    %v706 = vpop.f32.mrf.mxu0
    %v707 = vadd.f32 %v171, %v706
    %708 = vdwg.mxu0
    %709 = vmatpush.msra.mxu0 0.0
    %710 = vmatpush.msra.mxu0 0.0
    %711 = vmatpush.msra.mxu0 0.0
    %712 = vmatpush.msra.mxu0 0.0
    %713 = vmatpush.msra.mxu0 0.0
    %714 = vmatpush.msra.mxu0 0.0
    %715 = vmatpush.msra.mxu0 0.0
    %716 = vmatpush.msra.mxu0 0.0
    %717 = vmatpush.msra.mxu0 0.0
    %718 = vmatpush.msra.mxu0 0.0
    %719 = vmatpush.msra.mxu0 0.0
    %720 = vmatpush.msra.mxu0 0.0
    %721 = vmatpush.msra.mxu0 %v200
    %722 = vmatpush.msra.mxu0 %v199
    %723 = vmatpush.msra.mxu0 %v198
    %724 = vmatpush.msra.mxu0 %v197
    %725 = vmatmul.f32.gmra.mxu0 %v687
    %v726 = vpop.f32.mrf.mxu0
    %v727 = vadd.f32 %v203, %v726
    %728 = vdwg.mxu0
    %v729 = vadd.f32 %v683, %v707
    %v730 = vxor.u32 %v729, 2147483648
    %v731 = vmul.f32 %v730, 1.442695
    %v732 = vpow.pop %v731
    %v733 = vadd.f32 %v732, 1.0
    %v734 = vrcp.pop %v733
    %v735 = vmul.f32 %v733, %v734
    %v736 = vsub.f32 1.0, %v735
    %v737 = vmul.f32 %v734, %v736
    %v738 = vadd.f32 %v734, %v737
    %vm739 = vweird.f32 %v733
    %vm740 = vweird.f32 %v734
    %vm741 = vmor %vm739, %vm740
    %v742 = vsel %vm741, %v734, %v738
    %v743 = vand.u32 2147483647, %v733
    %vm744 = vcmp.eq.f32.partialorder %v743, 8.507059e+37
    %v745 = vand.u32 %v733, 2147483648
    %v746 = vor.u32 1.1754944e-38, %v745
    %v747 = vsel %vm744, %v746, %v742
    %v748 = vmul.f32 1.0, %v747
    %v749 = vmul.f32 %v748, %v727
    %751 = vrot.lane.b32.xlu0 %v749, 64
    %v752 = vpop.permute.xlu0 %751
    %v754 = vadd.f32 %v683, %v752
    %v755 = vtanh.pop %v754
    %v756 = vsub.f32 %v682, %v755
    %758 = vrot.lane.b32.xlu0 %v756, 96
    %v759 = vpop.permute.xlu0 %758
    %v761 = vmul.f32 %v748, %v759
    %763 = vrot.lane.b32.xlu0 %v761, 32
    %v764 = vpop.permute.xlu0 %763
    %v766 = vadd.f32 %v755, %v764
    %v767 = vld [vmem:[#allocation2 + $0x38] sm:$0xff]
    %769 = vrot.lane.b32.xlu0 %v766, 64
    %v770 = vpop.permute.xlu0 %769
    %v771 = vsel %vm173, %v770, 0
    %773 = vmatpush.msra.mxu0 0.0
    %774 = vmatpush.msra.mxu0 0.0
    %775 = vmatpush.msra.mxu0 0.0
    %776 = vmatpush.msra.mxu0 0.0
    %777 = vmatpush.msra.mxu0 0.0
    %778 = vmatpush.msra.mxu0 0.0
    %779 = vmatpush.msra.mxu0 0.0
    %780 = vmatpush.msra.mxu0 0.0
    %781 = vmatpush.msra.mxu0 0.0
    %782 = vmatpush.msra.mxu0 0.0
    %783 = vmatpush.msra.mxu0 0.0
    %784 = vmatpush.msra.mxu0 0.0
    %785 = vmatpush.msra.mxu0 %v168
    %786 = vmatpush.msra.mxu0 %v167
    %787 = vmatpush.msra.mxu0 %v166
    %788 = vmatpush.msra.mxu0 %v165
    %789 = vmatmul.f32.gmra.mxu0 %v771
    %v790 = vpop.f32.mrf.mxu0
    %v791 = vadd.f32 %v171, %v790
    %792 = vdwg.mxu0
    %793 = vmatpush.msra.mxu0 0.0
    %794 = vmatpush.msra.mxu0 0.0
    %795 = vmatpush.msra.mxu0 0.0
    %796 = vmatpush.msra.mxu0 0.0
    %797 = vmatpush.msra.mxu0 0.0
    %798 = vmatpush.msra.mxu0 0.0
    %799 = vmatpush.msra.mxu0 0.0
    %800 = vmatpush.msra.mxu0 0.0
    %801 = vmatpush.msra.mxu0 0.0
    %802 = vmatpush.msra.mxu0 0.0
    %803 = vmatpush.msra.mxu0 0.0
    %804 = vmatpush.msra.mxu0 0.0
    %805 = vmatpush.msra.mxu0 %v200
    %806 = vmatpush.msra.mxu0 %v199
    %807 = vmatpush.msra.mxu0 %v198
    %808 = vmatpush.msra.mxu0 %v197
    %809 = vmatmul.f32.gmra.mxu0 %v771
    %v810 = vpop.f32.mrf.mxu0
    %v811 = vadd.f32 %v203, %v810
    %812 = vdwg.mxu0
    %v813 = vadd.f32 %v767, %v791
    %v814 = vxor.u32 %v813, 2147483648
    %v815 = vmul.f32 %v814, 1.442695
    %v816 = vpow.pop %v815
    %v817 = vadd.f32 %v816, 1.0
    %v818 = vrcp.pop %v817
    %v819 = vmul.f32 %v817, %v818
    %v820 = vsub.f32 1.0, %v819
    %v821 = vmul.f32 %v818, %v820
    %v822 = vadd.f32 %v818, %v821
    %vm823 = vweird.f32 %v817
    %vm824 = vweird.f32 %v818
    %vm825 = vmor %vm823, %vm824
    %v826 = vsel %vm825, %v818, %v822
    %v827 = vand.u32 2147483647, %v817
    %vm828 = vcmp.eq.f32.partialorder %v827, 8.507059e+37
    %v829 = vand.u32 %v817, 2147483648
    %v830 = vor.u32 1.1754944e-38, %v829
    %v831 = vsel %vm828, %v830, %v826
    %v832 = vmul.f32 1.0, %v831
    %v833 = vmul.f32 %v832, %v811
    %835 = vrot.lane.b32.xlu0 %v833, 64
    %v836 = vpop.permute.xlu0 %835
    %v838 = vadd.f32 %v767, %v836
    %v839 = vtanh.pop %v838
    %v840 = vsub.f32 %v766, %v839
    %842 = vrot.lane.b32.xlu0 %v840, 96
    %v843 = vpop.permute.xlu0 %842
    %v845 = vmul.f32 %v832, %v843
    %847 = vrot.lane.b32.xlu0 %v845, 32
    %v848 = vpop.permute.xlu0 %847
    %v850 = vadd.f32 %v839, %v848
    %v851 = vld [vmem:[%s7] sm:$0xff]
    %v852 = vld [vmem:[%s7 + $0x8] sm:$0xff]
    %v853 = vld [vmem:[%s7 + $0x10] sm:$0xff]
    %v854 = vld [vmem:[%s7 + $0x18] sm:$0xff]
    %v855 = vld [vmem:[%s8] sm:$0x1]
    %v857 = vperm.slane %v855, 0
    %860 = vrot.lane.b32.xlu0 %v850, 64
    %v861 = vpop.permute.xlu0 %860
    %v862 = vsel %vm173, %v861, 0
    %864 = vmatpush.msra.mxu0 0.0
    %865 = vmatpush.msra.mxu0 0.0
    %866 = vmatpush.msra.mxu0 0.0
    %867 = vmatpush.msra.mxu0 0.0
    %868 = vmatpush.msra.mxu0 0.0
    %869 = vmatpush.msra.mxu0 0.0
    %870 = vmatpush.msra.mxu0 0.0
    %871 = vmatpush.msra.mxu0 0.0
    %872 = vmatpush.msra.mxu0 0.0
    %873 = vmatpush.msra.mxu0 0.0
    %874 = vmatpush.msra.mxu0 0.0
    %875 = vmatpush.msra.mxu0 0.0
    %876 = vmatpush.msra.mxu0 %v854
    %877 = vmatpush.msra.mxu0 %v853
    %878 = vmatpush.msra.mxu0 %v852
    %879 = vmatpush.msra.mxu0 %v851
    %880 = vmatmul.f32.gmra.mxu0 %v862
    %v881 = vpop.f32.mrf.mxu0
    %v882 = vadd.f32 %v857, %v881
    %883 = vdwg.mxu0
    %884 = vrot.lane.b32.xlu0 %v80, 16
    %v885 = vpop.permute.xlu0 %884
    %887 = vrot.lane.b32.xlu0 %v81, 32
    %v888 = vpop.permute.xlu0 %887
    %890 = vrot.lane.b32.xlu0 %v82, 48
    %v891 = vpop.permute.xlu0 %890
    %v893 = vsel %vm89, %v882, %v885
    %v894 = vsel %vm173, %v893, %v888
    %vm895 = vcmask 392192
    %v896 = vsel %vm895, %v894, %v891
    %898 = vrot.lane.b32.xlu0 %v882, 64
    %v899 = vpop.permute.xlu0 %898
    %vm901 = vcmask 523264
    %v902 = vsel %vm901, %v896, %v899
    %v903 = vld [vmem:[%s9] sm:$0xff]
    %v904 = vld [vmem:[%s9 + $0x8] sm:$0xff]
    %v905 = vld [vmem:[%s9 + $0x10] sm:$0xff]
    %v906 = vld [vmem:[%s9 + $0x18] sm:$0xff]
    %v907 = vld [vmem:[%s9 + $0x20] sm:$0xff]
    %v908 = vld [vmem:[%s9 + $0x28] sm:$0xff]
    %v909 = vld [vmem:[%s9 + $0x30] sm:$0xff]
    %v910 = vld [vmem:[%s9 + $0x38] sm:$0xff]
    %v911 = vld [vmem:[%s10] sm:$0xff]
    %v912 = vld [vmem:[%s10 + $0x8] sm:$0xff]
    %v913 = vld [vmem:[%s10 + $0x10] sm:$0xff]
    %v914 = vld [vmem:[%s10 + $0x18] sm:$0xff]
    %915 = vmatpush.msra.mxu0 0.0
    %916 = vmatpush.msra.mxu0 0.0
    %917 = vmatpush.msra.mxu0 0.0
    %918 = vmatpush.msra.mxu0 0.0
    %919 = vmatpush.msra.mxu0 0.0
    %920 = vmatpush.msra.mxu0 0.0
    %921 = vmatpush.msra.mxu0 0.0
    %922 = vmatpush.msra.mxu0 0.0
    %923 = vmatpush.msra.mxu0 0.0
    %924 = vmatpush.msra.mxu0 0.0
    %925 = vmatpush.msra.mxu0 0.0
    %926 = vmatpush.msra.mxu0 0.0
    %927 = vmatpush.msra.mxu0 %v914
    %928 = vmatpush.msra.mxu0 %v913
    %929 = vmatpush.msra.mxu0 %v912
    %930 = vmatpush.msra.mxu0 %v911
    %931 = vmatmul.f32.gmra.mxu0 %v862
    %v932 = vpop.f32.mrf.mxu0
    %v933 = vadd.f32 0.0, %v932
    %934 = vdwg.mxu0
    %v936 = vsel %vm901, %v896, 0
    %938 = vmatpush.msra.mxu0 0.0
    %939 = vmatpush.msra.mxu0 0.0
    %940 = vmatpush.msra.mxu0 0.0
    %941 = vmatpush.msra.mxu0 0.0
    %942 = vmatpush.msra.mxu0 0.0
    %943 = vmatpush.msra.mxu0 0.0
    %944 = vmatpush.msra.mxu0 0.0
    %945 = vmatpush.msra.mxu0 0.0
    %946 = vmatpush.msra.mxu0 %v910
    %947 = vmatpush.msra.mxu0 %v909
    %948 = vmatpush.msra.mxu0 %v908
    %949 = vmatpush.msra.mxu0 %v907
    %950 = vmatpush.msra.mxu0 %v906
    %951 = vmatpush.msra.mxu0 %v905
    %952 = vmatpush.msra.mxu0 %v904
    %953 = vmatpush.msra.mxu0 %v903
    %954 = vmatmul.f32.gmra.mxu0 %v936
    %v955 = vpop.f32.mrf.mxu0
    %v956 = vadd.f32 %v933, %v955
    %957 = vdwg.mxu0
    %v958 = vld [vmem:[%s11] sm:$0x1]
    %v960 = vperm.slane %v958, 0
    %v962 = vadd.f32 %v956, %v960
    %v963 = vmul.f32 %v962, %v962
    %v964 = vld [vmem:[%s14] sm:$0xff]
    %v965 = vld [vmem:[%s14 + $0x8] sm:$0xff]
    %v966 = vld [vmem:[%s14 + $0x10] sm:$0xff]
    %v967 = vld [vmem:[%s14 + $0x18] sm:$0xff]
    %v968 = vld [vmem:[%s14 + $0x20] sm:$0xff]
    %v969 = vld [vmem:[%s14 + $0x28] sm:$0xff]
    %v970 = vld [vmem:[%s14 + $0x30] sm:$0xff]
    %v971 = vld [vmem:[%s14 + $0x38] sm:$0xff]
    %v972 = vld [vmem:[%s14 + $0x40] sm:$0xff]
    %v973 = vld [vmem:[%s14 + $0x48] sm:$0xff]
    %vm974 = vcmask 654336
    %v976 = vsel %vm974, %v963, 0
    %978 = vmatpush.msra.mxu0 0.0
    %979 = vmatpush.msra.mxu0 0.0
    %980 = vmatpush.msra.mxu0 0.0
    %981 = vmatpush.msra.mxu0 0.0
    %982 = vmatpush.msra.mxu0 0.0
    %983 = vmatpush.msra.mxu0 0.0
    %984 = vmatpush.msra.mxu0 %v973
    %985 = vmatpush.msra.mxu0 %v972
    %986 = vmatpush.msra.mxu0 %v971
    %987 = vmatpush.msra.mxu0 %v970
    %988 = vmatpush.msra.mxu0 %v969
    %989 = vmatpush.msra.mxu0 %v968
    %990 = vmatpush.msra.mxu0 %v967
    %991 = vmatpush.msra.mxu0 %v966
    %992 = vmatpush.msra.mxu0 %v965
    %993 = vmatpush.msra.mxu0 %v964
    %994 = vmatmul.f32.gmra.mxu0 %v976
    %v995 = vpop.f32.mrf.mxu0
    %v996 = vadd.f32 1e-05, %v995
    %997 = vdwg.mxu0
    %v998 = vrsqrt.pop %v996
    %v999 = vmul.f32 %v998, %v996
    %v1000 = vmul.f32 %v999, %v998
    %v1001 = vmul.f32 0.5, %v1000
    %v1002 = vsub.f32 1.5, %v1001
    %v1003 = vmul.f32 %v998, %v1002
    %vm1004 = vweird.f32 %v996
    %vm1005 = vweird.f32 %v998
    %vm1006 = vmor %vm1004, %vm1005
    %v1007 = vsel %vm1006, %v998, %v1003
    %v1008 = vmul.f32 %v962, %v1007
    %v1009 = vld [vmem:[%s15] sm:$0x1]
    %v1011 = vperm.slane %v1009, 0
    %v1013 = vmul.f32 %v1008, %v1011
    %v1014 = vld [vmem:[%s16] sm:$0x1]
    %v1016 = vperm.slane %v1014, 0
    %v1018 = vadd.f32 %v1013, %v1016
    %v1019 = vadd.f32 %v902, %v1018
    %v1020 = vld [vmem:[%s12] sm:$0xff]
    %v1021 = vld [vmem:[%s12 + $0x8] sm:$0xff]
    %v1022 = vld [vmem:[%s12 + $0x10] sm:$0xff]
    %v1023 = vld [vmem:[%s12 + $0x18] sm:$0xff]
    %v1024 = vld [vmem:[%s12 + $0x20] sm:$0xff]
    %v1025 = vld [vmem:[%s12 + $0x28] sm:$0xff]
    %v1026 = vld [vmem:[%s12 + $0x30] sm:$0xff]
    %v1027 = vld [vmem:[%s12 + $0x38] sm:$0xff]
    %v1028 = vld [vmem:[%s12 + $0x40] sm:$0xff]
    %v1029 = vld [vmem:[%s12 + $0x48] sm:$0xff]
    %v1030 = vld [vmem:[%s13] sm:$0x1]
    %v1032 = vperm.slane %v1030, 0
    %v1035 = vsel %vm974, %v1019, 0
    %1037 = vmatpush.msra.mxu0 0.0
    %1038 = vmatpush.msra.mxu0 0.0
    %1039 = vmatpush.msra.mxu0 0.0
    %1040 = vmatpush.msra.mxu0 0.0
    %1041 = vmatpush.msra.mxu0 0.0
    %1042 = vmatpush.msra.mxu0 0.0
    %1043 = vmatpush.msra.mxu0 %v1029
    %1044 = vmatpush.msra.mxu0 %v1028
    %1045 = vmatpush.msra.mxu0 %v1027
    %1046 = vmatpush.msra.mxu0 %v1026
    %1047 = vmatpush.msra.mxu0 %v1025
    %1048 = vmatpush.msra.mxu0 %v1024
    %1049 = vmatpush.msra.mxu0 %v1023
    %1050 = vmatpush.msra.mxu0 %v1022
    %1051 = vmatpush.msra.mxu0 %v1021
    %1052 = vmatpush.msra.mxu0 %v1020
    %1053 = vmatmul.f32.gmra.mxu0 %v1035
    %v1054 = vpop.f32.mrf.mxu0
    %v1055 = vadd.f32 %v1032, %v1054
    %1056 = vdwg.mxu0
    %v1057 = vmul.f32 %v1055, %v1055
    %v1059 = vsel %vm974, %v1057, 0
    %1061 = vmatpush.msra.mxu0 0.0
    %1062 = vmatpush.msra.mxu0 0.0
    %1063 = vmatpush.msra.mxu0 0.0
    %1064 = vmatpush.msra.mxu0 0.0
    %1065 = vmatpush.msra.mxu0 0.0
    %1066 = vmatpush.msra.mxu0 0.0
    %1067 = vmatpush.msra.mxu0 %v973
    %1068 = vmatpush.msra.mxu0 %v972
    %1069 = vmatpush.msra.mxu0 %v971
    %1070 = vmatpush.msra.mxu0 %v970
    %1071 = vmatpush.msra.mxu0 %v969
    %1072 = vmatpush.msra.mxu0 %v968
    %1073 = vmatpush.msra.mxu0 %v967
    %1074 = vmatpush.msra.mxu0 %v966
    %1075 = vmatpush.msra.mxu0 %v965
    %1076 = vmatpush.msra.mxu0 %v964
    %1077 = vmatmul.f32.gmra.mxu0 %v1059
    %v1078 = vpop.f32.mrf.mxu0
    %v1079 = vadd.f32 1e-05, %v1078
    %1080 = vdwg.mxu0
    %v1081 = vrsqrt.pop %v1079
    %v1082 = vmul.f32 %v1081, %v1079
    %v1083 = vmul.f32 %v1082, %v1081
    %v1084 = vmul.f32 0.5, %v1083
    %v1085 = vsub.f32 1.5, %v1084
    %v1086 = vmul.f32 %v1081, %v1085
    %vm1087 = vweird.f32 %v1079
    %vm1088 = vweird.f32 %v1081
    %vm1089 = vmor %vm1087, %vm1088
    %v1090 = vsel %vm1089, %v1081, %v1086
    %v1091 = vmul.f32 %v1055, %v1090
    %s1092 = scalar_lea.vmem %s15, 1
    %v1093 = vld [vmem:[%s1092] sm:$0x1]
    %v1095 = vperm.slane %v1093, 0
    %v1097 = vmul.f32 %v1091, %v1095
    %s1098 = scalar_lea.vmem %s16, 1
    %v1099 = vld [vmem:[%s1098] sm:$0x1]
    %v1101 = vperm.slane %v1099, 0
    %v1103 = vadd.f32 %v1097, %v1101
    %v1104 = vadd.f32 %v1019, %v1103
    %v1105 = vld [vmem:[%s17] sm:$0xff]
    %v1106 = vld [vmem:[%s17 + $0x8] sm:$0xff]
    %v1107 = vld [vmem:[%s17 + $0x10] sm:$0xff]
    %v1108 = vld [vmem:[%s17 + $0x18] sm:$0xff]
    %v1109 = vld [vmem:[%s17 + $0x20] sm:$0xff]
    %v1110 = vld [vmem:[%s17 + $0x28] sm:$0xff]
    %v1111 = vld [vmem:[%s17 + $0x30] sm:$0xff]
    %v1112 = vld [vmem:[%s17 + $0x38] sm:$0xff]
    %v1113 = vld [vmem:[%s17 + $0x40] sm:$0xff]
    %v1114 = vld [vmem:[%s17 + $0x48] sm:$0xff]
    %v1115 = vld [vmem:[%s18] sm:$0x1]
    %v1117 = vperm.slane %v1115, 0
    %v1120 = vsel %vm974, %v1104, 0
    %1122 = vmatpush.msra.mxu0 0.0
    %1123 = vmatpush.msra.mxu0 0.0
    %1124 = vmatpush.msra.mxu0 0.0
    %1125 = vmatpush.msra.mxu0 0.0
    %1126 = vmatpush.msra.mxu0 0.0
    %1127 = vmatpush.msra.mxu0 0.0
    %1128 = vmatpush.msra.mxu0 %v1114
    %1129 = vmatpush.msra.mxu0 %v1113
    %1130 = vmatpush.msra.mxu0 %v1112
    %1131 = vmatpush.msra.mxu0 %v1111
    %1132 = vmatpush.msra.mxu0 %v1110
    %1133 = vmatpush.msra.mxu0 %v1109
    %1134 = vmatpush.msra.mxu0 %v1108
    %1135 = vmatpush.msra.mxu0 %v1107
    %1136 = vmatpush.msra.mxu0 %v1106
    %1137 = vmatpush.msra.mxu0 %v1105
    %1138 = vmatmul.f32.gmra.mxu0 %v1120
    %v1139 = vpop.f32.mrf.mxu0
    %v1140 = vadd.f32 %v1117, %v1139
    %1141 = vdwg.mxu0
    %v1142 = vadd.f32 %v1140, %v82
    %v1143 = vld [vmem:[%s19] sm:$0xff]
    %v1144 = vld [vmem:[%s19 + $0x8] sm:$0xff]
    %v1145 = vld [vmem:[%s19 + $0x10] sm:$0xff]
    %v1146 = vld [vmem:[%s19 + $0x18] sm:$0xff]
    %v1147 = vld [vmem:[%s19 + $0x20] sm:$0xff]
    %v1148 = vld [vmem:[%s19 + $0x28] sm:$0xff]
    %v1149 = vld [vmem:[%s19 + $0x30] sm:$0xff]
    %v1150 = vld [vmem:[%s19 + $0x38] sm:$0xff]
    %v1151 = vld [vmem:[%s19 + $0x40] sm:$0xff]
    %v1152 = vld [vmem:[%s19 + $0x48] sm:$0xff]
    %v1153 = vld [vmem:[%s21] sm:$0x1]
    %v1155 = vperm.slane %v1153, 0
    %1157 = vmatpush.msra.mxu0 0.0
    %1158 = vmatpush.msra.mxu0 0.0
    %1159 = vmatpush.msra.mxu0 0.0
    %1160 = vmatpush.msra.mxu0 0.0
    %1161 = vmatpush.msra.mxu0 0.0
    %1162 = vmatpush.msra.mxu0 0.0
    %1163 = vmatpush.msra.mxu0 %v1152
    %1164 = vmatpush.msra.mxu0 %v1151
    %1165 = vmatpush.msra.mxu0 %v1150
    %1166 = vmatpush.msra.mxu0 %v1149
    %1167 = vmatpush.msra.mxu0 %v1148
    %1168 = vmatpush.msra.mxu0 %v1147
    %1169 = vmatpush.msra.mxu0 %v1146
    %1170 = vmatpush.msra.mxu0 %v1145
    %1171 = vmatpush.msra.mxu0 %v1144
    %1172 = vmatpush.msra.mxu0 %v1143
    %1173 = vmatmul.f32.gmra.mxu0 %v1120
    %v1174 = vpop.f32.mrf.mxu0
    %v1175 = vadd.f32 %v1155, %v1174
    %1176 = vdwg.mxu0
    %v1177 = vadd.f32 %v767, %v1175
    %v1178 = vld [vmem:[%s20] sm:$0xff]
    %v1179 = vld [vmem:[%s20 + $0x8] sm:$0xff]
    %v1180 = vld [vmem:[%s20 + $0x10] sm:$0xff]
    %v1181 = vld [vmem:[%s20 + $0x18] sm:$0xff]
    %v1182 = vld [vmem:[%s20 + $0x20] sm:$0xff]
    %v1183 = vld [vmem:[%s20 + $0x28] sm:$0xff]
    %v1184 = vld [vmem:[%s20 + $0x30] sm:$0xff]
    %v1185 = vld [vmem:[%s20 + $0x38] sm:$0xff]
    %v1186 = vld [vmem:[%s20 + $0x40] sm:$0xff]
    %v1187 = vld [vmem:[%s20 + $0x48] sm:$0xff]
    %v1188 = vld [vmem:[%s22] sm:$0x1]
    %v1190 = vperm.slane %v1188, 0
    %1192 = vmatpush.msra.mxu0 0.0
    %1193 = vmatpush.msra.mxu0 0.0
    %1194 = vmatpush.msra.mxu0 0.0
    %1195 = vmatpush.msra.mxu0 0.0
    %1196 = vmatpush.msra.mxu0 0.0
    %1197 = vmatpush.msra.mxu0 0.0
    %1198 = vmatpush.msra.mxu0 %v1187
    %1199 = vmatpush.msra.mxu0 %v1186
    %1200 = vmatpush.msra.mxu0 %v1185
    %1201 = vmatpush.msra.mxu0 %v1184
    %1202 = vmatpush.msra.mxu0 %v1183
    %1203 = vmatpush.msra.mxu0 %v1182
    %1204 = vmatpush.msra.mxu0 %v1181
    %1205 = vmatpush.msra.mxu0 %v1180
    %1206 = vmatpush.msra.mxu0 %v1179
    %1207 = vmatpush.msra.mxu0 %v1178
    %1208 = vmatmul.f32.gmra.mxu0 %v1120
    %v1209 = vpop.f32.mrf.mxu0
    %v1210 = vadd.f32 %v1190, %v1209
    %1211 = vdwg.mxu0
    %1213 = vrot.lane.b32.xlu0 %v1210, 64
    %v1214 = vpop.permute.xlu0 %1213
    %v1216 = vadd.f32 %v767, %v1214
    %1217 = vmatpush.msra.mxu0 0.0
    %1218 = vmatpush.msra.mxu0 0.0
    %1219 = vmatpush.msra.mxu0 0.0
    %1220 = vmatpush.msra.mxu0 0.0
    %1221 = vmatpush.msra.mxu0 0.0
    %1222 = vmatpush.msra.mxu0 0.0
    %1223 = vmatpush.msra.mxu0 0.0
    %1224 = vmatpush.msra.mxu0 0.0
    %1225 = vmatpush.msra.mxu0 0.0
    %1226 = vmatpush.msra.mxu0 0.0
    %1227 = vmatpush.msra.mxu0 0.0
    %1228 = vmatpush.msra.mxu0 0.0
    %1229 = vmatpush.msra.mxu0 %v168
    %1230 = vmatpush.msra.mxu0 %v167
    %1231 = vmatpush.msra.mxu0 %v166
    %1232 = vmatpush.msra.mxu0 %v165
    %1233 = vmatmul.f32.gmra.mxu0 %v862
    %v1234 = vpop.f32.mrf.mxu0
    %v1235 = vadd.f32 %v171, %v1234
    %1236 = vdwg.mxu0
    %1237 = vmatpush.msra.mxu0 0.0
    %1238 = vmatpush.msra.mxu0 0.0
    %1239 = vmatpush.msra.mxu0 0.0
    %1240 = vmatpush.msra.mxu0 0.0
    %1241 = vmatpush.msra.mxu0 0.0
    %1242 = vmatpush.msra.mxu0 0.0
    %1243 = vmatpush.msra.mxu0 0.0
    %1244 = vmatpush.msra.mxu0 0.0
    %1245 = vmatpush.msra.mxu0 0.0
    %1246 = vmatpush.msra.mxu0 0.0
    %1247 = vmatpush.msra.mxu0 0.0
    %1248 = vmatpush.msra.mxu0 0.0
    %1249 = vmatpush.msra.mxu0 %v200
    %1250 = vmatpush.msra.mxu0 %v199
    %1251 = vmatpush.msra.mxu0 %v198
    %1252 = vmatpush.msra.mxu0 %v197
    %1253 = vmatmul.f32.gmra.mxu0 %v862
    %v1254 = vpop.f32.mrf.mxu0
    %v1255 = vadd.f32 %v203, %v1254
    %1256 = vdwg.mxu0
    %v1257 = vadd.f32 %v1177, %v1235
    %v1258 = vxor.u32 %v1257, 2147483648
    %v1259 = vmul.f32 %v1258, 1.442695
    %v1260 = vpow.pop %v1259
    %v1261 = vadd.f32 %v1260, 1.0
    %v1262 = vrcp.pop %v1261
    %v1263 = vmul.f32 %v1261, %v1262
    %v1264 = vsub.f32 1.0, %v1263
    %v1265 = vmul.f32 %v1262, %v1264
    %v1266 = vadd.f32 %v1262, %v1265
    %vm1267 = vweird.f32 %v1261
    %vm1268 = vweird.f32 %v1262
    %vm1269 = vmor %vm1267, %vm1268
    %v1270 = vsel %vm1269, %v1262, %v1266
    %v1271 = vand.u32 2147483647, %v1261
    %vm1272 = vcmp.eq.f32.partialorder %v1271, 8.507059e+37
    %v1273 = vand.u32 %v1261, 2147483648
    %v1274 = vor.u32 1.1754944e-38, %v1273
    %v1275 = vsel %vm1272, %v1274, %v1270
    %v1276 = vmul.f32 1.0, %v1275
    %v1277 = vmul.f32 %v1276, %v1255
    %1279 = vrot.lane.b32.xlu0 %v1277, 64
    %v1280 = vpop.permute.xlu0 %1279
    %v1282 = vadd.f32 %v1216, %v1280
    %v1283 = vtanh.pop %v1282
    %v1284 = vsub.f32 %v850, %v1283
    %1286 = vrot.lane.b32.xlu0 %v1284, 96
    %v1287 = vpop.permute.xlu0 %1286
    %v1289 = vmul.f32 %v1276, %v1287
    %1291 = vrot.lane.b32.xlu0 %v1289, 32
    %v1292 = vpop.permute.xlu0 %1291
    %v1294 = vadd.f32 %v1283, %v1292
    %1296 = vrot.lane.b32.xlu0 %v1294, 64
    %v1297 = vpop.permute.xlu0 %1296
    %v1298 = vsel %vm173, %v1297, 0
    %1300 = vmatpush.msra.mxu0 0.0
    %1301 = vmatpush.msra.mxu0 0.0
    %1302 = vmatpush.msra.mxu0 0.0
    %1303 = vmatpush.msra.mxu0 0.0
    %1304 = vmatpush.msra.mxu0 0.0
    %1305 = vmatpush.msra.mxu0 0.0
    %1306 = vmatpush.msra.mxu0 0.0
    %1307 = vmatpush.msra.mxu0 0.0
    %1308 = vmatpush.msra.mxu0 0.0
    %1309 = vmatpush.msra.mxu0 0.0
    %1310 = vmatpush.msra.mxu0 0.0
    %1311 = vmatpush.msra.mxu0 0.0
    %1312 = vmatpush.msra.mxu0 %v854
    %1313 = vmatpush.msra.mxu0 %v853
    %1314 = vmatpush.msra.mxu0 %v852
    %1315 = vmatpush.msra.mxu0 %v851
    %1316 = vmatmul.f32.gmra.mxu0 %v1298
    %v1317 = vpop.f32.mrf.mxu0
    %v1318 = vadd.f32 %v857, %v1317
    %1319 = vdwg.mxu0
    %1320 = vrot.lane.b32.xlu0 %v81, 16
    %v1321 = vpop.permute.xlu0 %1320
    %1323 = vrot.lane.b32.xlu0 %v82, 32
    %v1324 = vpop.permute.xlu0 %1323
    %1327 = vrot.lane.b32.xlu0 %v1142, 48
    %v1328 = vpop.permute.xlu0 %1327
    %v1330 = vsel %vm89, %v882, %v1321
    %v1331 = vsel %vm173, %v1330, %v1324
    %v1332 = vsel %vm895, %v1331, %v1328
    %1334 = vrot.lane.b32.xlu0 %v1318, 64
    %v1335 = vpop.permute.xlu0 %1334
    %v1337 = vsel %vm901, %v1332, %v1335
    %1338 = vmatpush.msra.mxu0 0.0
    %1339 = vmatpush.msra.mxu0 0.0
    %1340 = vmatpush.msra.mxu0 0.0
    %1341 = vmatpush.msra.mxu0 0.0
    %1342 = vmatpush.msra.mxu0 0.0
    %1343 = vmatpush.msra.mxu0 0.0
    %1344 = vmatpush.msra.mxu0 0.0
    %1345 = vmatpush.msra.mxu0 0.0
    %1346 = vmatpush.msra.mxu0 0.0
    %1347 = vmatpush.msra.mxu0 0.0
    %1348 = vmatpush.msra.mxu0 0.0
    %1349 = vmatpush.msra.mxu0 0.0
    %1350 = vmatpush.msra.mxu0 %v914
    %1351 = vmatpush.msra.mxu0 %v913
    %1352 = vmatpush.msra.mxu0 %v912
    %1353 = vmatpush.msra.mxu0 %v911
    %1354 = vmatmul.f32.gmra.mxu0 %v1298
    %v1355 = vpop.f32.mrf.mxu0
    %v1356 = vadd.f32 0.0, %v1355
    %1357 = vdwg.mxu0
    %v1359 = vsel %vm901, %v1332, 0
    %1361 = vmatpush.msra.mxu0 0.0
    %1362 = vmatpush.msra.mxu0 0.0
    %1363 = vmatpush.msra.mxu0 0.0
    %1364 = vmatpush.msra.mxu0 0.0
    %1365 = vmatpush.msra.mxu0 0.0
    %1366 = vmatpush.msra.mxu0 0.0
    %1367 = vmatpush.msra.mxu0 0.0
    %1368 = vmatpush.msra.mxu0 0.0
    %1369 = vmatpush.msra.mxu0 %v910
    %1370 = vmatpush.msra.mxu0 %v909
    %1371 = vmatpush.msra.mxu0 %v908
    %1372 = vmatpush.msra.mxu0 %v907
    %1373 = vmatpush.msra.mxu0 %v906
    %1374 = vmatpush.msra.mxu0 %v905
    %1375 = vmatpush.msra.mxu0 %v904
    %1376 = vmatpush.msra.mxu0 %v903
    %1377 = vmatmul.f32.gmra.mxu0 %v1359
    %v1378 = vpop.f32.mrf.mxu0
    %v1379 = vadd.f32 %v1356, %v1378
    %1380 = vdwg.mxu0
    %v1381 = vadd.f32 %v1379, %v960
    %v1382 = vmul.f32 %v1381, %v1381
    %v1384 = vsel %vm974, %v1382, 0
    %1386 = vmatpush.msra.mxu0 0.0
    %1387 = vmatpush.msra.mxu0 0.0
    %1388 = vmatpush.msra.mxu0 0.0
    %1389 = vmatpush.msra.mxu0 0.0
    %1390 = vmatpush.msra.mxu0 0.0
    %1391 = vmatpush.msra.mxu0 0.0
    %1392 = vmatpush.msra.mxu0 %v973
    %1393 = vmatpush.msra.mxu0 %v972
    %1394 = vmatpush.msra.mxu0 %v971
    %1395 = vmatpush.msra.mxu0 %v970
    %1396 = vmatpush.msra.mxu0 %v969
    %1397 = vmatpush.msra.mxu0 %v968
    %1398 = vmatpush.msra.mxu0 %v967
    %1399 = vmatpush.msra.mxu0 %v966
    %1400 = vmatpush.msra.mxu0 %v965
    %1401 = vmatpush.msra.mxu0 %v964
    %1402 = vmatmul.f32.gmra.mxu0 %v1384
    %v1403 = vpop.f32.mrf.mxu0
    %v1404 = vadd.f32 1e-05, %v1403
    %1405 = vdwg.mxu0
    %v1406 = vrsqrt.pop %v1404
    %v1407 = vmul.f32 %v1406, %v1404
    %v1408 = vmul.f32 %v1407, %v1406
    %v1409 = vmul.f32 0.5, %v1408
    %v1410 = vsub.f32 1.5, %v1409
    %v1411 = vmul.f32 %v1406, %v1410
    %vm1412 = vweird.f32 %v1404
    %vm1413 = vweird.f32 %v1406
    %vm1414 = vmor %vm1412, %vm1413
    %v1415 = vsel %vm1414, %v1406, %v1411
    %v1416 = vmul.f32 %v1381, %v1415
    %v1417 = vmul.f32 %v1416, %v1011
    %v1418 = vadd.f32 %v1417, %v1016
    %v1419 = vadd.f32 %v1337, %v1418
    %v1421 = vsel %vm974, %v1419, 0
    %1423 = vmatpush.msra.mxu0 0.0
    %1424 = vmatpush.msra.mxu0 0.0
    %1425 = vmatpush.msra.mxu0 0.0
    %1426 = vmatpush.msra.mxu0 0.0
    %1427 = vmatpush.msra.mxu0 0.0
    %1428 = vmatpush.msra.mxu0 0.0
    %1429 = vmatpush.msra.mxu0 %v1029
    %1430 = vmatpush.msra.mxu0 %v1028
    %1431 = vmatpush.msra.mxu0 %v1027
    %1432 = vmatpush.msra.mxu0 %v1026
    %1433 = vmatpush.msra.mxu0 %v1025
    %1434 = vmatpush.msra.mxu0 %v1024
    %1435 = vmatpush.msra.mxu0 %v1023
    %1436 = vmatpush.msra.mxu0 %v1022
    %1437 = vmatpush.msra.mxu0 %v1021
    %1438 = vmatpush.msra.mxu0 %v1020
    %1439 = vmatmul.f32.gmra.mxu0 %v1421
    %v1440 = vpop.f32.mrf.mxu0
    %v1441 = vadd.f32 %v1032, %v1440
    %1442 = vdwg.mxu0
    %v1443 = vmul.f32 %v1441, %v1441
    %v1445 = vsel %vm974, %v1443, 0
    %1447 = vmatpush.msra.mxu0 0.0
    %1448 = vmatpush.msra.mxu0 0.0
    %1449 = vmatpush.msra.mxu0 0.0
    %1450 = vmatpush.msra.mxu0 0.0
    %1451 = vmatpush.msra.mxu0 0.0
    %1452 = vmatpush.msra.mxu0 0.0
    %1453 = vmatpush.msra.mxu0 %v973
    %1454 = vmatpush.msra.mxu0 %v972
    %1455 = vmatpush.msra.mxu0 %v971
    %1456 = vmatpush.msra.mxu0 %v970
    %1457 = vmatpush.msra.mxu0 %v969
    %1458 = vmatpush.msra.mxu0 %v968
    %1459 = vmatpush.msra.mxu0 %v967
    %1460 = vmatpush.msra.mxu0 %v966
    %1461 = vmatpush.msra.mxu0 %v965
    %1462 = vmatpush.msra.mxu0 %v964
    %1463 = vmatmul.f32.gmra.mxu0 %v1445
    %v1464 = vpop.f32.mrf.mxu0
    %v1465 = vadd.f32 1e-05, %v1464
    %1466 = vdwg.mxu0
    %v1467 = vrsqrt.pop %v1465
    %v1468 = vmul.f32 %v1467, %v1465
    %v1469 = vmul.f32 %v1468, %v1467
    %v1470 = vmul.f32 0.5, %v1469
    %v1471 = vsub.f32 1.5, %v1470
    %v1472 = vmul.f32 %v1467, %v1471
    %vm1473 = vweird.f32 %v1465
    %vm1474 = vweird.f32 %v1467
    %vm1475 = vmor %vm1473, %vm1474
    %v1476 = vsel %vm1475, %v1467, %v1472
    %v1477 = vmul.f32 %v1441, %v1476
    %v1478 = vmul.f32 %v1477, %v1095
    %v1479 = vadd.f32 %v1478, %v1101
    %v1480 = vadd.f32 %v1419, %v1479
    %v1482 = vsel %vm974, %v1480, 0
    %1484 = vmatpush.msra.mxu0 0.0
    %1485 = vmatpush.msra.mxu0 0.0
    %1486 = vmatpush.msra.mxu0 0.0
    %1487 = vmatpush.msra.mxu0 0.0
    %1488 = vmatpush.msra.mxu0 0.0
    %1489 = vmatpush.msra.mxu0 0.0
    %1490 = vmatpush.msra.mxu0 %v1114
    %1491 = vmatpush.msra.mxu0 %v1113
    %1492 = vmatpush.msra.mxu0 %v1112
    %1493 = vmatpush.msra.mxu0 %v1111
    %1494 = vmatpush.msra.mxu0 %v1110
    %1495 = vmatpush.msra.mxu0 %v1109
    %1496 = vmatpush.msra.mxu0 %v1108
    %1497 = vmatpush.msra.mxu0 %v1107
    %1498 = vmatpush.msra.mxu0 %v1106
    %1499 = vmatpush.msra.mxu0 %v1105
    %1500 = vmatmul.f32.gmra.mxu0 %v1482
    %v1501 = vpop.f32.mrf.mxu0
    %v1502 = vadd.f32 %v1117, %v1501
    %1503 = vdwg.mxu0
    %v1504 = vadd.f32 %v1502, %v1142
    %1505 = vmatpush.msra.mxu0 0.0
    %1506 = vmatpush.msra.mxu0 0.0
    %1507 = vmatpush.msra.mxu0 0.0
    %1508 = vmatpush.msra.mxu0 0.0
    %1509 = vmatpush.msra.mxu0 0.0
    %1510 = vmatpush.msra.mxu0 0.0
    %1511 = vmatpush.msra.mxu0 %v1152
    %1512 = vmatpush.msra.mxu0 %v1151
    %1513 = vmatpush.msra.mxu0 %v1150
    %1514 = vmatpush.msra.mxu0 %v1149
    %1515 = vmatpush.msra.mxu0 %v1148
    %1516 = vmatpush.msra.mxu0 %v1147
    %1517 = vmatpush.msra.mxu0 %v1146
    %1518 = vmatpush.msra.mxu0 %v1145
    %1519 = vmatpush.msra.mxu0 %v1144
    %1520 = vmatpush.msra.mxu0 %v1143
    %1521 = vmatmul.f32.gmra.mxu0 %v1482
    %v1522 = vpop.f32.mrf.mxu0
    %v1523 = vadd.f32 %v1155, %v1522
    %1524 = vdwg.mxu0
    %v1525 = vadd.f32 %v1177, %v1523
    %1526 = vmatpush.msra.mxu0 0.0
    %1527 = vmatpush.msra.mxu0 0.0
    %1528 = vmatpush.msra.mxu0 0.0
    %1529 = vmatpush.msra.mxu0 0.0
    %1530 = vmatpush.msra.mxu0 0.0
    %1531 = vmatpush.msra.mxu0 0.0
    %1532 = vmatpush.msra.mxu0 %v1187
    %1533 = vmatpush.msra.mxu0 %v1186
    %1534 = vmatpush.msra.mxu0 %v1185
    %1535 = vmatpush.msra.mxu0 %v1184
    %1536 = vmatpush.msra.mxu0 %v1183
    %1537 = vmatpush.msra.mxu0 %v1182
    %1538 = vmatpush.msra.mxu0 %v1181
    %1539 = vmatpush.msra.mxu0 %v1180
    %1540 = vmatpush.msra.mxu0 %v1179
    %1541 = vmatpush.msra.mxu0 %v1178
    %1542 = vmatmul.f32.gmra.mxu0 %v1482
    %v1543 = vpop.f32.mrf.mxu0
    %v1544 = vadd.f32 %v1190, %v1543
    %1545 = vdwg.mxu0
    %1547 = vrot.lane.b32.xlu0 %v1544, 64
    %v1548 = vpop.permute.xlu0 %1547
    %v1550 = vadd.f32 %v1216, %v1548
    %1551 = vmatpush.msra.mxu0 0.0
    %1552 = vmatpush.msra.mxu0 0.0
    %1553 = vmatpush.msra.mxu0 0.0
    %1554 = vmatpush.msra.mxu0 0.0
    %1555 = vmatpush.msra.mxu0 0.0
    %1556 = vmatpush.msra.mxu0 0.0
    %1557 = vmatpush.msra.mxu0 0.0
    %1558 = vmatpush.msra.mxu0 0.0
    %1559 = vmatpush.msra.mxu0 0.0
    %1560 = vmatpush.msra.mxu0 0.0
    %1561 = vmatpush.msra.mxu0 0.0
    %1562 = vmatpush.msra.mxu0 0.0
    %1563 = vmatpush.msra.mxu0 %v168
    %1564 = vmatpush.msra.mxu0 %v167
    %1565 = vmatpush.msra.mxu0 %v166
    %1566 = vmatpush.msra.mxu0 %v165
    %1567 = vmatmul.f32.gmra.mxu0 %v1298
    %v1568 = vpop.f32.mrf.mxu0
    %v1569 = vadd.f32 %v171, %v1568
    %1570 = vdwg.mxu0
    %1571 = vmatpush.msra.mxu0 0.0
    %1572 = vmatpush.msra.mxu0 0.0
    %1573 = vmatpush.msra.mxu0 0.0
    %1574 = vmatpush.msra.mxu0 0.0
    %1575 = vmatpush.msra.mxu0 0.0
    %1576 = vmatpush.msra.mxu0 0.0
    %1577 = vmatpush.msra.mxu0 0.0
    %1578 = vmatpush.msra.mxu0 0.0
    %1579 = vmatpush.msra.mxu0 0.0
    %1580 = vmatpush.msra.mxu0 0.0
    %1581 = vmatpush.msra.mxu0 0.0
    %1582 = vmatpush.msra.mxu0 0.0
    %1583 = vmatpush.msra.mxu0 %v200
    %1584 = vmatpush.msra.mxu0 %v199
    %1585 = vmatpush.msra.mxu0 %v198
    %1586 = vmatpush.msra.mxu0 %v197
    %1587 = vmatmul.f32.gmra.mxu0 %v1298
    %v1588 = vpop.f32.mrf.mxu0
    %v1589 = vadd.f32 %v203, %v1588
    %1590 = vdwg.mxu0
    %v1591 = vadd.f32 %v1525, %v1569
    %v1592 = vxor.u32 %v1591, 2147483648
    %v1593 = vmul.f32 %v1592, 1.442695
    %v1594 = vpow.pop %v1593
    %v1595 = vadd.f32 %v1594, 1.0
    %v1596 = vrcp.pop %v1595
    %v1597 = vmul.f32 %v1595, %v1596
    %v1598 = vsub.f32 1.0, %v1597
    %v1599 = vmul.f32 %v1596, %v1598
    %v1600 = vadd.f32 %v1596, %v1599
    %vm1601 = vweird.f32 %v1595
    %vm1602 = vweird.f32 %v1596
    %vm1603 = vmor %vm1601, %vm1602
    %v1604 = vsel %vm1603, %v1596, %v1600
    %v1605 = vand.u32 2147483647, %v1595
    %vm1606 = vcmp.eq.f32.partialorder %v1605, 8.507059e+37
    %v1607 = vand.u32 %v1595, 2147483648
    %v1608 = vor.u32 1.1754944e-38, %v1607
    %v1609 = vsel %vm1606, %v1608, %v1604
    %v1610 = vmul.f32 1.0, %v1609
    %v1611 = vmul.f32 %v1610, %v1589
    %1613 = vrot.lane.b32.xlu0 %v1611, 64
    %v1614 = vpop.permute.xlu0 %1613
    %v1616 = vadd.f32 %v1550, %v1614
    %v1617 = vtanh.pop %v1616
    %v1618 = vsub.f32 %v1294, %v1617
    %1620 = vrot.lane.b32.xlu0 %v1618, 96
    %v1621 = vpop.permute.xlu0 %1620
    %v1623 = vmul.f32 %v1610, %v1621
    %1625 = vrot.lane.b32.xlu0 %v1623, 32
    %v1626 = vpop.permute.xlu0 %1625
    %v1628 = vadd.f32 %v1617, %v1626
    %1630 = vrot.lane.b32.xlu0 %v1628, 64
    %v1631 = vpop.permute.xlu0 %1630
    %v1632 = vsel %vm173, %v1631, 0
    %1634 = vmatpush.msra.mxu0 0.0
    %1635 = vmatpush.msra.mxu0 0.0
    %1636 = vmatpush.msra.mxu0 0.0
    %1637 = vmatpush.msra.mxu0 0.0
    %1638 = vmatpush.msra.mxu0 0.0
    %1639 = vmatpush.msra.mxu0 0.0
    %1640 = vmatpush.msra.mxu0 0.0
    %1641 = vmatpush.msra.mxu0 0.0
    %1642 = vmatpush.msra.mxu0 0.0
    %1643 = vmatpush.msra.mxu0 0.0
    %1644 = vmatpush.msra.mxu0 0.0
    %1645 = vmatpush.msra.mxu0 0.0
    %1646 = vmatpush.msra.mxu0 %v854
    %1647 = vmatpush.msra.mxu0 %v853
    %1648 = vmatpush.msra.mxu0 %v852
    %1649 = vmatpush.msra.mxu0 %v851
    %1650 = vmatmul.f32.gmra.mxu0 %v1632
    %v1651 = vpop.f32.mrf.mxu0
    %v1652 = vadd.f32 %v857, %v1651
    %1653 = vdwg.mxu0
    %1654 = vrot.lane.b32.xlu0 %v82, 16
    %v1655 = vpop.permute.xlu0 %1654
    %1657 = vrot.lane.b32.xlu0 %v1142, 32
    %v1658 = vpop.permute.xlu0 %1657
    %1661 = vrot.lane.b32.xlu0 %v1504, 48
    %v1662 = vpop.permute.xlu0 %1661
    %v1664 = vsel %vm89, %v882, %v1655
    %v1665 = vsel %vm173, %v1664, %v1658
    %v1666 = vsel %vm895, %v1665, %v1662
    %1668 = vrot.lane.b32.xlu0 %v1652, 64
    %v1669 = vpop.permute.xlu0 %1668
    %v1671 = vsel %vm901, %v1666, %v1669
    %1672 = vmatpush.msra.mxu0 0.0
    %1673 = vmatpush.msra.mxu0 0.0
    %1674 = vmatpush.msra.mxu0 0.0
    %1675 = vmatpush.msra.mxu0 0.0
    %1676 = vmatpush.msra.mxu0 0.0
    %1677 = vmatpush.msra.mxu0 0.0
    %1678 = vmatpush.msra.mxu0 0.0
    %1679 = vmatpush.msra.mxu0 0.0
    %1680 = vmatpush.msra.mxu0 0.0
    %1681 = vmatpush.msra.mxu0 0.0
    %1682 = vmatpush.msra.mxu0 0.0
    %1683 = vmatpush.msra.mxu0 0.0
    %1684 = vmatpush.msra.mxu0 %v914
    %1685 = vmatpush.msra.mxu0 %v913
    %1686 = vmatpush.msra.mxu0 %v912
    %1687 = vmatpush.msra.mxu0 %v911
    %1688 = vmatmul.f32.gmra.mxu0 %v1632
    %v1689 = vpop.f32.mrf.mxu0
    %v1690 = vadd.f32 0.0, %v1689
    %1691 = vdwg.mxu0
    %v1693 = vsel %vm901, %v1666, 0
    %1695 = vmatpush.msra.mxu0 0.0
    %1696 = vmatpush.msra.mxu0 0.0
    %1697 = vmatpush.msra.mxu0 0.0
    %1698 = vmatpush.msra.mxu0 0.0
    %1699 = vmatpush.msra.mxu0 0.0
    %1700 = vmatpush.msra.mxu0 0.0
    %1701 = vmatpush.msra.mxu0 0.0
    %1702 = vmatpush.msra.mxu0 0.0
    %1703 = vmatpush.msra.mxu0 %v910
    %1704 = vmatpush.msra.mxu0 %v909
    %1705 = vmatpush.msra.mxu0 %v908
    %1706 = vmatpush.msra.mxu0 %v907
    %1707 = vmatpush.msra.mxu0 %v906
    %1708 = vmatpush.msra.mxu0 %v905
    %1709 = vmatpush.msra.mxu0 %v904
    %1710 = vmatpush.msra.mxu0 %v903
    %1711 = vmatmul.f32.gmra.mxu0 %v1693
    %v1712 = vpop.f32.mrf.mxu0
    %v1713 = vadd.f32 %v1690, %v1712
    %1714 = vdwg.mxu0
    %v1715 = vadd.f32 %v1713, %v960
    %v1716 = vmul.f32 %v1715, %v1715
    %v1718 = vsel %vm974, %v1716, 0
    %1720 = vmatpush.msra.mxu0 0.0
    %1721 = vmatpush.msra.mxu0 0.0
    %1722 = vmatpush.msra.mxu0 0.0
    %1723 = vmatpush.msra.mxu0 0.0
    %1724 = vmatpush.msra.mxu0 0.0
    %1725 = vmatpush.msra.mxu0 0.0
    %1726 = vmatpush.msra.mxu0 %v973
    %1727 = vmatpush.msra.mxu0 %v972
    %1728 = vmatpush.msra.mxu0 %v971
    %1729 = vmatpush.msra.mxu0 %v970
    %1730 = vmatpush.msra.mxu0 %v969
    %1731 = vmatpush.msra.mxu0 %v968
    %1732 = vmatpush.msra.mxu0 %v967
    %1733 = vmatpush.msra.mxu0 %v966
    %1734 = vmatpush.msra.mxu0 %v965
    %1735 = vmatpush.msra.mxu0 %v964
    %1736 = vmatmul.f32.gmra.mxu0 %v1718
    %v1737 = vpop.f32.mrf.mxu0
    %v1738 = vadd.f32 1e-05, %v1737
    %1739 = vdwg.mxu0
    %v1740 = vrsqrt.pop %v1738
    %v1741 = vmul.f32 %v1740, %v1738
    %v1742 = vmul.f32 %v1741, %v1740
    %v1743 = vmul.f32 0.5, %v1742
    %v1744 = vsub.f32 1.5, %v1743
    %v1745 = vmul.f32 %v1740, %v1744
    %vm1746 = vweird.f32 %v1738
    %vm1747 = vweird.f32 %v1740
    %vm1748 = vmor %vm1746, %vm1747
    %v1749 = vsel %vm1748, %v1740, %v1745
    %v1750 = vmul.f32 %v1715, %v1749
    %v1751 = vmul.f32 %v1750, %v1011
    %v1752 = vadd.f32 %v1751, %v1016
    %v1753 = vadd.f32 %v1671, %v1752
    %v1755 = vsel %vm974, %v1753, 0
    %1757 = vmatpush.msra.mxu0 0.0
    %1758 = vmatpush.msra.mxu0 0.0
    %1759 = vmatpush.msra.mxu0 0.0
    %1760 = vmatpush.msra.mxu0 0.0
    %1761 = vmatpush.msra.mxu0 0.0
    %1762 = vmatpush.msra.mxu0 0.0
    %1763 = vmatpush.msra.mxu0 %v1029
    %1764 = vmatpush.msra.mxu0 %v1028
    %1765 = vmatpush.msra.mxu0 %v1027
    %1766 = vmatpush.msra.mxu0 %v1026
    %1767 = vmatpush.msra.mxu0 %v1025
    %1768 = vmatpush.msra.mxu0 %v1024
    %1769 = vmatpush.msra.mxu0 %v1023
    %1770 = vmatpush.msra.mxu0 %v1022
    %1771 = vmatpush.msra.mxu0 %v1021
    %1772 = vmatpush.msra.mxu0 %v1020
    %1773 = vmatmul.f32.gmra.mxu0 %v1755
    %v1774 = vpop.f32.mrf.mxu0
    %v1775 = vadd.f32 %v1032, %v1774
    %1776 = vdwg.mxu0
    %v1777 = vmul.f32 %v1775, %v1775
    %v1779 = vsel %vm974, %v1777, 0
    %1781 = vmatpush.msra.mxu0 0.0
    %1782 = vmatpush.msra.mxu0 0.0
    %1783 = vmatpush.msra.mxu0 0.0
    %1784 = vmatpush.msra.mxu0 0.0
    %1785 = vmatpush.msra.mxu0 0.0
    %1786 = vmatpush.msra.mxu0 0.0
    %1787 = vmatpush.msra.mxu0 %v973
    %1788 = vmatpush.msra.mxu0 %v972
    %1789 = vmatpush.msra.mxu0 %v971
    %1790 = vmatpush.msra.mxu0 %v970
    %1791 = vmatpush.msra.mxu0 %v969
    %1792 = vmatpush.msra.mxu0 %v968
    %1793 = vmatpush.msra.mxu0 %v967
    %1794 = vmatpush.msra.mxu0 %v966
    %1795 = vmatpush.msra.mxu0 %v965
    %1796 = vmatpush.msra.mxu0 %v964
    %1797 = vmatmul.f32.gmra.mxu0 %v1779
    %v1798 = vpop.f32.mrf.mxu0
    %v1799 = vadd.f32 1e-05, %v1798
    %1800 = vdwg.mxu0
    %v1801 = vrsqrt.pop %v1799
    %v1802 = vmul.f32 %v1801, %v1799
    %v1803 = vmul.f32 %v1802, %v1801
    %v1804 = vmul.f32 0.5, %v1803
    %v1805 = vsub.f32 1.5, %v1804
    %v1806 = vmul.f32 %v1801, %v1805
    %vm1807 = vweird.f32 %v1799
    %vm1808 = vweird.f32 %v1801
    %vm1809 = vmor %vm1807, %vm1808
    %v1810 = vsel %vm1809, %v1801, %v1806
    %v1811 = vmul.f32 %v1775, %v1810
    %v1812 = vmul.f32 %v1811, %v1095
    %v1813 = vadd.f32 %v1812, %v1101
    %v1814 = vadd.f32 %v1753, %v1813
    %v1816 = vsel %vm974, %v1814, 0
    %1818 = vmatpush.msra.mxu0 0.0
    %1819 = vmatpush.msra.mxu0 0.0
    %1820 = vmatpush.msra.mxu0 0.0
    %1821 = vmatpush.msra.mxu0 0.0
    %1822 = vmatpush.msra.mxu0 0.0
    %1823 = vmatpush.msra.mxu0 0.0
    %1824 = vmatpush.msra.mxu0 %v1114
    %1825 = vmatpush.msra.mxu0 %v1113
    %1826 = vmatpush.msra.mxu0 %v1112
    %1827 = vmatpush.msra.mxu0 %v1111
    %1828 = vmatpush.msra.mxu0 %v1110
    %1829 = vmatpush.msra.mxu0 %v1109
    %1830 = vmatpush.msra.mxu0 %v1108
    %1831 = vmatpush.msra.mxu0 %v1107
    %1832 = vmatpush.msra.mxu0 %v1106
    %1833 = vmatpush.msra.mxu0 %v1105
    %1834 = vmatmul.f32.gmra.mxu0 %v1816
    %v1835 = vpop.f32.mrf.mxu0
    %v1836 = vadd.f32 %v1117, %v1835
    %1837 = vdwg.mxu0
    %v1838 = vadd.f32 %v1836, %v1504
    %1839 = vmatpush.msra.mxu0 0.0
    %1840 = vmatpush.msra.mxu0 0.0
    %1841 = vmatpush.msra.mxu0 0.0
    %1842 = vmatpush.msra.mxu0 0.0
    %1843 = vmatpush.msra.mxu0 0.0
    %1844 = vmatpush.msra.mxu0 0.0
    %1845 = vmatpush.msra.mxu0 %v1152
    %1846 = vmatpush.msra.mxu0 %v1151
    %1847 = vmatpush.msra.mxu0 %v1150
    %1848 = vmatpush.msra.mxu0 %v1149
    %1849 = vmatpush.msra.mxu0 %v1148
    %1850 = vmatpush.msra.mxu0 %v1147
    %1851 = vmatpush.msra.mxu0 %v1146
    %1852 = vmatpush.msra.mxu0 %v1145
    %1853 = vmatpush.msra.mxu0 %v1144
    %1854 = vmatpush.msra.mxu0 %v1143
    %1855 = vmatmul.f32.gmra.mxu0 %v1816
    %v1856 = vpop.f32.mrf.mxu0
    %v1857 = vadd.f32 %v1155, %v1856
    %1858 = vdwg.mxu0
    %v1859 = vadd.f32 %v1525, %v1857
    %1860 = vmatpush.msra.mxu0 0.0
    %1861 = vmatpush.msra.mxu0 0.0
    %1862 = vmatpush.msra.mxu0 0.0
    %1863 = vmatpush.msra.mxu0 0.0
    %1864 = vmatpush.msra.mxu0 0.0
    %1865 = vmatpush.msra.mxu0 0.0
    %1866 = vmatpush.msra.mxu0 %v1187
    %1867 = vmatpush.msra.mxu0 %v1186
    %1868 = vmatpush.msra.mxu0 %v1185
    %1869 = vmatpush.msra.mxu0 %v1184
    %1870 = vmatpush.msra.mxu0 %v1183
    %1871 = vmatpush.msra.mxu0 %v1182
    %1872 = vmatpush.msra.mxu0 %v1181
    %1873 = vmatpush.msra.mxu0 %v1180
    %1874 = vmatpush.msra.mxu0 %v1179
    %1875 = vmatpush.msra.mxu0 %v1178
    %1876 = vmatmul.f32.gmra.mxu0 %v1816
    %v1877 = vpop.f32.mrf.mxu0
    %v1878 = vadd.f32 %v1190, %v1877
    %1879 = vdwg.mxu0
    %1881 = vrot.lane.b32.xlu0 %v1878, 64
    %v1882 = vpop.permute.xlu0 %1881
    %v1884 = vadd.f32 %v1550, %v1882
    %1885 = vmatpush.msra.mxu0 0.0
    %1886 = vmatpush.msra.mxu0 0.0
    %1887 = vmatpush.msra.mxu0 0.0
    %1888 = vmatpush.msra.mxu0 0.0
    %1889 = vmatpush.msra.mxu0 0.0
    %1890 = vmatpush.msra.mxu0 0.0
    %1891 = vmatpush.msra.mxu0 0.0
    %1892 = vmatpush.msra.mxu0 0.0
    %1893 = vmatpush.msra.mxu0 0.0
    %1894 = vmatpush.msra.mxu0 0.0
    %1895 = vmatpush.msra.mxu0 0.0
    %1896 = vmatpush.msra.mxu0 0.0
    %1897 = vmatpush.msra.mxu0 %v168
    %1898 = vmatpush.msra.mxu0 %v167
    %1899 = vmatpush.msra.mxu0 %v166
    %1900 = vmatpush.msra.mxu0 %v165
    %1901 = vmatmul.f32.gmra.mxu0 %v1632
    %v1902 = vpop.f32.mrf.mxu0
    %v1903 = vadd.f32 %v171, %v1902
    %1904 = vdwg.mxu0
    %1905 = vmatpush.msra.mxu0 0.0
    %1906 = vmatpush.msra.mxu0 0.0
    %1907 = vmatpush.msra.mxu0 0.0
    %1908 = vmatpush.msra.mxu0 0.0
    %1909 = vmatpush.msra.mxu0 0.0
    %1910 = vmatpush.msra.mxu0 0.0
    %1911 = vmatpush.msra.mxu0 0.0
    %1912 = vmatpush.msra.mxu0 0.0
    %1913 = vmatpush.msra.mxu0 0.0
    %1914 = vmatpush.msra.mxu0 0.0
    %1915 = vmatpush.msra.mxu0 0.0
    %1916 = vmatpush.msra.mxu0 0.0
    %1917 = vmatpush.msra.mxu0 %v200
    %1918 = vmatpush.msra.mxu0 %v199
    %1919 = vmatpush.msra.mxu0 %v198
    %1920 = vmatpush.msra.mxu0 %v197
    %1921 = vmatmul.f32.gmra.mxu0 %v1632
    %v1922 = vpop.f32.mrf.mxu0
    %v1923 = vadd.f32 %v203, %v1922
    %1924 = vdwg.mxu0
    %v1925 = vadd.f32 %v1859, %v1903
    %v1926 = vxor.u32 %v1925, 2147483648
    %v1927 = vmul.f32 %v1926, 1.442695
    %v1928 = vpow.pop %v1927
    %v1929 = vadd.f32 %v1928, 1.0
    %v1930 = vrcp.pop %v1929
    %v1931 = vmul.f32 %v1929, %v1930
    %v1932 = vsub.f32 1.0, %v1931
    %v1933 = vmul.f32 %v1930, %v1932
    %v1934 = vadd.f32 %v1930, %v1933
    %vm1935 = vweird.f32 %v1929
    %vm1936 = vweird.f32 %v1930
    %vm1937 = vmor %vm1935, %vm1936
    %v1938 = vsel %vm1937, %v1930, %v1934
    %v1939 = vand.u32 2147483647, %v1929
    %vm1940 = vcmp.eq.f32.partialorder %v1939, 8.507059e+37
    %v1941 = vand.u32 %v1929, 2147483648
    %v1942 = vor.u32 1.1754944e-38, %v1941
    %v1943 = vsel %vm1940, %v1942, %v1938
    %v1944 = vmul.f32 1.0, %v1943
    %v1945 = vmul.f32 %v1944, %v1923
    %1947 = vrot.lane.b32.xlu0 %v1945, 64
    %v1948 = vpop.permute.xlu0 %1947
    %v1950 = vadd.f32 %v1884, %v1948
    %v1951 = vtanh.pop %v1950
    %v1952 = vsub.f32 %v1628, %v1951
    %1954 = vrot.lane.b32.xlu0 %v1952, 96
    %v1955 = vpop.permute.xlu0 %1954
    %v1957 = vmul.f32 %v1944, %v1955
    %1959 = vrot.lane.b32.xlu0 %v1957, 32
    %v1960 = vpop.permute.xlu0 %1959
    %v1962 = vadd.f32 %v1951, %v1960
    %1964 = vrot.lane.b32.xlu0 %v1962, 64
    %v1965 = vpop.permute.xlu0 %1964
    %v1966 = vsel %vm173, %v1965, 0
    %1968 = vmatpush.msra.mxu0 0.0
    %1969 = vmatpush.msra.mxu0 0.0
    %1970 = vmatpush.msra.mxu0 0.0
    %1971 = vmatpush.msra.mxu0 0.0
    %1972 = vmatpush.msra.mxu0 0.0
    %1973 = vmatpush.msra.mxu0 0.0
    %1974 = vmatpush.msra.mxu0 0.0
    %1975 = vmatpush.msra.mxu0 0.0
    %1976 = vmatpush.msra.mxu0 0.0
    %1977 = vmatpush.msra.mxu0 0.0
    %1978 = vmatpush.msra.mxu0 0.0
    %1979 = vmatpush.msra.mxu0 0.0
    %1980 = vmatpush.msra.mxu0 %v854
    %1981 = vmatpush.msra.mxu0 %v853
    %1982 = vmatpush.msra.mxu0 %v852
    %1983 = vmatpush.msra.mxu0 %v851
    %1984 = vmatmul.f32.gmra.mxu0 %v1966
    %v1985 = vpop.f32.mrf.mxu0
    %v1986 = vadd.f32 %v857, %v1985
    %1987 = vdwg.mxu0
    %1988 = vrot.lane.b32.xlu0 %v1142, 16
    %v1989 = vpop.permute.xlu0 %1988
    %1991 = vrot.lane.b32.xlu0 %v1504, 32
    %v1992 = vpop.permute.xlu0 %1991
    %1995 = vrot.lane.b32.xlu0 %v1838, 48
    %v1996 = vpop.permute.xlu0 %1995
    %v1998 = vsel %vm89, %v882, %v1989
    %v1999 = vsel %vm173, %v1998, %v1992
    %v2000 = vsel %vm895, %v1999, %v1996
    %2002 = vrot.lane.b32.xlu0 %v1986, 64
    %v2003 = vpop.permute.xlu0 %2002
    %v2005 = vsel %vm901, %v2000, %v2003
    %2006 = vmatpush.msra.mxu0 0.0
    %2007 = vmatpush.msra.mxu0 0.0
    %2008 = vmatpush.msra.mxu0 0.0
    %2009 = vmatpush.msra.mxu0 0.0
    %2010 = vmatpush.msra.mxu0 0.0
    %2011 = vmatpush.msra.mxu0 0.0
    %2012 = vmatpush.msra.mxu0 0.0
    %2013 = vmatpush.msra.mxu0 0.0
    %2014 = vmatpush.msra.mxu0 0.0
    %2015 = vmatpush.msra.mxu0 0.0
    %2016 = vmatpush.msra.mxu0 0.0
    %2017 = vmatpush.msra.mxu0 0.0
    %2018 = vmatpush.msra.mxu0 %v914
    %2019 = vmatpush.msra.mxu0 %v913
    %2020 = vmatpush.msra.mxu0 %v912
    %2021 = vmatpush.msra.mxu0 %v911
    %2022 = vmatmul.f32.gmra.mxu0 %v1966
    %v2023 = vpop.f32.mrf.mxu0
    %v2024 = vadd.f32 0.0, %v2023
    %2025 = vdwg.mxu0
    %v2027 = vsel %vm901, %v2000, 0
    %2029 = vmatpush.msra.mxu0 0.0
    %2030 = vmatpush.msra.mxu0 0.0
    %2031 = vmatpush.msra.mxu0 0.0
    %2032 = vmatpush.msra.mxu0 0.0
    %2033 = vmatpush.msra.mxu0 0.0
    %2034 = vmatpush.msra.mxu0 0.0
    %2035 = vmatpush.msra.mxu0 0.0
    %2036 = vmatpush.msra.mxu0 0.0
    %2037 = vmatpush.msra.mxu0 %v910
    %2038 = vmatpush.msra.mxu0 %v909
    %2039 = vmatpush.msra.mxu0 %v908
    %2040 = vmatpush.msra.mxu0 %v907
    %2041 = vmatpush.msra.mxu0 %v906
    %2042 = vmatpush.msra.mxu0 %v905
    %2043 = vmatpush.msra.mxu0 %v904
    %2044 = vmatpush.msra.mxu0 %v903
    %2045 = vmatmul.f32.gmra.mxu0 %v2027
    %v2046 = vpop.f32.mrf.mxu0
    %v2047 = vadd.f32 %v2024, %v2046
    %2048 = vdwg.mxu0
    %v2049 = vadd.f32 %v2047, %v960
    %v2050 = vmul.f32 %v2049, %v2049
    %v2052 = vsel %vm974, %v2050, 0
    %2054 = vmatpush.msra.mxu0 0.0
    %2055 = vmatpush.msra.mxu0 0.0
    %2056 = vmatpush.msra.mxu0 0.0
    %2057 = vmatpush.msra.mxu0 0.0
    %2058 = vmatpush.msra.mxu0 0.0
    %2059 = vmatpush.msra.mxu0 0.0
    %2060 = vmatpush.msra.mxu0 %v973
    %2061 = vmatpush.msra.mxu0 %v972
    %2062 = vmatpush.msra.mxu0 %v971
    %2063 = vmatpush.msra.mxu0 %v970
    %2064 = vmatpush.msra.mxu0 %v969
    %2065 = vmatpush.msra.mxu0 %v968
    %2066 = vmatpush.msra.mxu0 %v967
    %2067 = vmatpush.msra.mxu0 %v966
    %2068 = vmatpush.msra.mxu0 %v965
    %2069 = vmatpush.msra.mxu0 %v964
    %2070 = vmatmul.f32.gmra.mxu0 %v2052
    %v2071 = vpop.f32.mrf.mxu0
    %v2072 = vadd.f32 1e-05, %v2071
    %2073 = vdwg.mxu0
    %v2074 = vrsqrt.pop %v2072
    %v2075 = vmul.f32 %v2074, %v2072
    %v2076 = vmul.f32 %v2075, %v2074
    %v2077 = vmul.f32 0.5, %v2076
    %v2078 = vsub.f32 1.5, %v2077
    %v2079 = vmul.f32 %v2074, %v2078
    %vm2080 = vweird.f32 %v2072
    %vm2081 = vweird.f32 %v2074
    %vm2082 = vmor %vm2080, %vm2081
    %v2083 = vsel %vm2082, %v2074, %v2079
    %v2084 = vmul.f32 %v2049, %v2083
    %v2085 = vmul.f32 %v2084, %v1011
    %v2086 = vadd.f32 %v2085, %v1016
    %v2087 = vadd.f32 %v2005, %v2086
    %v2089 = vsel %vm974, %v2087, 0
    %2091 = vmatpush.msra.mxu0 0.0
    %2092 = vmatpush.msra.mxu0 0.0
    %2093 = vmatpush.msra.mxu0 0.0
    %2094 = vmatpush.msra.mxu0 0.0
    %2095 = vmatpush.msra.mxu0 0.0
    %2096 = vmatpush.msra.mxu0 0.0
    %2097 = vmatpush.msra.mxu0 %v1029
    %2098 = vmatpush.msra.mxu0 %v1028
    %2099 = vmatpush.msra.mxu0 %v1027
    %2100 = vmatpush.msra.mxu0 %v1026
    %2101 = vmatpush.msra.mxu0 %v1025
    %2102 = vmatpush.msra.mxu0 %v1024
    %2103 = vmatpush.msra.mxu0 %v1023
    %2104 = vmatpush.msra.mxu0 %v1022
    %2105 = vmatpush.msra.mxu0 %v1021
    %2106 = vmatpush.msra.mxu0 %v1020
    %2107 = vmatmul.f32.gmra.mxu0 %v2089
    %v2108 = vpop.f32.mrf.mxu0
    %v2109 = vadd.f32 %v1032, %v2108
    %2110 = vdwg.mxu0
    %v2111 = vmul.f32 %v2109, %v2109
    %v2113 = vsel %vm974, %v2111, 0
    %2115 = vmatpush.msra.mxu0 0.0
    %2116 = vmatpush.msra.mxu0 0.0
    %2117 = vmatpush.msra.mxu0 0.0
    %2118 = vmatpush.msra.mxu0 0.0
    %2119 = vmatpush.msra.mxu0 0.0
    %2120 = vmatpush.msra.mxu0 0.0
    %2121 = vmatpush.msra.mxu0 %v973
    %2122 = vmatpush.msra.mxu0 %v972
    %2123 = vmatpush.msra.mxu0 %v971
    %2124 = vmatpush.msra.mxu0 %v970
    %2125 = vmatpush.msra.mxu0 %v969
    %2126 = vmatpush.msra.mxu0 %v968
    %2127 = vmatpush.msra.mxu0 %v967
    %2128 = vmatpush.msra.mxu0 %v966
    %2129 = vmatpush.msra.mxu0 %v965
    %2130 = vmatpush.msra.mxu0 %v964
    %2131 = vmatmul.f32.gmra.mxu0 %v2113
    %v2132 = vpop.f32.mrf.mxu0
    %v2133 = vadd.f32 1e-05, %v2132
    %2134 = vdwg.mxu0
    %v2135 = vrsqrt.pop %v2133
    %v2136 = vmul.f32 %v2135, %v2133
    %v2137 = vmul.f32 %v2136, %v2135
    %v2138 = vmul.f32 0.5, %v2137
    %v2139 = vsub.f32 1.5, %v2138
    %v2140 = vmul.f32 %v2135, %v2139
    %vm2141 = vweird.f32 %v2133
    %vm2142 = vweird.f32 %v2135
    %vm2143 = vmor %vm2141, %vm2142
    %v2144 = vsel %vm2143, %v2135, %v2140
    %v2145 = vmul.f32 %v2109, %v2144
    %v2146 = vmul.f32 %v2145, %v1095
    %v2147 = vadd.f32 %v2146, %v1101
    %v2148 = vadd.f32 %v2087, %v2147
    %v2150 = vsel %vm974, %v2148, 0
    %2152 = vmatpush.msra.mxu0 0.0
    %2153 = vmatpush.msra.mxu0 0.0
    %2154 = vmatpush.msra.mxu0 0.0
    %2155 = vmatpush.msra.mxu0 0.0
    %2156 = vmatpush.msra.mxu0 0.0
    %2157 = vmatpush.msra.mxu0 0.0
    %2158 = vmatpush.msra.mxu0 %v1114
    %2159 = vmatpush.msra.mxu0 %v1113
    %2160 = vmatpush.msra.mxu0 %v1112
    %2161 = vmatpush.msra.mxu0 %v1111
    %2162 = vmatpush.msra.mxu0 %v1110
    %2163 = vmatpush.msra.mxu0 %v1109
    %2164 = vmatpush.msra.mxu0 %v1108
    %2165 = vmatpush.msra.mxu0 %v1107
    %2166 = vmatpush.msra.mxu0 %v1106
    %2167 = vmatpush.msra.mxu0 %v1105
    %2168 = vmatmul.f32.gmra.mxu0 %v2150
    %v2169 = vpop.f32.mrf.mxu0
    %v2170 = vadd.f32 %v1117, %v2169
    %2171 = vdwg.mxu0
    %v2172 = vadd.f32 %v2170, %v1838
    %2173 = vmatpush.msra.mxu0 0.0
    %2174 = vmatpush.msra.mxu0 0.0
    %2175 = vmatpush.msra.mxu0 0.0
    %2176 = vmatpush.msra.mxu0 0.0
    %2177 = vmatpush.msra.mxu0 0.0
    %2178 = vmatpush.msra.mxu0 0.0
    %2179 = vmatpush.msra.mxu0 %v1152
    %2180 = vmatpush.msra.mxu0 %v1151
    %2181 = vmatpush.msra.mxu0 %v1150
    %2182 = vmatpush.msra.mxu0 %v1149
    %2183 = vmatpush.msra.mxu0 %v1148
    %2184 = vmatpush.msra.mxu0 %v1147
    %2185 = vmatpush.msra.mxu0 %v1146
    %2186 = vmatpush.msra.mxu0 %v1145
    %2187 = vmatpush.msra.mxu0 %v1144
    %2188 = vmatpush.msra.mxu0 %v1143
    %2189 = vmatmul.f32.gmra.mxu0 %v2150
    %v2190 = vpop.f32.mrf.mxu0
    %v2191 = vadd.f32 %v1155, %v2190
    %2192 = vdwg.mxu0
    %v2193 = vadd.f32 %v1859, %v2191
    %2194 = vmatpush.msra.mxu0 0.0
    %2195 = vmatpush.msra.mxu0 0.0
    %2196 = vmatpush.msra.mxu0 0.0
    %2197 = vmatpush.msra.mxu0 0.0
    %2198 = vmatpush.msra.mxu0 0.0
    %2199 = vmatpush.msra.mxu0 0.0
    %2200 = vmatpush.msra.mxu0 %v1187
    %2201 = vmatpush.msra.mxu0 %v1186
    %2202 = vmatpush.msra.mxu0 %v1185
    %2203 = vmatpush.msra.mxu0 %v1184
    %2204 = vmatpush.msra.mxu0 %v1183
    %2205 = vmatpush.msra.mxu0 %v1182
    %2206 = vmatpush.msra.mxu0 %v1181
    %2207 = vmatpush.msra.mxu0 %v1180
    %2208 = vmatpush.msra.mxu0 %v1179
    %2209 = vmatpush.msra.mxu0 %v1178
    %2210 = vmatmul.f32.gmra.mxu0 %v2150
    %v2211 = vpop.f32.mrf.mxu0
    %v2212 = vadd.f32 %v1190, %v2211
    %2213 = vdwg.mxu0
    %2215 = vrot.lane.b32.xlu0 %v2212, 64
    %v2216 = vpop.permute.xlu0 %2215
    %v2218 = vadd.f32 %v1884, %v2216
    %2219 = vmatpush.msra.mxu0 0.0
    %2220 = vmatpush.msra.mxu0 0.0
    %2221 = vmatpush.msra.mxu0 0.0
    %2222 = vmatpush.msra.mxu0 0.0
    %2223 = vmatpush.msra.mxu0 0.0
    %2224 = vmatpush.msra.mxu0 0.0
    %2225 = vmatpush.msra.mxu0 0.0
    %2226 = vmatpush.msra.mxu0 0.0
    %2227 = vmatpush.msra.mxu0 0.0
    %2228 = vmatpush.msra.mxu0 0.0
    %2229 = vmatpush.msra.mxu0 0.0
    %2230 = vmatpush.msra.mxu0 0.0
    %2231 = vmatpush.msra.mxu0 %v168
    %2232 = vmatpush.msra.mxu0 %v167
    %2233 = vmatpush.msra.mxu0 %v166
    %2234 = vmatpush.msra.mxu0 %v165
    %2235 = vmatmul.f32.gmra.mxu0 %v1966
    %v2236 = vpop.f32.mrf.mxu0
    %v2237 = vadd.f32 %v171, %v2236
    %2238 = vdwg.mxu0
    %2239 = vmatpush.msra.mxu0 0.0
    %2240 = vmatpush.msra.mxu0 0.0
    %2241 = vmatpush.msra.mxu0 0.0
    %2242 = vmatpush.msra.mxu0 0.0
    %2243 = vmatpush.msra.mxu0 0.0
    %2244 = vmatpush.msra.mxu0 0.0
    %2245 = vmatpush.msra.mxu0 0.0
    %2246 = vmatpush.msra.mxu0 0.0
    %2247 = vmatpush.msra.mxu0 0.0
    %2248 = vmatpush.msra.mxu0 0.0
    %2249 = vmatpush.msra.mxu0 0.0
    %2250 = vmatpush.msra.mxu0 0.0
    %2251 = vmatpush.msra.mxu0 %v200
    %2252 = vmatpush.msra.mxu0 %v199
    %2253 = vmatpush.msra.mxu0 %v198
    %2254 = vmatpush.msra.mxu0 %v197
    %2255 = vmatmul.f32.gmra.mxu0 %v1966
    %v2256 = vpop.f32.mrf.mxu0
    %v2257 = vadd.f32 %v203, %v2256
    %2258 = vdwg.mxu0
    %v2259 = vadd.f32 %v2193, %v2237
    %v2260 = vxor.u32 %v2259, 2147483648
    %v2261 = vmul.f32 %v2260, 1.442695
    %v2262 = vpow.pop %v2261
    %v2263 = vadd.f32 %v2262, 1.0
    %v2264 = vrcp.pop %v2263
    %v2265 = vmul.f32 %v2263, %v2264
    %v2266 = vsub.f32 1.0, %v2265
    %v2267 = vmul.f32 %v2264, %v2266
    %v2268 = vadd.f32 %v2264, %v2267
    %vm2269 = vweird.f32 %v2263
    %vm2270 = vweird.f32 %v2264
    %vm2271 = vmor %vm2269, %vm2270
    %v2272 = vsel %vm2271, %v2264, %v2268
    %v2273 = vand.u32 2147483647, %v2263
    %vm2274 = vcmp.eq.f32.partialorder %v2273, 8.507059e+37
    %v2275 = vand.u32 %v2263, 2147483648
    %v2276 = vor.u32 1.1754944e-38, %v2275
    %v2277 = vsel %vm2274, %v2276, %v2272
    %v2278 = vmul.f32 1.0, %v2277
    %v2279 = vmul.f32 %v2278, %v2257
    %2281 = vrot.lane.b32.xlu0 %v2279, 64
    %v2282 = vpop.permute.xlu0 %2281
    %v2284 = vadd.f32 %v2218, %v2282
    %v2285 = vtanh.pop %v2284
    %v2286 = vsub.f32 %v1962, %v2285
    %2288 = vrot.lane.b32.xlu0 %v2286, 96
    %v2289 = vpop.permute.xlu0 %2288
    %v2291 = vmul.f32 %v2278, %v2289
    %2293 = vrot.lane.b32.xlu0 %v2291, 32
    %v2294 = vpop.permute.xlu0 %2293
    %v2296 = vadd.f32 %v2285, %v2294
    %2298 = vrot.lane.b32.xlu0 %v2296, 64
    %v2299 = vpop.permute.xlu0 %2298
    %v2300 = vsel %vm173, %v2299, 0
    %2302 = vmatpush.msra.mxu0 0.0
    %2303 = vmatpush.msra.mxu0 0.0
    %2304 = vmatpush.msra.mxu0 0.0
    %2305 = vmatpush.msra.mxu0 0.0
    %2306 = vmatpush.msra.mxu0 0.0
    %2307 = vmatpush.msra.mxu0 0.0
    %2308 = vmatpush.msra.mxu0 0.0
    %2309 = vmatpush.msra.mxu0 0.0
    %2310 = vmatpush.msra.mxu0 0.0
    %2311 = vmatpush.msra.mxu0 0.0
    %2312 = vmatpush.msra.mxu0 0.0
    %2313 = vmatpush.msra.mxu0 0.0
    %2314 = vmatpush.msra.mxu0 %v854
    %2315 = vmatpush.msra.mxu0 %v853
    %2316 = vmatpush.msra.mxu0 %v852
    %2317 = vmatpush.msra.mxu0 %v851
    %2318 = vmatmul.f32.gmra.mxu0 %v2300
    %v2319 = vpop.f32.mrf.mxu0
    %v2320 = vadd.f32 %v857, %v2319
    %2321 = vdwg.mxu0
    %2322 = vrot.lane.b32.xlu0 %v1504, 16
    %v2323 = vpop.permute.xlu0 %2322
    %2325 = vrot.lane.b32.xlu0 %v1838, 32
    %v2326 = vpop.permute.xlu0 %2325
    %2329 = vrot.lane.b32.xlu0 %v2172, 48
    %v2330 = vpop.permute.xlu0 %2329
    %v2332 = vsel %vm89, %v882, %v2323
    %v2333 = vsel %vm173, %v2332, %v2326
    %v2334 = vsel %vm895, %v2333, %v2330
    %2336 = vrot.lane.b32.xlu0 %v2320, 64
    %v2337 = vpop.permute.xlu0 %2336
    %v2339 = vsel %vm901, %v2334, %v2337
    %2340 = vmatpush.msra.mxu0 0.0
    %2341 = vmatpush.msra.mxu0 0.0
    %2342 = vmatpush.msra.mxu0 0.0
    %2343 = vmatpush.msra.mxu0 0.0
    %2344 = vmatpush.msra.mxu0 0.0
    %2345 = vmatpush.msra.mxu0 0.0
    %2346 = vmatpush.msra.mxu0 0.0
    %2347 = vmatpush.msra.mxu0 0.0
    %2348 = vmatpush.msra.mxu0 0.0
    %2349 = vmatpush.msra.mxu0 0.0
    %2350 = vmatpush.msra.mxu0 0.0
    %2351 = vmatpush.msra.mxu0 0.0
    %2352 = vmatpush.msra.mxu0 %v914
    %2353 = vmatpush.msra.mxu0 %v913
    %2354 = vmatpush.msra.mxu0 %v912
    %2355 = vmatpush.msra.mxu0 %v911
    %2356 = vmatmul.f32.gmra.mxu0 %v2300
    %v2357 = vpop.f32.mrf.mxu0
    %v2358 = vadd.f32 0.0, %v2357
    %2359 = vdwg.mxu0
    %v2361 = vsel %vm901, %v2334, 0
    %2363 = vmatpush.msra.mxu0 0.0
    %2364 = vmatpush.msra.mxu0 0.0
    %2365 = vmatpush.msra.mxu0 0.0
    %2366 = vmatpush.msra.mxu0 0.0
    %2367 = vmatpush.msra.mxu0 0.0
    %2368 = vmatpush.msra.mxu0 0.0
    %2369 = vmatpush.msra.mxu0 0.0
    %2370 = vmatpush.msra.mxu0 0.0
    %2371 = vmatpush.msra.mxu0 %v910
    %2372 = vmatpush.msra.mxu0 %v909
    %2373 = vmatpush.msra.mxu0 %v908
    %2374 = vmatpush.msra.mxu0 %v907
    %2375 = vmatpush.msra.mxu0 %v906
    %2376 = vmatpush.msra.mxu0 %v905
    %2377 = vmatpush.msra.mxu0 %v904
    %2378 = vmatpush.msra.mxu0 %v903
    %2379 = vmatmul.f32.gmra.mxu0 %v2361
    %v2380 = vpop.f32.mrf.mxu0
    %v2381 = vadd.f32 %v2358, %v2380
    %2382 = vdwg.mxu0
    %v2383 = vadd.f32 %v2381, %v960
    %v2384 = vmul.f32 %v2383, %v2383
    %v2386 = vsel %vm974, %v2384, 0
    %2388 = vmatpush.msra.mxu0 0.0
    %2389 = vmatpush.msra.mxu0 0.0
    %2390 = vmatpush.msra.mxu0 0.0
    %2391 = vmatpush.msra.mxu0 0.0
    %2392 = vmatpush.msra.mxu0 0.0
    %2393 = vmatpush.msra.mxu0 0.0
    %2394 = vmatpush.msra.mxu0 %v973
    %2395 = vmatpush.msra.mxu0 %v972
    %2396 = vmatpush.msra.mxu0 %v971
    %2397 = vmatpush.msra.mxu0 %v970
    %2398 = vmatpush.msra.mxu0 %v969
    %2399 = vmatpush.msra.mxu0 %v968
    %2400 = vmatpush.msra.mxu0 %v967
    %2401 = vmatpush.msra.mxu0 %v966
    %2402 = vmatpush.msra.mxu0 %v965
    %2403 = vmatpush.msra.mxu0 %v964
    %2404 = vmatmul.f32.gmra.mxu0 %v2386
    %v2405 = vpop.f32.mrf.mxu0
    %v2406 = vadd.f32 1e-05, %v2405
    %2407 = vdwg.mxu0
    %v2408 = vrsqrt.pop %v2406
    %v2409 = vmul.f32 %v2408, %v2406
    %v2410 = vmul.f32 %v2409, %v2408
    %v2411 = vmul.f32 0.5, %v2410
    %v2412 = vsub.f32 1.5, %v2411
    %v2413 = vmul.f32 %v2408, %v2412
    %vm2414 = vweird.f32 %v2406
    %vm2415 = vweird.f32 %v2408
    %vm2416 = vmor %vm2414, %vm2415
    %v2417 = vsel %vm2416, %v2408, %v2413
    %v2418 = vmul.f32 %v2383, %v2417
    %v2419 = vmul.f32 %v2418, %v1011
    %v2420 = vadd.f32 %v2419, %v1016
    %v2421 = vadd.f32 %v2339, %v2420
    %v2423 = vsel %vm974, %v2421, 0
    %2425 = vmatpush.msra.mxu0 0.0
    %2426 = vmatpush.msra.mxu0 0.0
    %2427 = vmatpush.msra.mxu0 0.0
    %2428 = vmatpush.msra.mxu0 0.0
    %2429 = vmatpush.msra.mxu0 0.0
    %2430 = vmatpush.msra.mxu0 0.0
    %2431 = vmatpush.msra.mxu0 %v1029
    %2432 = vmatpush.msra.mxu0 %v1028
    %2433 = vmatpush.msra.mxu0 %v1027
    %2434 = vmatpush.msra.mxu0 %v1026
    %2435 = vmatpush.msra.mxu0 %v1025
    %2436 = vmatpush.msra.mxu0 %v1024
    %2437 = vmatpush.msra.mxu0 %v1023
    %2438 = vmatpush.msra.mxu0 %v1022
    %2439 = vmatpush.msra.mxu0 %v1021
    %2440 = vmatpush.msra.mxu0 %v1020
    %2441 = vmatmul.f32.gmra.mxu0 %v2423
    %v2442 = vpop.f32.mrf.mxu0
    %v2443 = vadd.f32 %v1032, %v2442
    %2444 = vdwg.mxu0
    %v2445 = vmul.f32 %v2443, %v2443
    %v2447 = vsel %vm974, %v2445, 0
    %2449 = vmatpush.msra.mxu0 0.0
    %2450 = vmatpush.msra.mxu0 0.0
    %2451 = vmatpush.msra.mxu0 0.0
    %2452 = vmatpush.msra.mxu0 0.0
    %2453 = vmatpush.msra.mxu0 0.0
    %2454 = vmatpush.msra.mxu0 0.0
    %2455 = vmatpush.msra.mxu0 %v973
    %2456 = vmatpush.msra.mxu0 %v972
    %2457 = vmatpush.msra.mxu0 %v971
    %2458 = vmatpush.msra.mxu0 %v970
    %2459 = vmatpush.msra.mxu0 %v969
    %2460 = vmatpush.msra.mxu0 %v968
    %2461 = vmatpush.msra.mxu0 %v967
    %2462 = vmatpush.msra.mxu0 %v966
    %2463 = vmatpush.msra.mxu0 %v965
    %2464 = vmatpush.msra.mxu0 %v964
    %2465 = vmatmul.f32.gmra.mxu0 %v2447
    %v2466 = vpop.f32.mrf.mxu0
    %v2467 = vadd.f32 1e-05, %v2466
    %2468 = vdwg.mxu0
    %v2469 = vrsqrt.pop %v2467
    %v2470 = vmul.f32 %v2469, %v2467
    %v2471 = vmul.f32 %v2470, %v2469
    %v2472 = vmul.f32 0.5, %v2471
    %v2473 = vsub.f32 1.5, %v2472
    %v2474 = vmul.f32 %v2469, %v2473
    %vm2475 = vweird.f32 %v2467
    %vm2476 = vweird.f32 %v2469
    %vm2477 = vmor %vm2475, %vm2476
    %v2478 = vsel %vm2477, %v2469, %v2474
    %v2479 = vmul.f32 %v2443, %v2478
    %v2480 = vmul.f32 %v2479, %v1095
    %v2481 = vadd.f32 %v2480, %v1101
    %v2482 = vadd.f32 %v2421, %v2481
    %v2484 = vsel %vm974, %v2482, 0
    %2486 = vmatpush.msra.mxu0 0.0
    %2487 = vmatpush.msra.mxu0 0.0
    %2488 = vmatpush.msra.mxu0 0.0
    %2489 = vmatpush.msra.mxu0 0.0
    %2490 = vmatpush.msra.mxu0 0.0
    %2491 = vmatpush.msra.mxu0 0.0
    %2492 = vmatpush.msra.mxu0 %v1114
    %2493 = vmatpush.msra.mxu0 %v1113
    %2494 = vmatpush.msra.mxu0 %v1112
    %2495 = vmatpush.msra.mxu0 %v1111
    %2496 = vmatpush.msra.mxu0 %v1110
    %2497 = vmatpush.msra.mxu0 %v1109
    %2498 = vmatpush.msra.mxu0 %v1108
    %2499 = vmatpush.msra.mxu0 %v1107
    %2500 = vmatpush.msra.mxu0 %v1106
    %2501 = vmatpush.msra.mxu0 %v1105
    %2502 = vmatmul.f32.gmra.mxu0 %v2484
    %v2503 = vpop.f32.mrf.mxu0
    %v2504 = vadd.f32 %v1117, %v2503
    %2505 = vdwg.mxu0
    %v2506 = vadd.f32 %v2504, %v2172
    %2507 = vmatpush.msra.mxu0 0.0
    %2508 = vmatpush.msra.mxu0 0.0
    %2509 = vmatpush.msra.mxu0 0.0
    %2510 = vmatpush.msra.mxu0 0.0
    %2511 = vmatpush.msra.mxu0 0.0
    %2512 = vmatpush.msra.mxu0 0.0
    %2513 = vmatpush.msra.mxu0 %v1152
    %2514 = vmatpush.msra.mxu0 %v1151
    %2515 = vmatpush.msra.mxu0 %v1150
    %2516 = vmatpush.msra.mxu0 %v1149
    %2517 = vmatpush.msra.mxu0 %v1148
    %2518 = vmatpush.msra.mxu0 %v1147
    %2519 = vmatpush.msra.mxu0 %v1146
    %2520 = vmatpush.msra.mxu0 %v1145
    %2521 = vmatpush.msra.mxu0 %v1144
    %2522 = vmatpush.msra.mxu0 %v1143
    %2523 = vmatmul.f32.gmra.mxu0 %v2484
    %v2524 = vpop.f32.mrf.mxu0
    %v2525 = vadd.f32 %v1155, %v2524
    %2526 = vdwg.mxu0
    %v2527 = vadd.f32 %v2193, %v2525
    %2528 = vmatpush.msra.mxu0 0.0
    %2529 = vmatpush.msra.mxu0 0.0
    %2530 = vmatpush.msra.mxu0 0.0
    %2531 = vmatpush.msra.mxu0 0.0
    %2532 = vmatpush.msra.mxu0 0.0
    %2533 = vmatpush.msra.mxu0 0.0
    %2534 = vmatpush.msra.mxu0 %v1187
    %2535 = vmatpush.msra.mxu0 %v1186
    %2536 = vmatpush.msra.mxu0 %v1185
    %2537 = vmatpush.msra.mxu0 %v1184
    %2538 = vmatpush.msra.mxu0 %v1183
    %2539 = vmatpush.msra.mxu0 %v1182
    %2540 = vmatpush.msra.mxu0 %v1181
    %2541 = vmatpush.msra.mxu0 %v1180
    %2542 = vmatpush.msra.mxu0 %v1179
    %2543 = vmatpush.msra.mxu0 %v1178
    %2544 = vmatmul.f32.gmra.mxu0 %v2484
    %v2545 = vpop.f32.mrf.mxu0
    %v2546 = vadd.f32 %v1190, %v2545
    %2547 = vdwg.mxu0
    %2549 = vrot.lane.b32.xlu0 %v2546, 64
    %v2550 = vpop.permute.xlu0 %2549
    %v2552 = vadd.f32 %v2218, %v2550
    %2553 = vmatpush.msra.mxu0 0.0
    %2554 = vmatpush.msra.mxu0 0.0
    %2555 = vmatpush.msra.mxu0 0.0
    %2556 = vmatpush.msra.mxu0 0.0
    %2557 = vmatpush.msra.mxu0 0.0
    %2558 = vmatpush.msra.mxu0 0.0
    %2559 = vmatpush.msra.mxu0 0.0
    %2560 = vmatpush.msra.mxu0 0.0
    %2561 = vmatpush.msra.mxu0 0.0
    %2562 = vmatpush.msra.mxu0 0.0
    %2563 = vmatpush.msra.mxu0 0.0
    %2564 = vmatpush.msra.mxu0 0.0
    %2565 = vmatpush.msra.mxu0 %v168
    %2566 = vmatpush.msra.mxu0 %v167
    %2567 = vmatpush.msra.mxu0 %v166
    %2568 = vmatpush.msra.mxu0 %v165
    %2569 = vmatmul.f32.gmra.mxu0 %v2300
    %v2570 = vpop.f32.mrf.mxu0
    %v2571 = vadd.f32 %v171, %v2570
    %2572 = vdwg.mxu0
    %2573 = vmatpush.msra.mxu0 0.0
    %2574 = vmatpush.msra.mxu0 0.0
    %2575 = vmatpush.msra.mxu0 0.0
    %2576 = vmatpush.msra.mxu0 0.0
    %2577 = vmatpush.msra.mxu0 0.0
    %2578 = vmatpush.msra.mxu0 0.0
    %2579 = vmatpush.msra.mxu0 0.0
    %2580 = vmatpush.msra.mxu0 0.0
    %2581 = vmatpush.msra.mxu0 0.0
    %2582 = vmatpush.msra.mxu0 0.0
    %2583 = vmatpush.msra.mxu0 0.0
    %2584 = vmatpush.msra.mxu0 0.0
    %2585 = vmatpush.msra.mxu0 %v200
    %2586 = vmatpush.msra.mxu0 %v199
    %2587 = vmatpush.msra.mxu0 %v198
    %2588 = vmatpush.msra.mxu0 %v197
    %2589 = vmatmul.f32.gmra.mxu0 %v2300
    %v2590 = vpop.f32.mrf.mxu0
    %v2591 = vadd.f32 %v203, %v2590
    %2592 = vdwg.mxu0
    %v2593 = vadd.f32 %v2527, %v2571
    %v2594 = vxor.u32 %v2593, 2147483648
    %v2595 = vmul.f32 %v2594, 1.442695
    %v2596 = vpow.pop %v2595
    %v2597 = vadd.f32 %v2596, 1.0
    %v2598 = vrcp.pop %v2597
    %v2599 = vmul.f32 %v2597, %v2598
    %v2600 = vsub.f32 1.0, %v2599
    %v2601 = vmul.f32 %v2598, %v2600
    %v2602 = vadd.f32 %v2598, %v2601
    %vm2603 = vweird.f32 %v2597
    %vm2604 = vweird.f32 %v2598
    %vm2605 = vmor %vm2603, %vm2604
    %v2606 = vsel %vm2605, %v2598, %v2602
    %v2607 = vand.u32 2147483647, %v2597
    %vm2608 = vcmp.eq.f32.partialorder %v2607, 8.507059e+37
    %v2609 = vand.u32 %v2597, 2147483648
    %v2610 = vor.u32 1.1754944e-38, %v2609
    %v2611 = vsel %vm2608, %v2610, %v2606
    %v2612 = vmul.f32 1.0, %v2611
    %v2613 = vmul.f32 %v2612, %v2591
    %2615 = vrot.lane.b32.xlu0 %v2613, 64
    %v2616 = vpop.permute.xlu0 %2615
    %v2618 = vadd.f32 %v2552, %v2616
    %v2619 = vtanh.pop %v2618
    %v2620 = vsub.f32 %v2296, %v2619
    %2622 = vrot.lane.b32.xlu0 %v2620, 96
    %v2623 = vpop.permute.xlu0 %2622
    %v2625 = vmul.f32 %v2612, %v2623
    %2627 = vrot.lane.b32.xlu0 %v2625, 32
    %v2628 = vpop.permute.xlu0 %2627
    %v2630 = vadd.f32 %v2619, %v2628
    %2632 = vrot.lane.b32.xlu0 %v2630, 64
    %v2633 = vpop.permute.xlu0 %2632
    %v2634 = vsel %vm173, %v2633, 0
    %2636 = vmatpush.msra.mxu0 0.0
    %2637 = vmatpush.msra.mxu0 0.0
    %2638 = vmatpush.msra.mxu0 0.0
    %2639 = vmatpush.msra.mxu0 0.0
    %2640 = vmatpush.msra.mxu0 0.0
    %2641 = vmatpush.msra.mxu0 0.0
    %2642 = vmatpush.msra.mxu0 0.0
    %2643 = vmatpush.msra.mxu0 0.0
    %2644 = vmatpush.msra.mxu0 0.0
    %2645 = vmatpush.msra.mxu0 0.0
    %2646 = vmatpush.msra.mxu0 0.0
    %2647 = vmatpush.msra.mxu0 0.0
    %2648 = vmatpush.msra.mxu0 %v854
    %2649 = vmatpush.msra.mxu0 %v853
    %2650 = vmatpush.msra.mxu0 %v852
    %2651 = vmatpush.msra.mxu0 %v851
    %2652 = vmatmul.f32.gmra.mxu0 %v2634
    %v2653 = vpop.f32.mrf.mxu0
    %v2654 = vadd.f32 %v857, %v2653
    %2655 = vdwg.mxu0
    %2656 = vrot.lane.b32.xlu0 %v1838, 16
    %v2657 = vpop.permute.xlu0 %2656
    %2659 = vrot.lane.b32.xlu0 %v2172, 32
    %v2660 = vpop.permute.xlu0 %2659
    %2663 = vrot.lane.b32.xlu0 %v2506, 48
    %v2664 = vpop.permute.xlu0 %2663
    %v2666 = vsel %vm89, %v882, %v2657
    %v2667 = vsel %vm173, %v2666, %v2660
    %v2668 = vsel %vm895, %v2667, %v2664
    %2670 = vrot.lane.b32.xlu0 %v2654, 64
    %v2671 = vpop.permute.xlu0 %2670
    %v2673 = vsel %vm901, %v2668, %v2671
    %2674 = vmatpush.msra.mxu0 0.0
    %2675 = vmatpush.msra.mxu0 0.0
    %2676 = vmatpush.msra.mxu0 0.0
    %2677 = vmatpush.msra.mxu0 0.0
    %2678 = vmatpush.msra.mxu0 0.0
    %2679 = vmatpush.msra.mxu0 0.0
    %2680 = vmatpush.msra.mxu0 0.0
    %2681 = vmatpush.msra.mxu0 0.0
    %2682 = vmatpush.msra.mxu0 0.0
    %2683 = vmatpush.msra.mxu0 0.0
    %2684 = vmatpush.msra.mxu0 0.0
    %2685 = vmatpush.msra.mxu0 0.0
    %2686 = vmatpush.msra.mxu0 %v914
    %2687 = vmatpush.msra.mxu0 %v913
    %2688 = vmatpush.msra.mxu0 %v912
    %2689 = vmatpush.msra.mxu0 %v911
    %2690 = vmatmul.f32.gmra.mxu0 %v2634
    %v2691 = vpop.f32.mrf.mxu0
    %v2692 = vadd.f32 0.0, %v2691
    %2693 = vdwg.mxu0
    %v2695 = vsel %vm901, %v2668, 0
    %2697 = vmatpush.msra.mxu0 0.0
    %2698 = vmatpush.msra.mxu0 0.0
    %2699 = vmatpush.msra.mxu0 0.0
    %2700 = vmatpush.msra.mxu0 0.0
    %2701 = vmatpush.msra.mxu0 0.0
    %2702 = vmatpush.msra.mxu0 0.0
    %2703 = vmatpush.msra.mxu0 0.0
    %2704 = vmatpush.msra.mxu0 0.0
    %2705 = vmatpush.msra.mxu0 %v910
    %2706 = vmatpush.msra.mxu0 %v909
    %2707 = vmatpush.msra.mxu0 %v908
    %2708 = vmatpush.msra.mxu0 %v907
    %2709 = vmatpush.msra.mxu0 %v906
    %2710 = vmatpush.msra.mxu0 %v905
    %2711 = vmatpush.msra.mxu0 %v904
    %2712 = vmatpush.msra.mxu0 %v903
    %2713 = vmatmul.f32.gmra.mxu0 %v2695
    %v2714 = vpop.f32.mrf.mxu0
    %v2715 = vadd.f32 %v2692, %v2714
    %2716 = vdwg.mxu0
    %v2717 = vadd.f32 %v2715, %v960
    %v2718 = vmul.f32 %v2717, %v2717
    %v2720 = vsel %vm974, %v2718, 0
    %2722 = vmatpush.msra.mxu0 0.0
    %2723 = vmatpush.msra.mxu0 0.0
    %2724 = vmatpush.msra.mxu0 0.0
    %2725 = vmatpush.msra.mxu0 0.0
    %2726 = vmatpush.msra.mxu0 0.0
    %2727 = vmatpush.msra.mxu0 0.0
    %2728 = vmatpush.msra.mxu0 %v973
    %2729 = vmatpush.msra.mxu0 %v972
    %2730 = vmatpush.msra.mxu0 %v971
    %2731 = vmatpush.msra.mxu0 %v970
    %2732 = vmatpush.msra.mxu0 %v969
    %2733 = vmatpush.msra.mxu0 %v968
    %2734 = vmatpush.msra.mxu0 %v967
    %2735 = vmatpush.msra.mxu0 %v966
    %2736 = vmatpush.msra.mxu0 %v965
    %2737 = vmatpush.msra.mxu0 %v964
    %2738 = vmatmul.f32.gmra.mxu0 %v2720
    %v2739 = vpop.f32.mrf.mxu0
    %v2740 = vadd.f32 1e-05, %v2739
    %2741 = vdwg.mxu0
    %v2742 = vrsqrt.pop %v2740
    %v2743 = vmul.f32 %v2742, %v2740
    %v2744 = vmul.f32 %v2743, %v2742
    %v2745 = vmul.f32 0.5, %v2744
    %v2746 = vsub.f32 1.5, %v2745
    %v2747 = vmul.f32 %v2742, %v2746
    %vm2748 = vweird.f32 %v2740
    %vm2749 = vweird.f32 %v2742
    %vm2750 = vmor %vm2748, %vm2749
    %v2751 = vsel %vm2750, %v2742, %v2747
    %v2752 = vmul.f32 %v2717, %v2751
    %v2753 = vmul.f32 %v2752, %v1011
    %v2754 = vadd.f32 %v2753, %v1016
    %v2755 = vadd.f32 %v2673, %v2754
    %v2757 = vsel %vm974, %v2755, 0
    %2759 = vmatpush.msra.mxu0 0.0
    %2760 = vmatpush.msra.mxu0 0.0
    %2761 = vmatpush.msra.mxu0 0.0
    %2762 = vmatpush.msra.mxu0 0.0
    %2763 = vmatpush.msra.mxu0 0.0
    %2764 = vmatpush.msra.mxu0 0.0
    %2765 = vmatpush.msra.mxu0 %v1029
    %2766 = vmatpush.msra.mxu0 %v1028
    %2767 = vmatpush.msra.mxu0 %v1027
    %2768 = vmatpush.msra.mxu0 %v1026
    %2769 = vmatpush.msra.mxu0 %v1025
    %2770 = vmatpush.msra.mxu0 %v1024
    %2771 = vmatpush.msra.mxu0 %v1023
    %2772 = vmatpush.msra.mxu0 %v1022
    %2773 = vmatpush.msra.mxu0 %v1021
    %2774 = vmatpush.msra.mxu0 %v1020
    %2775 = vmatmul.f32.gmra.mxu0 %v2757
    %v2776 = vpop.f32.mrf.mxu0
    %v2777 = vadd.f32 %v1032, %v2776
    %2778 = vdwg.mxu0
    %v2779 = vmul.f32 %v2777, %v2777
    %v2781 = vsel %vm974, %v2779, 0
    %2783 = vmatpush.msra.mxu0 0.0
    %2784 = vmatpush.msra.mxu0 0.0
    %2785 = vmatpush.msra.mxu0 0.0
    %2786 = vmatpush.msra.mxu0 0.0
    %2787 = vmatpush.msra.mxu0 0.0
    %2788 = vmatpush.msra.mxu0 0.0
    %2789 = vmatpush.msra.mxu0 %v973
    %2790 = vmatpush.msra.mxu0 %v972
    %2791 = vmatpush.msra.mxu0 %v971
    %2792 = vmatpush.msra.mxu0 %v970
    %2793 = vmatpush.msra.mxu0 %v969
    %2794 = vmatpush.msra.mxu0 %v968
    %2795 = vmatpush.msra.mxu0 %v967
    %2796 = vmatpush.msra.mxu0 %v966
    %2797 = vmatpush.msra.mxu0 %v965
    %2798 = vmatpush.msra.mxu0 %v964
    %2799 = vmatmul.f32.gmra.mxu0 %v2781
    %v2800 = vpop.f32.mrf.mxu0
    %v2801 = vadd.f32 1e-05, %v2800
    %2802 = vdwg.mxu0
    %v2803 = vrsqrt.pop %v2801
    %v2804 = vmul.f32 %v2803, %v2801
    %v2805 = vmul.f32 %v2804, %v2803
    %v2806 = vmul.f32 0.5, %v2805
    %v2807 = vsub.f32 1.5, %v2806
    %v2808 = vmul.f32 %v2803, %v2807
    %vm2809 = vweird.f32 %v2801
    %vm2810 = vweird.f32 %v2803
    %vm2811 = vmor %vm2809, %vm2810
    %v2812 = vsel %vm2811, %v2803, %v2808
    %v2813 = vmul.f32 %v2777, %v2812
    %v2814 = vmul.f32 %v2813, %v1095
    %v2815 = vadd.f32 %v2814, %v1101
    %v2816 = vadd.f32 %v2755, %v2815
    %v2818 = vsel %vm974, %v2816, 0
    %2820 = vmatpush.msra.mxu0 0.0
    %2821 = vmatpush.msra.mxu0 0.0
    %2822 = vmatpush.msra.mxu0 0.0
    %2823 = vmatpush.msra.mxu0 0.0
    %2824 = vmatpush.msra.mxu0 0.0
    %2825 = vmatpush.msra.mxu0 0.0
    %2826 = vmatpush.msra.mxu0 %v1114
    %2827 = vmatpush.msra.mxu0 %v1113
    %2828 = vmatpush.msra.mxu0 %v1112
    %2829 = vmatpush.msra.mxu0 %v1111
    %2830 = vmatpush.msra.mxu0 %v1110
    %2831 = vmatpush.msra.mxu0 %v1109
    %2832 = vmatpush.msra.mxu0 %v1108
    %2833 = vmatpush.msra.mxu0 %v1107
    %2834 = vmatpush.msra.mxu0 %v1106
    %2835 = vmatpush.msra.mxu0 %v1105
    %2836 = vmatmul.f32.gmra.mxu0 %v2818
    %v2837 = vpop.f32.mrf.mxu0
    %v2838 = vadd.f32 %v1117, %v2837
    %2839 = vdwg.mxu0
    %v2840 = vadd.f32 %v2838, %v2506
    %2841 = vmatpush.msra.mxu0 0.0
    %2842 = vmatpush.msra.mxu0 0.0
    %2843 = vmatpush.msra.mxu0 0.0
    %2844 = vmatpush.msra.mxu0 0.0
    %2845 = vmatpush.msra.mxu0 0.0
    %2846 = vmatpush.msra.mxu0 0.0
    %2847 = vmatpush.msra.mxu0 %v1152
    %2848 = vmatpush.msra.mxu0 %v1151
    %2849 = vmatpush.msra.mxu0 %v1150
    %2850 = vmatpush.msra.mxu0 %v1149
    %2851 = vmatpush.msra.mxu0 %v1148
    %2852 = vmatpush.msra.mxu0 %v1147
    %2853 = vmatpush.msra.mxu0 %v1146
    %2854 = vmatpush.msra.mxu0 %v1145
    %2855 = vmatpush.msra.mxu0 %v1144
    %2856 = vmatpush.msra.mxu0 %v1143
    %2857 = vmatmul.f32.gmra.mxu0 %v2818
    %v2858 = vpop.f32.mrf.mxu0
    %v2859 = vadd.f32 %v1155, %v2858
    %2860 = vdwg.mxu0
    %v2861 = vadd.f32 %v2527, %v2859
    %2862 = vmatpush.msra.mxu0 0.0
    %2863 = vmatpush.msra.mxu0 0.0
    %2864 = vmatpush.msra.mxu0 0.0
    %2865 = vmatpush.msra.mxu0 0.0
    %2866 = vmatpush.msra.mxu0 0.0
    %2867 = vmatpush.msra.mxu0 0.0
    %2868 = vmatpush.msra.mxu0 %v1187
    %2869 = vmatpush.msra.mxu0 %v1186
    %2870 = vmatpush.msra.mxu0 %v1185
    %2871 = vmatpush.msra.mxu0 %v1184
    %2872 = vmatpush.msra.mxu0 %v1183
    %2873 = vmatpush.msra.mxu0 %v1182
    %2874 = vmatpush.msra.mxu0 %v1181
    %2875 = vmatpush.msra.mxu0 %v1180
    %2876 = vmatpush.msra.mxu0 %v1179
    %2877 = vmatpush.msra.mxu0 %v1178
    %2878 = vmatmul.f32.gmra.mxu0 %v2818
    %v2879 = vpop.f32.mrf.mxu0
    %v2880 = vadd.f32 %v1190, %v2879
    %2881 = vdwg.mxu0
    %2883 = vrot.lane.b32.xlu0 %v2880, 64
    %v2884 = vpop.permute.xlu0 %2883
    %v2886 = vadd.f32 %v2552, %v2884
    %2887 = vmatpush.msra.mxu0 0.0
    %2888 = vmatpush.msra.mxu0 0.0
    %2889 = vmatpush.msra.mxu0 0.0
    %2890 = vmatpush.msra.mxu0 0.0
    %2891 = vmatpush.msra.mxu0 0.0
    %2892 = vmatpush.msra.mxu0 0.0
    %2893 = vmatpush.msra.mxu0 0.0
    %2894 = vmatpush.msra.mxu0 0.0
    %2895 = vmatpush.msra.mxu0 0.0
    %2896 = vmatpush.msra.mxu0 0.0
    %2897 = vmatpush.msra.mxu0 0.0
    %2898 = vmatpush.msra.mxu0 0.0
    %2899 = vmatpush.msra.mxu0 %v168
    %2900 = vmatpush.msra.mxu0 %v167
    %2901 = vmatpush.msra.mxu0 %v166
    %2902 = vmatpush.msra.mxu0 %v165
    %2903 = vmatmul.f32.gmra.mxu0 %v2634
    %v2904 = vpop.f32.mrf.mxu0
    %v2905 = vadd.f32 %v171, %v2904
    %2906 = vdwg.mxu0
    %2907 = vmatpush.msra.mxu0 0.0
    %2908 = vmatpush.msra.mxu0 0.0
    %2909 = vmatpush.msra.mxu0 0.0
    %2910 = vmatpush.msra.mxu0 0.0
    %2911 = vmatpush.msra.mxu0 0.0
    %2912 = vmatpush.msra.mxu0 0.0
    %2913 = vmatpush.msra.mxu0 0.0
    %2914 = vmatpush.msra.mxu0 0.0
    %2915 = vmatpush.msra.mxu0 0.0
    %2916 = vmatpush.msra.mxu0 0.0
    %2917 = vmatpush.msra.mxu0 0.0
    %2918 = vmatpush.msra.mxu0 0.0
    %2919 = vmatpush.msra.mxu0 %v200
    %2920 = vmatpush.msra.mxu0 %v199
    %2921 = vmatpush.msra.mxu0 %v198
    %2922 = vmatpush.msra.mxu0 %v197
    %2923 = vmatmul.f32.gmra.mxu0 %v2634
    %v2924 = vpop.f32.mrf.mxu0
    %v2925 = vadd.f32 %v203, %v2924
    %2926 = vdwg.mxu0
    %v2927 = vadd.f32 %v2861, %v2905
    %v2928 = vxor.u32 %v2927, 2147483648
    %v2929 = vmul.f32 %v2928, 1.442695
    %v2930 = vpow.pop %v2929
    %v2931 = vadd.f32 %v2930, 1.0
    %v2932 = vrcp.pop %v2931
    %v2933 = vmul.f32 %v2931, %v2932
    %v2934 = vsub.f32 1.0, %v2933
    %v2935 = vmul.f32 %v2932, %v2934
    %v2936 = vadd.f32 %v2932, %v2935
    %vm2937 = vweird.f32 %v2931
    %vm2938 = vweird.f32 %v2932
    %vm2939 = vmor %vm2937, %vm2938
    %v2940 = vsel %vm2939, %v2932, %v2936
    %v2941 = vand.u32 2147483647, %v2931
    %vm2942 = vcmp.eq.f32.partialorder %v2941, 8.507059e+37
    %v2943 = vand.u32 %v2931, 2147483648
    %v2944 = vor.u32 1.1754944e-38, %v2943
    %v2945 = vsel %vm2942, %v2944, %v2940
    %v2946 = vmul.f32 1.0, %v2945
    %v2947 = vmul.f32 %v2946, %v2925
    %2949 = vrot.lane.b32.xlu0 %v2947, 64
    %v2950 = vpop.permute.xlu0 %2949
    %v2952 = vadd.f32 %v2886, %v2950
    %v2953 = vtanh.pop %v2952
    %v2954 = vsub.f32 %v2630, %v2953
    %2956 = vrot.lane.b32.xlu0 %v2954, 96
    %v2957 = vpop.permute.xlu0 %2956
    %v2959 = vmul.f32 %v2946, %v2957
    %2961 = vrot.lane.b32.xlu0 %v2959, 32
    %v2962 = vpop.permute.xlu0 %2961
    %v2964 = vadd.f32 %v2953, %v2962
    %2966 = vrot.lane.b32.xlu0 %v2964, 64
    %v2967 = vpop.permute.xlu0 %2966
    %v2968 = vsel %vm173, %v2967, 0
    %2970 = vmatpush.msra.mxu0 0.0
    %2971 = vmatpush.msra.mxu0 0.0
    %2972 = vmatpush.msra.mxu0 0.0
    %2973 = vmatpush.msra.mxu0 0.0
    %2974 = vmatpush.msra.mxu0 0.0
    %2975 = vmatpush.msra.mxu0 0.0
    %2976 = vmatpush.msra.mxu0 0.0
    %2977 = vmatpush.msra.mxu0 0.0
    %2978 = vmatpush.msra.mxu0 0.0
    %2979 = vmatpush.msra.mxu0 0.0
    %2980 = vmatpush.msra.mxu0 0.0
    %2981 = vmatpush.msra.mxu0 0.0
    %2982 = vmatpush.msra.mxu0 %v854
    %2983 = vmatpush.msra.mxu0 %v853
    %2984 = vmatpush.msra.mxu0 %v852
    %2985 = vmatpush.msra.mxu0 %v851
    %2986 = vmatmul.f32.gmra.mxu0 %v2968
    %v2987 = vpop.f32.mrf.mxu0
    %v2988 = vadd.f32 %v857, %v2987
    %2989 = vdwg.mxu0
    %2990 = vrot.lane.b32.xlu0 %v2172, 16
    %v2991 = vpop.permute.xlu0 %2990
    %2993 = vrot.lane.b32.xlu0 %v2506, 32
    %v2994 = vpop.permute.xlu0 %2993
    %2997 = vrot.lane.b32.xlu0 %v2840, 48
    %v2998 = vpop.permute.xlu0 %2997
    %v3000 = vsel %vm89, %v882, %v2991
    %v3001 = vsel %vm173, %v3000, %v2994
    %v3002 = vsel %vm895, %v3001, %v2998
    %3004 = vrot.lane.b32.xlu0 %v2988, 64
    %v3005 = vpop.permute.xlu0 %3004
    %v3007 = vsel %vm901, %v3002, %v3005
    %3008 = vmatpush.msra.mxu0 0.0
    %3009 = vmatpush.msra.mxu0 0.0
    %3010 = vmatpush.msra.mxu0 0.0
    %3011 = vmatpush.msra.mxu0 0.0
    %3012 = vmatpush.msra.mxu0 0.0
    %3013 = vmatpush.msra.mxu0 0.0
    %3014 = vmatpush.msra.mxu0 0.0
    %3015 = vmatpush.msra.mxu0 0.0
    %3016 = vmatpush.msra.mxu0 0.0
    %3017 = vmatpush.msra.mxu0 0.0
    %3018 = vmatpush.msra.mxu0 0.0
    %3019 = vmatpush.msra.mxu0 0.0
    %3020 = vmatpush.msra.mxu0 %v914
    %3021 = vmatpush.msra.mxu0 %v913
    %3022 = vmatpush.msra.mxu0 %v912
    %3023 = vmatpush.msra.mxu0 %v911
    %3024 = vmatmul.f32.gmra.mxu0 %v2968
    %v3025 = vpop.f32.mrf.mxu0
    %v3026 = vadd.f32 0.0, %v3025
    %3027 = vdwg.mxu0
    %v3029 = vsel %vm901, %v3002, 0
    %3031 = vmatpush.msra.mxu0 0.0
    %3032 = vmatpush.msra.mxu0 0.0
    %3033 = vmatpush.msra.mxu0 0.0
    %3034 = vmatpush.msra.mxu0 0.0
    %3035 = vmatpush.msra.mxu0 0.0
    %3036 = vmatpush.msra.mxu0 0.0
    %3037 = vmatpush.msra.mxu0 0.0
    %3038 = vmatpush.msra.mxu0 0.0
    %3039 = vmatpush.msra.mxu0 %v910
    %3040 = vmatpush.msra.mxu0 %v909
    %3041 = vmatpush.msra.mxu0 %v908
    %3042 = vmatpush.msra.mxu0 %v907
    %3043 = vmatpush.msra.mxu0 %v906
    %3044 = vmatpush.msra.mxu0 %v905
    %3045 = vmatpush.msra.mxu0 %v904
    %3046 = vmatpush.msra.mxu0 %v903
    %3047 = vmatmul.f32.gmra.mxu0 %v3029
    %v3048 = vpop.f32.mrf.mxu0
    %v3049 = vadd.f32 %v3026, %v3048
    %3050 = vdwg.mxu0
    %v3051 = vadd.f32 %v3049, %v960
    %v3052 = vmul.f32 %v3051, %v3051
    %v3054 = vsel %vm974, %v3052, 0
    %3056 = vmatpush.msra.mxu0 0.0
    %3057 = vmatpush.msra.mxu0 0.0
    %3058 = vmatpush.msra.mxu0 0.0
    %3059 = vmatpush.msra.mxu0 0.0
    %3060 = vmatpush.msra.mxu0 0.0
    %3061 = vmatpush.msra.mxu0 0.0
    %3062 = vmatpush.msra.mxu0 %v973
    %3063 = vmatpush.msra.mxu0 %v972
    %3064 = vmatpush.msra.mxu0 %v971
    %3065 = vmatpush.msra.mxu0 %v970
    %3066 = vmatpush.msra.mxu0 %v969
    %3067 = vmatpush.msra.mxu0 %v968
    %3068 = vmatpush.msra.mxu0 %v967
    %3069 = vmatpush.msra.mxu0 %v966
    %3070 = vmatpush.msra.mxu0 %v965
    %3071 = vmatpush.msra.mxu0 %v964
    %3072 = vmatmul.f32.gmra.mxu0 %v3054
    %v3073 = vpop.f32.mrf.mxu0
    %v3074 = vadd.f32 1e-05, %v3073
    %3075 = vdwg.mxu0
    %v3076 = vrsqrt.pop %v3074
    %v3077 = vmul.f32 %v3076, %v3074
    %v3078 = vmul.f32 %v3077, %v3076
    %v3079 = vmul.f32 0.5, %v3078
    %v3080 = vsub.f32 1.5, %v3079
    %v3081 = vmul.f32 %v3076, %v3080
    %vm3082 = vweird.f32 %v3074
    %vm3083 = vweird.f32 %v3076
    %vm3084 = vmor %vm3082, %vm3083
    %v3085 = vsel %vm3084, %v3076, %v3081
    %v3086 = vmul.f32 %v3051, %v3085
    %v3087 = vmul.f32 %v3086, %v1011
    %v3088 = vadd.f32 %v3087, %v1016
    %v3089 = vadd.f32 %v3007, %v3088
    %v3091 = vsel %vm974, %v3089, 0
    %3093 = vmatpush.msra.mxu0 0.0
    %3094 = vmatpush.msra.mxu0 0.0
    %3095 = vmatpush.msra.mxu0 0.0
    %3096 = vmatpush.msra.mxu0 0.0
    %3097 = vmatpush.msra.mxu0 0.0
    %3098 = vmatpush.msra.mxu0 0.0
    %3099 = vmatpush.msra.mxu0 %v1029
    %3100 = vmatpush.msra.mxu0 %v1028
    %3101 = vmatpush.msra.mxu0 %v1027
    %3102 = vmatpush.msra.mxu0 %v1026
    %3103 = vmatpush.msra.mxu0 %v1025
    %3104 = vmatpush.msra.mxu0 %v1024
    %3105 = vmatpush.msra.mxu0 %v1023
    %3106 = vmatpush.msra.mxu0 %v1022
    %3107 = vmatpush.msra.mxu0 %v1021
    %3108 = vmatpush.msra.mxu0 %v1020
    %3109 = vmatmul.f32.gmra.mxu0 %v3091
    %v3110 = vpop.f32.mrf.mxu0
    %v3111 = vadd.f32 %v1032, %v3110
    %3112 = vdwg.mxu0
    %v3113 = vmul.f32 %v3111, %v3111
    %v3115 = vsel %vm974, %v3113, 0
    %3117 = vmatpush.msra.mxu0 0.0
    %3118 = vmatpush.msra.mxu0 0.0
    %3119 = vmatpush.msra.mxu0 0.0
    %3120 = vmatpush.msra.mxu0 0.0
    %3121 = vmatpush.msra.mxu0 0.0
    %3122 = vmatpush.msra.mxu0 0.0
    %3123 = vmatpush.msra.mxu0 %v973
    %3124 = vmatpush.msra.mxu0 %v972
    %3125 = vmatpush.msra.mxu0 %v971
    %3126 = vmatpush.msra.mxu0 %v970
    %3127 = vmatpush.msra.mxu0 %v969
    %3128 = vmatpush.msra.mxu0 %v968
    %3129 = vmatpush.msra.mxu0 %v967
    %3130 = vmatpush.msra.mxu0 %v966
    %3131 = vmatpush.msra.mxu0 %v965
    %3132 = vmatpush.msra.mxu0 %v964
    %3133 = vmatmul.f32.gmra.mxu0 %v3115
    %v3134 = vpop.f32.mrf.mxu0
    %v3135 = vadd.f32 1e-05, %v3134
    %3136 = vdwg.mxu0
    %v3137 = vrsqrt.pop %v3135
    %v3138 = vmul.f32 %v3137, %v3135
    %v3139 = vmul.f32 %v3138, %v3137
    %v3140 = vmul.f32 0.5, %v3139
    %v3141 = vsub.f32 1.5, %v3140
    %v3142 = vmul.f32 %v3137, %v3141
    %vm3143 = vweird.f32 %v3135
    %vm3144 = vweird.f32 %v3137
    %vm3145 = vmor %vm3143, %vm3144
    %v3146 = vsel %vm3145, %v3137, %v3142
    %v3147 = vmul.f32 %v3111, %v3146
    %v3148 = vmul.f32 %v3147, %v1095
    %v3149 = vadd.f32 %v3148, %v1101
    %v3150 = vadd.f32 %v3089, %v3149
    %v3152 = vsel %vm974, %v3150, 0
    %3154 = vmatpush.msra.mxu0 0.0
    %3155 = vmatpush.msra.mxu0 0.0
    %3156 = vmatpush.msra.mxu0 0.0
    %3157 = vmatpush.msra.mxu0 0.0
    %3158 = vmatpush.msra.mxu0 0.0
    %3159 = vmatpush.msra.mxu0 0.0
    %3160 = vmatpush.msra.mxu0 %v1114
    %3161 = vmatpush.msra.mxu0 %v1113
    %3162 = vmatpush.msra.mxu0 %v1112
    %3163 = vmatpush.msra.mxu0 %v1111
    %3164 = vmatpush.msra.mxu0 %v1110
    %3165 = vmatpush.msra.mxu0 %v1109
    %3166 = vmatpush.msra.mxu0 %v1108
    %3167 = vmatpush.msra.mxu0 %v1107
    %3168 = vmatpush.msra.mxu0 %v1106
    %3169 = vmatpush.msra.mxu0 %v1105
    %3170 = vmatmul.f32.gmra.mxu0 %v3152
    %v3171 = vpop.f32.mrf.mxu0
    %v3172 = vadd.f32 %v1117, %v3171
    %3173 = vdwg.mxu0
    %v3174 = vadd.f32 %v3172, %v2840
    %3175 = vmatpush.msra.mxu0 0.0
    %3176 = vmatpush.msra.mxu0 0.0
    %3177 = vmatpush.msra.mxu0 0.0
    %3178 = vmatpush.msra.mxu0 0.0
    %3179 = vmatpush.msra.mxu0 0.0
    %3180 = vmatpush.msra.mxu0 0.0
    %3181 = vmatpush.msra.mxu0 %v1152
    %3182 = vmatpush.msra.mxu0 %v1151
    %3183 = vmatpush.msra.mxu0 %v1150
    %3184 = vmatpush.msra.mxu0 %v1149
    %3185 = vmatpush.msra.mxu0 %v1148
    %3186 = vmatpush.msra.mxu0 %v1147
    %3187 = vmatpush.msra.mxu0 %v1146
    %3188 = vmatpush.msra.mxu0 %v1145
    %3189 = vmatpush.msra.mxu0 %v1144
    %3190 = vmatpush.msra.mxu0 %v1143
    %3191 = vmatmul.f32.gmra.mxu0 %v3152
    %v3192 = vpop.f32.mrf.mxu0
    %v3193 = vadd.f32 %v1155, %v3192
    %3194 = vdwg.mxu0
    %v3195 = vadd.f32 %v2861, %v3193
    %3196 = vmatpush.msra.mxu0 0.0
    %3197 = vmatpush.msra.mxu0 0.0
    %3198 = vmatpush.msra.mxu0 0.0
    %3199 = vmatpush.msra.mxu0 0.0
    %3200 = vmatpush.msra.mxu0 0.0
    %3201 = vmatpush.msra.mxu0 0.0
    %3202 = vmatpush.msra.mxu0 %v1187
    %3203 = vmatpush.msra.mxu0 %v1186
    %3204 = vmatpush.msra.mxu0 %v1185
    %3205 = vmatpush.msra.mxu0 %v1184
    %3206 = vmatpush.msra.mxu0 %v1183
    %3207 = vmatpush.msra.mxu0 %v1182
    %3208 = vmatpush.msra.mxu0 %v1181
    %3209 = vmatpush.msra.mxu0 %v1180
    %3210 = vmatpush.msra.mxu0 %v1179
    %3211 = vmatpush.msra.mxu0 %v1178
    %3212 = vmatmul.f32.gmra.mxu0 %v3152
    %v3213 = vpop.f32.mrf.mxu0
    %v3214 = vadd.f32 %v1190, %v3213
    %3215 = vdwg.mxu0
    %3217 = vrot.lane.b32.xlu0 %v3214, 64
    %v3218 = vpop.permute.xlu0 %3217
    %v3220 = vadd.f32 %v2886, %v3218
    %3221 = vmatpush.msra.mxu0 0.0
    %3222 = vmatpush.msra.mxu0 0.0
    %3223 = vmatpush.msra.mxu0 0.0
    %3224 = vmatpush.msra.mxu0 0.0
    %3225 = vmatpush.msra.mxu0 0.0
    %3226 = vmatpush.msra.mxu0 0.0
    %3227 = vmatpush.msra.mxu0 0.0
    %3228 = vmatpush.msra.mxu0 0.0
    %3229 = vmatpush.msra.mxu0 0.0
    %3230 = vmatpush.msra.mxu0 0.0
    %3231 = vmatpush.msra.mxu0 0.0
    %3232 = vmatpush.msra.mxu0 0.0
    %3233 = vmatpush.msra.mxu0 %v168
    %3234 = vmatpush.msra.mxu0 %v167
    %3235 = vmatpush.msra.mxu0 %v166
    %3236 = vmatpush.msra.mxu0 %v165
    %3237 = vmatmul.f32.gmra.mxu0 %v2968
    %v3238 = vpop.f32.mrf.mxu0
    %v3239 = vadd.f32 %v171, %v3238
    %3240 = vdwg.mxu0
    %3241 = vmatpush.msra.mxu0 0.0
    %3242 = vmatpush.msra.mxu0 0.0
    %3243 = vmatpush.msra.mxu0 0.0
    %3244 = vmatpush.msra.mxu0 0.0
    %3245 = vmatpush.msra.mxu0 0.0
    %3246 = vmatpush.msra.mxu0 0.0
    %3247 = vmatpush.msra.mxu0 0.0
    %3248 = vmatpush.msra.mxu0 0.0
    %3249 = vmatpush.msra.mxu0 0.0
    %3250 = vmatpush.msra.mxu0 0.0
    %3251 = vmatpush.msra.mxu0 0.0
    %3252 = vmatpush.msra.mxu0 0.0
    %3253 = vmatpush.msra.mxu0 %v200
    %3254 = vmatpush.msra.mxu0 %v199
    %3255 = vmatpush.msra.mxu0 %v198
    %3256 = vmatpush.msra.mxu0 %v197
    %3257 = vmatmul.f32.gmra.mxu0 %v2968
    %v3258 = vpop.f32.mrf.mxu0
    %v3259 = vadd.f32 %v203, %v3258
    %3260 = vdwg.mxu0
    %v3261 = vadd.f32 %v3195, %v3239
    %v3262 = vxor.u32 %v3261, 2147483648
    %v3263 = vmul.f32 %v3262, 1.442695
    %v3264 = vpow.pop %v3263
    %v3265 = vadd.f32 %v3264, 1.0
    %v3266 = vrcp.pop %v3265
    %v3267 = vmul.f32 %v3265, %v3266
    %v3268 = vsub.f32 1.0, %v3267
    %v3269 = vmul.f32 %v3266, %v3268
    %v3270 = vadd.f32 %v3266, %v3269
    %vm3271 = vweird.f32 %v3265
    %vm3272 = vweird.f32 %v3266
    %vm3273 = vmor %vm3271, %vm3272
    %v3274 = vsel %vm3273, %v3266, %v3270
    %v3275 = vand.u32 2147483647, %v3265
    %vm3276 = vcmp.eq.f32.partialorder %v3275, 8.507059e+37
    %v3277 = vand.u32 %v3265, 2147483648
    %v3278 = vor.u32 1.1754944e-38, %v3277
    %v3279 = vsel %vm3276, %v3278, %v3274
    %v3280 = vmul.f32 1.0, %v3279
    %v3281 = vmul.f32 %v3280, %v3259
    %3283 = vrot.lane.b32.xlu0 %v3281, 64
    %v3284 = vpop.permute.xlu0 %3283
    %v3286 = vadd.f32 %v3220, %v3284
    %v3287 = vtanh.pop %v3286
    %v3288 = vsub.f32 %v2964, %v3287
    %3290 = vrot.lane.b32.xlu0 %v3288, 96
    %v3291 = vpop.permute.xlu0 %3290
    %v3293 = vmul.f32 %v3280, %v3291
    %3295 = vrot.lane.b32.xlu0 %v3293, 32
    %v3296 = vpop.permute.xlu0 %3295
    %v3298 = vadd.f32 %v3287, %v3296
    %3300 = vrot.lane.b32.xlu0 %v3298, 64
    %v3301 = vpop.permute.xlu0 %3300
    %v3302 = vsel %vm173, %v3301, 0
    %3304 = vmatpush.msra.mxu0 0.0
    %3305 = vmatpush.msra.mxu0 0.0
    %3306 = vmatpush.msra.mxu0 0.0
    %3307 = vmatpush.msra.mxu0 0.0
    %3308 = vmatpush.msra.mxu0 0.0
    %3309 = vmatpush.msra.mxu0 0.0
    %3310 = vmatpush.msra.mxu0 0.0
    %3311 = vmatpush.msra.mxu0 0.0
    %3312 = vmatpush.msra.mxu0 0.0
    %3313 = vmatpush.msra.mxu0 0.0
    %3314 = vmatpush.msra.mxu0 0.0
    %3315 = vmatpush.msra.mxu0 0.0
    %3316 = vmatpush.msra.mxu0 %v854
    %3317 = vmatpush.msra.mxu0 %v853
    %3318 = vmatpush.msra.mxu0 %v852
    %3319 = vmatpush.msra.mxu0 %v851
    %3320 = vmatmul.f32.gmra.mxu0 %v3302
    %v3321 = vpop.f32.mrf.mxu0
    %v3322 = vadd.f32 %v857, %v3321
    %3323 = vdwg.mxu0
    %3324 = vrot.lane.b32.xlu0 %v2506, 16
    %v3325 = vpop.permute.xlu0 %3324
    %3327 = vrot.lane.b32.xlu0 %v2840, 32
    %v3328 = vpop.permute.xlu0 %3327
    %3331 = vrot.lane.b32.xlu0 %v3174, 48
    %v3332 = vpop.permute.xlu0 %3331
    %v3334 = vsel %vm89, %v882, %v3325
    %v3335 = vsel %vm173, %v3334, %v3328
    %v3336 = vsel %vm895, %v3335, %v3332
    %3338 = vrot.lane.b32.xlu0 %v3322, 64
    %v3339 = vpop.permute.xlu0 %3338
    %v3341 = vsel %vm901, %v3336, %v3339
    %3342 = vmatpush.msra.mxu0 0.0
    %3343 = vmatpush.msra.mxu0 0.0
    %3344 = vmatpush.msra.mxu0 0.0
    %3345 = vmatpush.msra.mxu0 0.0
    %3346 = vmatpush.msra.mxu0 0.0
    %3347 = vmatpush.msra.mxu0 0.0
    %3348 = vmatpush.msra.mxu0 0.0
    %3349 = vmatpush.msra.mxu0 0.0
    %3350 = vmatpush.msra.mxu0 0.0
    %3351 = vmatpush.msra.mxu0 0.0
    %3352 = vmatpush.msra.mxu0 0.0
    %3353 = vmatpush.msra.mxu0 0.0
    %3354 = vmatpush.msra.mxu0 %v914
    %3355 = vmatpush.msra.mxu0 %v913
    %3356 = vmatpush.msra.mxu0 %v912
    %3357 = vmatpush.msra.mxu0 %v911
    %3358 = vmatmul.f32.gmra.mxu0 %v3302
    %v3359 = vpop.f32.mrf.mxu0
    %v3360 = vadd.f32 0.0, %v3359
    %3361 = vdwg.mxu0
    %v3363 = vsel %vm901, %v3336, 0
    %3365 = vmatpush.msra.mxu0 0.0
    %3366 = vmatpush.msra.mxu0 0.0
    %3367 = vmatpush.msra.mxu0 0.0
    %3368 = vmatpush.msra.mxu0 0.0
    %3369 = vmatpush.msra.mxu0 0.0
    %3370 = vmatpush.msra.mxu0 0.0
    %3371 = vmatpush.msra.mxu0 0.0
    %3372 = vmatpush.msra.mxu0 0.0
    %3373 = vmatpush.msra.mxu0 %v910
    %3374 = vmatpush.msra.mxu0 %v909
    %3375 = vmatpush.msra.mxu0 %v908
    %3376 = vmatpush.msra.mxu0 %v907
    %3377 = vmatpush.msra.mxu0 %v906
    %3378 = vmatpush.msra.mxu0 %v905
    %3379 = vmatpush.msra.mxu0 %v904
    %3380 = vmatpush.msra.mxu0 %v903
    %3381 = vmatmul.f32.gmra.mxu0 %v3363
    %v3382 = vpop.f32.mrf.mxu0
    %v3383 = vadd.f32 %v3360, %v3382
    %3384 = vdwg.mxu0
    %v3385 = vadd.f32 %v3383, %v960
    %v3386 = vmul.f32 %v3385, %v3385
    %v3388 = vsel %vm974, %v3386, 0
    %3390 = vmatpush.msra.mxu0 0.0
    %3391 = vmatpush.msra.mxu0 0.0
    %3392 = vmatpush.msra.mxu0 0.0
    %3393 = vmatpush.msra.mxu0 0.0
    %3394 = vmatpush.msra.mxu0 0.0
    %3395 = vmatpush.msra.mxu0 0.0
    %3396 = vmatpush.msra.mxu0 %v973
    %3397 = vmatpush.msra.mxu0 %v972
    %3398 = vmatpush.msra.mxu0 %v971
    %3399 = vmatpush.msra.mxu0 %v970
    %3400 = vmatpush.msra.mxu0 %v969
    %3401 = vmatpush.msra.mxu0 %v968
    %3402 = vmatpush.msra.mxu0 %v967
    %3403 = vmatpush.msra.mxu0 %v966
    %3404 = vmatpush.msra.mxu0 %v965
    %3405 = vmatpush.msra.mxu0 %v964
    %3406 = vmatmul.f32.gmra.mxu0 %v3388
    %v3407 = vpop.f32.mrf.mxu0
    %v3408 = vadd.f32 1e-05, %v3407
    %3409 = vdwg.mxu0
    %v3410 = vrsqrt.pop %v3408
    %v3411 = vmul.f32 %v3410, %v3408
    %v3412 = vmul.f32 %v3411, %v3410
    %v3413 = vmul.f32 0.5, %v3412
    %v3414 = vsub.f32 1.5, %v3413
    %v3415 = vmul.f32 %v3410, %v3414
    %vm3416 = vweird.f32 %v3408
    %vm3417 = vweird.f32 %v3410
    %vm3418 = vmor %vm3416, %vm3417
    %v3419 = vsel %vm3418, %v3410, %v3415
    %v3420 = vmul.f32 %v3385, %v3419
    %v3421 = vmul.f32 %v3420, %v1011
    %v3422 = vadd.f32 %v3421, %v1016
    %v3423 = vadd.f32 %v3341, %v3422
    %v3425 = vsel %vm974, %v3423, 0
    %3427 = vmatpush.msra.mxu0 0.0
    %3428 = vmatpush.msra.mxu0 0.0
    %3429 = vmatpush.msra.mxu0 0.0
    %3430 = vmatpush.msra.mxu0 0.0
    %3431 = vmatpush.msra.mxu0 0.0
    %3432 = vmatpush.msra.mxu0 0.0
    %3433 = vmatpush.msra.mxu0 %v1029
    %3434 = vmatpush.msra.mxu0 %v1028
    %3435 = vmatpush.msra.mxu0 %v1027
    %3436 = vmatpush.msra.mxu0 %v1026
    %3437 = vmatpush.msra.mxu0 %v1025
    %3438 = vmatpush.msra.mxu0 %v1024
    %3439 = vmatpush.msra.mxu0 %v1023
    %3440 = vmatpush.msra.mxu0 %v1022
    %3441 = vmatpush.msra.mxu0 %v1021
    %3442 = vmatpush.msra.mxu0 %v1020
    %3443 = vmatmul.f32.gmra.mxu0 %v3425
    %v3444 = vpop.f32.mrf.mxu0
    %v3445 = vadd.f32 %v1032, %v3444
    %3446 = vdwg.mxu0
    %v3447 = vmul.f32 %v3445, %v3445
    %v3449 = vsel %vm974, %v3447, 0
    %3451 = vmatpush.msra.mxu0 0.0
    %3452 = vmatpush.msra.mxu0 0.0
    %3453 = vmatpush.msra.mxu0 0.0
    %3454 = vmatpush.msra.mxu0 0.0
    %3455 = vmatpush.msra.mxu0 0.0
    %3456 = vmatpush.msra.mxu0 0.0
    %3457 = vmatpush.msra.mxu0 %v973
    %3458 = vmatpush.msra.mxu0 %v972
    %3459 = vmatpush.msra.mxu0 %v971
    %3460 = vmatpush.msra.mxu0 %v970
    %3461 = vmatpush.msra.mxu0 %v969
    %3462 = vmatpush.msra.mxu0 %v968
    %3463 = vmatpush.msra.mxu0 %v967
    %3464 = vmatpush.msra.mxu0 %v966
    %3465 = vmatpush.msra.mxu0 %v965
    %3466 = vmatpush.msra.mxu0 %v964
    %3467 = vmatmul.f32.gmra.mxu0 %v3449
    %v3468 = vpop.f32.mrf.mxu0
    %v3469 = vadd.f32 1e-05, %v3468
    %3470 = vdwg.mxu0
    %v3471 = vrsqrt.pop %v3469
    %v3472 = vmul.f32 %v3471, %v3469
    %v3473 = vmul.f32 %v3472, %v3471
    %v3474 = vmul.f32 0.5, %v3473
    %v3475 = vsub.f32 1.5, %v3474
    %v3476 = vmul.f32 %v3471, %v3475
    %vm3477 = vweird.f32 %v3469
    %vm3478 = vweird.f32 %v3471
    %vm3479 = vmor %vm3477, %vm3478
    %v3480 = vsel %vm3479, %v3471, %v3476
    %v3481 = vmul.f32 %v3445, %v3480
    %v3482 = vmul.f32 %v3481, %v1095
    %v3483 = vadd.f32 %v3482, %v1101
    %v3484 = vadd.f32 %v3423, %v3483
    %v3486 = vsel %vm974, %v3484, 0
    %3488 = vmatpush.msra.mxu0 0.0
    %3489 = vmatpush.msra.mxu0 0.0
    %3490 = vmatpush.msra.mxu0 0.0
    %3491 = vmatpush.msra.mxu0 0.0
    %3492 = vmatpush.msra.mxu0 0.0
    %3493 = vmatpush.msra.mxu0 0.0
    %3494 = vmatpush.msra.mxu0 %v1114
    %3495 = vmatpush.msra.mxu0 %v1113
    %3496 = vmatpush.msra.mxu0 %v1112
    %3497 = vmatpush.msra.mxu0 %v1111
    %3498 = vmatpush.msra.mxu0 %v1110
    %3499 = vmatpush.msra.mxu0 %v1109
    %3500 = vmatpush.msra.mxu0 %v1108
    %3501 = vmatpush.msra.mxu0 %v1107
    %3502 = vmatpush.msra.mxu0 %v1106
    %3503 = vmatpush.msra.mxu0 %v1105
    %3504 = vmatmul.f32.gmra.mxu0 %v3486
    %v3505 = vpop.f32.mrf.mxu0
    %v3506 = vadd.f32 %v1117, %v3505
    %3507 = vdwg.mxu0
    %v3508 = vadd.f32 %v3506, %v3174
    %3509 = vrot.lane.b32.xlu0 %v2506, 64
    %v3510 = vpop.permute.xlu0 %3509
    %3512 = vrot.lane.b32.xlu0 %v2840, 80
    %v3513 = vpop.permute.xlu0 %3512
    %3515 = vrot.lane.b32.xlu0 %v3174, 96
    %v3516 = vpop.permute.xlu0 %3515
    %3519 = vrot.lane.b32.xlu0 %v3508, 112
    %v3520 = vpop.permute.xlu0 %3519
    %v3522 = vsel %vm89, %v1142, %v2323
    %v3523 = vsel %vm173, %v3522, %v2326
    %v3524 = vsel %vm895, %v3523, %v2330
    %v3525 = vsel %vm901, %v3524, %v3510
    %v3526 = vsel %vm974, %v3525, %v3513
    %v3527 = vsel %vm155, %v3526, %v3516
    %vm3528 = vcmask 916480
    %v3529 = vsel %vm3528, %v3527, %v3520
    %3530 = vst [vmem:[#allocation3] sm:$0xff] %v3529
    // Predicated region
    $region94: #{tpu_custom_call.1} parent=1 // pred_check
      _
    $region95: #{tpu_custom_call.1} parent=1 // pred_check_branch
      %3532 = sbr.rel (0) target = $region97
    $region96: #{tpu_custom_call.1} parent=1 // pred_region
      %3534 = vsyncadd [#allocation4], 0
      %s3536 = sshll.u32 [#allocation3], 4
      %s3537 = int_to_ptr.vmem [resolvable:$true] %s3536
      %s3538 = sshll.u32 %s23, 4
      %s3539 = int_to_ptr.hbm [resolvable:$true] %s3538
      %3541 = dma.vmem_to_hbm [thread:$0]  %s3537, 128, %s3539, [#allocation4]
    $region97: #{tpu_custom_call.1} parent=1 // pred_fallthru
      _
    // Predicated region
    $region98: #{tpu_custom_call.1} parent=1 // pred_check
      _
    $region99: #{tpu_custom_call.1} parent=1 // pred_check_branch
      %3543 = sbr.rel (0) target = $region101
    $region100: #{tpu_custom_call.1} parent=1 // pred_region
      %3545 = dma.done [#allocation4], 128
    $region101: #{tpu_custom_call.1} parent=1 // pred_fallthru
      _
    %3546 = vsyncpa [#allocation4], 1

</llo_original>
